<compile_context>
chip_gen: v7x
topology: tpu7x:2x2x1
jax: 0.10.0
libtpu: 0.0.40
codegen_flags: <defaults>
</compile_context>

<pallas_src>
import functools

import numpy as np
import jax
import jax.numpy as jnp
from jax.experimental import pallas as pl
from jax.experimental.pallas import tpu as pltpu


def _round_up(x, m):
    return (x + m - 1) // m * m


# ------------------------------ fused kernel --------------------------------

def _siamfc_fused_kernel(z_ref, x_ref,
                         wb1z_ref, bb1z_ref, wb2z_ref, bb2z_ref,
                         wb1x_ref, bb1x_ref, wb2x_ref, bb2x_ref,
                         o_ref,
                         h1z_ref, h2z_ref, h1x_ref, h2x_ref,
                         *, cfg, out_scale):
    kh, kw = cfg["kh"], cfg["kw"]

    def conv(in_ref, wb_ref, bb_ref, out_ref, Ho, Wo, Cin, relu):
        # Layout: feat[h, w*C + c].  Per tap (di,dj) the shifted window
        #   in_ref[di:di+Ho, dj*Cin:(dj+Wo)*Cin]            (Ho, Wo*Cin)
        # times the block-diagonal tap weight (Wo*Cin, Wo*Cout) gives the tap's
        # contribution to out[h, w*Cout + c]; 9 MXU dots, f32 accumulation.
        acc = jnp.zeros(out_ref.shape, jnp.float32)
        for di in range(kh):
            for dj in range(kw):
                t = di * kw + dj
                slab = in_ref[di:di + Ho, dj * Cin:(dj + Wo) * Cin]
                acc = acc + jnp.dot(slab, wb_ref[t],
                                    preferred_element_type=jnp.float32)
        acc = acc + bb_ref[...]
        if relu:
            acc = jnp.maximum(acc, 0.0)
        out_ref[...] = acc

    # backbone(z): conv1 + ReLU -> conv2, resident in VMEM scratch
    conv(z_ref, wb1z_ref, bb1z_ref, h1z_ref, cfg["Ho1z"], cfg["Wo1z"], cfg["Cin"], True)
    conv(h1z_ref, wb2z_ref, bb2z_ref, h2z_ref, cfg["Ho2z"], cfg["Wo2z"], cfg["C1"], False)
    # backbone(x)
    conv(x_ref, wb1x_ref, bb1x_ref, h1x_ref, cfg["Ho1x"], cfg["Wo1x"], cfg["Cin"], True)
    conv(h1x_ref, wb2x_ref, bb2x_ref, h2x_ref, cfg["Ho2x"], cfg["Wo2x"], cfg["C1"], False)

    # head (SiamFC._fast_xcorr): valid cross-correlation of xf with zf.
    # zf is (Hz, Wz*C2) = (8, 128) here -> each score is one vreg mul + reduce.
    C2 = cfg["C2"]
    Hz, Wz = cfg["Ho2z"], cfg["Wo2z"]
    Hr, Wr = cfg["Hr"], cfg["Wr"]
    OT_H, OT_W = cfg["OT_H"], cfg["OT_W"]

    zf = h2z_ref[...]
    row_i = jax.lax.broadcasted_iota(jnp.int32, (OT_H, OT_W), 0)
    col_i = jax.lax.broadcasted_iota(jnp.int32, (OT_H, OT_W), 1)
    resp = jnp.zeros((OT_H, OT_W), jnp.float32)
    for ho in range(Hr):
        for wo in range(Wr):
            win = h2x_ref[ho:ho + Hz, wo * C2:(wo + Wz) * C2]
            s = jnp.sum(win * zf) * out_scale
            resp = jnp.where((row_i == ho) & (col_i == wo), s, resp)
    # single unmasked lane-dense full-tile store
    o_ref[...] = resp


# -------------------------------- wrappers -----------------------------------

def _expand_conv_weights(w, b, Wo):
    """OIHW conv weight -> per-tap block-diagonal matmul weight for feat[h, w*C+c]."""
    Cout, Cin, kh, kw = w.shape
    w_taps = jnp.transpose(w, (2, 3, 1, 0)).reshape(kh * kw, Cin, Cout)   # [tap, ci, co]
    eye = jnp.eye(Wo, dtype=w.dtype)
    wb = jnp.einsum("ab,tic->taibc", eye, w_taps).reshape(kh * kw, Wo * Cin, Wo * Cout)
    bb = jnp.tile(b, Wo).reshape(1, Wo * Cout)
    return wb, bb


def net_forward(params, z, x, out_scale=0.001):
    """Net.forward(z, x) = head(backbone(z), backbone(x)), one fused Pallas kernel."""
    N, Cin, Hz_in, Wz_in = z.shape
    _, _, Hx_in, Wx_in = x.shape
    C1, _, kh, kw = params["w1"].shape
    C2 = params["w2"].shape[0]

    Ho1z, Wo1z = Hz_in - kh + 1, Wz_in - kw + 1
    Ho2z, Wo2z = Ho1z - kh + 1, Wo1z - kw + 1
    Ho1x, Wo1x = Hx_in - kh + 1, Wx_in - kw + 1
    Ho2x, Wo2x = Ho1x - kh + 1, Wo1x - kw + 1
    Hr, Wr = Ho2x - Ho2z + 1, Wo2x - Wo2z + 1
    OT_H, OT_W = _round_up(Hr, 8), _round_up(Wr, 128)

    cfg = dict(kh=kh, kw=kw, Cin=Cin, C1=C1, C2=C2,
               Ho1z=Ho1z, Wo1z=Wo1z, Ho2z=Ho2z, Wo2z=Wo2z,
               Ho1x=Ho1x, Wo1x=Wo1x, Ho2x=Ho2x, Wo2x=Wo2x,
               Hr=Hr, Wr=Wr, OT_H=OT_H, OT_W=OT_W)

    # channel-minor 2D layout: feat2d[h, w*C + c]
    z2d = jnp.transpose(z, (0, 2, 3, 1)).reshape(N, Hz_in, Wz_in * Cin)
    x2d = jnp.transpose(x, (0, 2, 3, 1)).reshape(N, Hx_in, Wx_in * Cin)

    wb1z, bb1z = _expand_conv_weights(params["w1"], params["b1"], Wo1z)
    wb2z, bb2z = _expand_conv_weights(params["w2"], params["b2"], Wo2z)
    wb1x, bb1x = _expand_conv_weights(params["w1"], params["b1"], Wo1x)
    wb2x, bb2x = _expand_conv_weights(params["w2"], params["b2"], Wo2x)

    def const3(arr):
        return pl.BlockSpec(arr.shape, lambda n: (0, 0, 0))

    def const2(arr):
        return pl.BlockSpec(arr.shape, lambda n: (0, 0))

    out = pl.pallas_call(
        functools.partial(_siamfc_fused_kernel, cfg=cfg, out_scale=out_scale),
        out_shape=jax.ShapeDtypeStruct((N, OT_H, OT_W), jnp.float32),
        grid=(N,),
        in_specs=[
            pl.BlockSpec((None, Hz_in, Wz_in * Cin), lambda n: (n, 0, 0)),
            pl.BlockSpec((None, Hx_in, Wx_in * Cin), lambda n: (n, 0, 0)),
            const3(wb1z), const2(bb1z),
            const3(wb2z), const2(bb2z),
            const3(wb1x), const2(bb1x),
            const3(wb2x), const2(bb2x),
        ],
        out_specs=pl.BlockSpec((None, OT_H, OT_W), lambda n: (n, 0, 0)),
        scratch_shapes=[
            pltpu.VMEM((Ho1z, Wo1z * C1), jnp.float32),   # conv1(z)
            pltpu.VMEM((Ho2z, Wo2z * C2), jnp.float32),   # conv2(z) = zf
            pltpu.VMEM((Ho1x, Wo1x * C1), jnp.float32),   # conv1(x)
            pltpu.VMEM((Ho2x, Wo2x * C2), jnp.float32),   # conv2(x) = xf
        ],
        compiler_params=pltpu.CompilerParams(
            dimension_semantics=("parallel",)),
    )(z2d, x2d, wb1z, bb1z, wb2z, bb2z, wb1x, bb1x, wb2x, bb2x)

    return out[:, :Hr, :Wr].reshape(N, 1, Hr, Wr)


# ------------------------- pure-JAX reference (check) -----------------------

def _ref_conv(x, w, b, relu):
    out = jax.lax.conv_general_dilated(
        x, w, (1, 1), "VALID", dimension_numbers=("NCHW", "OIHW", "NCHW"))
    out = out + b[None, :, None, None]
    return jnp.maximum(out, 0.0) if relu else out


def _ref_forward(params, z, x, out_scale=0.001):
    def backbone(inp):
        h = _ref_conv(inp, params["w1"], params["b1"], True)
        return _ref_conv(h, params["w2"], params["b2"], False)
    zf, xf = backbone(z), backbone(x)
    outs = []
    for b in range(zf.shape[0]):
        outs.append(jax.lax.conv_general_dilated(
            xf[b:b + 1], zf[b:b + 1], (1, 1), "VALID",
            dimension_numbers=("NCHW", "OIHW", "NCHW")))
    return jnp.concatenate(outs, 0) * out_scale


# ---------------------------------- main -------------------------------------

if __name__ == "__main__":
    key = jax.random.PRNGKey(0)
    k1, k2, k3, k4, kz, kx = jax.random.split(key, 6)

    Cin, C1, C2 = 3, 8, 16
    params = {
        "w1": 0.1 * jax.random.normal(k1, (C1, Cin, 3, 3), jnp.float32),
        "b1": 0.05 * jax.random.normal(k2, (C1,), jnp.float32),
        "w2": 0.1 * jax.random.normal(k3, (C2, C1, 3, 3), jnp.float32),
        "b2": 0.05 * jax.random.normal(k4, (C2,), jnp.float32),
    }

    z = jax.random.normal(kz, (2, Cin, 12, 12), jnp.float32)   # exemplar
    x = jax.random.normal(kx, (2, Cin, 16, 16), jnp.float32)   # search

    out = jax.jit(net_forward)(params, z, x)
    out = jax.block_until_ready(out)

    ref = _ref_forward(params, z, x)
    assert out.shape == ref.shape == (2, 1, 5, 5), (out.shape, ref.shape)
    np.testing.assert_allclose(np.asarray(out), np.asarray(ref),
                               rtol=1e-3, atol=1e-3)
    print("KERNEL_OK")
</pallas_src>

<mosaic_0001>
module attributes {stable_mosaic.version = 11 : i64} {
  func.func @_siamfc_fused_kernel(%arg0: i32, %arg1: memref<1x12x36xf32, #tpu.memory_space<vmem>>, %arg2: memref<1x16x48xf32, #tpu.memory_space<vmem>>, %arg3: memref<9x30x80xf32, #tpu.memory_space<vmem>>, %arg4: memref<1x80xf32, #tpu.memory_space<vmem>>, %arg5: memref<9x64x128xf32, #tpu.memory_space<vmem>>, %arg6: memref<1x128xf32, #tpu.memory_space<vmem>>, %arg7: memref<9x42x112xf32, #tpu.memory_space<vmem>>, %arg8: memref<1x112xf32, #tpu.memory_space<vmem>>, %arg9: memref<9x96x192xf32, #tpu.memory_space<vmem>>, %arg10: memref<1x192xf32, #tpu.memory_space<vmem>>, %arg11: memref<1x8x128xf32, #tpu.memory_space<vmem>>, %arg12: memref<10x80xf32, #tpu.memory_space<vmem>>, %arg13: memref<8x128xf32, #tpu.memory_space<vmem>>, %arg14: memref<14x112xf32, #tpu.memory_space<vmem>>, %arg15: memref<12x192xf32, #tpu.memory_space<vmem>>) attributes {dimension_semantics = [#tpu.dimension_semantics<parallel>], iteration_bounds = array<i64: 2>, scalar_prefetch = 0 : i64, scratch_operands = 4 : i64, tpu.core_type = #tpu.core_type<tc>, window_params = [{transform_indices = @transform_0, window_bounds = array<i64: 1, 12, 36>}, {transform_indices = @transform_1, window_bounds = array<i64: 1, 16, 48>}, {pipeline_mode = #tpu.pipeline_mode<synchronous>, transform_indices = @transform_2, window_bounds = array<i64: 9, 30, 80>}, {pipeline_mode = #tpu.pipeline_mode<synchronous>, transform_indices = @transform_3, window_bounds = array<i64: 1, 80>}, {pipeline_mode = #tpu.pipeline_mode<synchronous>, transform_indices = @transform_4, window_bounds = array<i64: 9, 64, 128>}, {pipeline_mode = #tpu.pipeline_mode<synchronous>, transform_indices = @transform_5, window_bounds = array<i64: 1, 128>}, {pipeline_mode = #tpu.pipeline_mode<synchronous>, transform_indices = @transform_6, window_bounds = array<i64: 9, 42, 112>}, {pipeline_mode = #tpu.pipeline_mode<synchronous>, transform_indices = @transform_7, window_bounds = array<i64: 1, 112>}, {pipeline_mode = #tpu.pipeline_mode<synchronous>, transform_indices = @transform_8, window_bounds = array<i64: 9, 96, 192>}, {pipeline_mode = #tpu.pipeline_mode<synchronous>, transform_indices = @transform_9, window_bounds = array<i64: 1, 192>}, {transform_indices = @transform_10, window_bounds = array<i64: 1, 8, 128>}]} {
    %cst = arith.constant 0.000000e+00 : f32
    %0 = vector.broadcast %cst : f32 to vector<10x80xf32>
    %c0 = arith.constant 0 : index
    %c0_0 = arith.constant 0 : index
    %c0_1 = arith.constant 0 : index
    %1 = vector.load %arg1[%c0, %c0_0, %c0_1] : memref<1x12x36xf32, #tpu.memory_space<vmem>>, vector<1x10x30xf32>
    %2 = vector.shape_cast %1 : vector<1x10x30xf32> to vector<10x30xf32>
    %c0_2 = arith.constant 0 : index
    %c0_3 = arith.constant 0 : index
    %c0_4 = arith.constant 0 : index
    %3 = vector.load %arg3[%c0_2, %c0_3, %c0_4] : memref<9x30x80xf32, #tpu.memory_space<vmem>>, vector<1x30x80xf32>
    %4 = vector.shape_cast %3 : vector<1x30x80xf32> to vector<30x80xf32>
    %cst_5 = arith.constant dense<0.000000e+00> : vector<10x80xf32>
    %5 = tpu.matmul %2, %4, %cst_5 {dimension_numbers = #tpu.dot_dimension_numbers<[1], [0], [0], [1], [0, 0, 1, 1], [], []>} : vector<10x30xf32>, vector<30x80xf32>, vector<10x80xf32> -> vector<10x80xf32>
    %6 = arith.addf %0, %5 : vector<10x80xf32>
    %c0_6 = arith.constant 0 : index
    %c0_7 = arith.constant 0 : index
    %c3 = arith.constant 3 : index
    %7 = vector.load %arg1[%c0_6, %c0_7, %c3] : memref<1x12x36xf32, #tpu.memory_space<vmem>>, vector<1x10x30xf32>
    %8 = vector.shape_cast %7 : vector<1x10x30xf32> to vector<10x30xf32>
    %c1 = arith.constant 1 : index
    %c0_8 = arith.constant 0 : index
    %c0_9 = arith.constant 0 : index
    %9 = vector.load %arg3[%c1, %c0_8, %c0_9] : memref<9x30x80xf32, #tpu.memory_space<vmem>>, vector<1x30x80xf32>
    %10 = vector.shape_cast %9 : vector<1x30x80xf32> to vector<30x80xf32>
    %cst_10 = arith.constant dense<0.000000e+00> : vector<10x80xf32>
    %11 = tpu.matmul %8, %10, %cst_10 {dimension_numbers = #tpu.dot_dimension_numbers<[1], [0], [0], [1], [0, 0, 1, 1], [], []>} : vector<10x30xf32>, vector<30x80xf32>, vector<10x80xf32> -> vector<10x80xf32>
    %12 = arith.addf %6, %11 : vector<10x80xf32>
    %c0_11 = arith.constant 0 : index
    %c0_12 = arith.constant 0 : index
    %c6 = arith.constant 6 : index
    %13 = vector.load %arg1[%c0_11, %c0_12, %c6] : memref<1x12x36xf32, #tpu.memory_space<vmem>>, vector<1x10x30xf32>
    %14 = vector.shape_cast %13 : vector<1x10x30xf32> to vector<10x30xf32>
    %c2 = arith.constant 2 : index
    %c0_13 = arith.constant 0 : index
    %c0_14 = arith.constant 0 : index
    %15 = vector.load %arg3[%c2, %c0_13, %c0_14] : memref<9x30x80xf32, #tpu.memory_space<vmem>>, vector<1x30x80xf32>
    %16 = vector.shape_cast %15 : vector<1x30x80xf32> to vector<30x80xf32>
    %cst_15 = arith.constant dense<0.000000e+00> : vector<10x80xf32>
    %17 = tpu.matmul %14, %16, %cst_15 {dimension_numbers = #tpu.dot_dimension_numbers<[1], [0], [0], [1], [0, 0, 1, 1], [], []>} : vector<10x30xf32>, vector<30x80xf32>, vector<10x80xf32> -> vector<10x80xf32>
    %18 = arith.addf %12, %17 : vector<10x80xf32>
    %c0_16 = arith.constant 0 : index
    %c1_17 = arith.constant 1 : index
    %c0_18 = arith.constant 0 : index
    %19 = vector.load %arg1[%c0_16, %c1_17, %c0_18] : memref<1x12x36xf32, #tpu.memory_space<vmem>>, vector<1x10x30xf32>
    %20 = vector.shape_cast %19 : vector<1x10x30xf32> to vector<10x30xf32>
    %c3_19 = arith.constant 3 : index
    %c0_20 = arith.constant 0 : index
    %c0_21 = arith.constant 0 : index
    %21 = vector.load %arg3[%c3_19, %c0_20, %c0_21] : memref<9x30x80xf32, #tpu.memory_space<vmem>>, vector<1x30x80xf32>
    %22 = vector.shape_cast %21 : vector<1x30x80xf32> to vector<30x80xf32>
    %cst_22 = arith.constant dense<0.000000e+00> : vector<10x80xf32>
    %23 = tpu.matmul %20, %22, %cst_22 {dimension_numbers = #tpu.dot_dimension_numbers<[1], [0], [0], [1], [0, 0, 1, 1], [], []>} : vector<10x30xf32>, vector<30x80xf32>, vector<10x80xf32> -> vector<10x80xf32>
    %24 = arith.addf %18, %23 : vector<10x80xf32>
    %c0_23 = arith.constant 0 : index
    %c1_24 = arith.constant 1 : index
    %c3_25 = arith.constant 3 : index
    %25 = vector.load %arg1[%c0_23, %c1_24, %c3_25] : memref<1x12x36xf32, #tpu.memory_space<vmem>>, vector<1x10x30xf32>
    %26 = vector.shape_cast %25 : vector<1x10x30xf32> to vector<10x30xf32>
    %c4 = arith.constant 4 : index
    %c0_26 = arith.constant 0 : index
    %c0_27 = arith.constant 0 : index
    %27 = vector.load %arg3[%c4, %c0_26, %c0_27] : memref<9x30x80xf32, #tpu.memory_space<vmem>>, vector<1x30x80xf32>
    %28 = vector.shape_cast %27 : vector<1x30x80xf32> to vector<30x80xf32>
    %cst_28 = arith.constant dense<0.000000e+00> : vector<10x80xf32>
    %29 = tpu.matmul %26, %28, %cst_28 {dimension_numbers = #tpu.dot_dimension_numbers<[1], [0], [0], [1], [0, 0, 1, 1], [], []>} : vector<10x30xf32>, vector<30x80xf32>, vector<10x80xf32> -> vector<10x80xf32>
    %30 = arith.addf %24, %29 : vector<10x80xf32>
    %c0_29 = arith.constant 0 : index
    %c1_30 = arith.constant 1 : index
    %c6_31 = arith.constant 6 : index
    %31 = vector.load %arg1[%c0_29, %c1_30, %c6_31] : memref<1x12x36xf32, #tpu.memory_space<vmem>>, vector<1x10x30xf32>
    %32 = vector.shape_cast %31 : vector<1x10x30xf32> to vector<10x30xf32>
    %c5 = arith.constant 5 : index
    %c0_32 = arith.constant 0 : index
    %c0_33 = arith.constant 0 : index
    %33 = vector.load %arg3[%c5, %c0_32, %c0_33] : memref<9x30x80xf32, #tpu.memory_space<vmem>>, vector<1x30x80xf32>
    %34 = vector.shape_cast %33 : vector<1x30x80xf32> to vector<30x80xf32>
    %cst_34 = arith.constant dense<0.000000e+00> : vector<10x80xf32>
    %35 = tpu.matmul %32, %34, %cst_34 {dimension_numbers = #tpu.dot_dimension_numbers<[1], [0], [0], [1], [0, 0, 1, 1], [], []>} : vector<10x30xf32>, vector<30x80xf32>, vector<10x80xf32> -> vector<10x80xf32>
    %36 = arith.addf %30, %35 : vector<10x80xf32>
    %c0_35 = arith.constant 0 : index
    %c2_36 = arith.constant 2 : index
    %c0_37 = arith.constant 0 : index
    %37 = vector.load %arg1[%c0_35, %c2_36, %c0_37] : memref<1x12x36xf32, #tpu.memory_space<vmem>>, vector<1x10x30xf32>
    %38 = vector.shape_cast %37 : vector<1x10x30xf32> to vector<10x30xf32>
    %c6_38 = arith.constant 6 : index
    %c0_39 = arith.constant 0 : index
    %c0_40 = arith.constant 0 : index
    %39 = vector.load %arg3[%c6_38, %c0_39, %c0_40] : memref<9x30x80xf32, #tpu.memory_space<vmem>>, vector<1x30x80xf32>
    %40 = vector.shape_cast %39 : vector<1x30x80xf32> to vector<30x80xf32>
    %cst_41 = arith.constant dense<0.000000e+00> : vector<10x80xf32>
    %41 = tpu.matmul %38, %40, %cst_41 {dimension_numbers = #tpu.dot_dimension_numbers<[1], [0], [0], [1], [0, 0, 1, 1], [], []>} : vector<10x30xf32>, vector<30x80xf32>, vector<10x80xf32> -> vector<10x80xf32>
    %42 = arith.addf %36, %41 : vector<10x80xf32>
    %c0_42 = arith.constant 0 : index
    %c2_43 = arith.constant 2 : index
    %c3_44 = arith.constant 3 : index
    %43 = vector.load %arg1[%c0_42, %c2_43, %c3_44] : memref<1x12x36xf32, #tpu.memory_space<vmem>>, vector<1x10x30xf32>
    %44 = vector.shape_cast %43 : vector<1x10x30xf32> to vector<10x30xf32>
    %c7 = arith.constant 7 : index
    %c0_45 = arith.constant 0 : index
    %c0_46 = arith.constant 0 : index
    %45 = vector.load %arg3[%c7, %c0_45, %c0_46] : memref<9x30x80xf32, #tpu.memory_space<vmem>>, vector<1x30x80xf32>
    %46 = vector.shape_cast %45 : vector<1x30x80xf32> to vector<30x80xf32>
    %cst_47 = arith.constant dense<0.000000e+00> : vector<10x80xf32>
    %47 = tpu.matmul %44, %46, %cst_47 {dimension_numbers = #tpu.dot_dimension_numbers<[1], [0], [0], [1], [0, 0, 1, 1], [], []>} : vector<10x30xf32>, vector<30x80xf32>, vector<10x80xf32> -> vector<10x80xf32>
    %48 = arith.addf %42, %47 : vector<10x80xf32>
    %c0_48 = arith.constant 0 : index
    %c2_49 = arith.constant 2 : index
    %c6_50 = arith.constant 6 : index
    %49 = vector.load %arg1[%c0_48, %c2_49, %c6_50] : memref<1x12x36xf32, #tpu.memory_space<vmem>>, vector<1x10x30xf32>
    %50 = vector.shape_cast %49 : vector<1x10x30xf32> to vector<10x30xf32>
    %c8 = arith.constant 8 : index
    %c0_51 = arith.constant 0 : index
    %c0_52 = arith.constant 0 : index
    %51 = vector.load %arg3[%c8, %c0_51, %c0_52] : memref<9x30x80xf32, #tpu.memory_space<vmem>>, vector<1x30x80xf32>
    %52 = vector.shape_cast %51 : vector<1x30x80xf32> to vector<30x80xf32>
    %cst_53 = arith.constant dense<0.000000e+00> : vector<10x80xf32>
    %53 = tpu.matmul %50, %52, %cst_53 {dimension_numbers = #tpu.dot_dimension_numbers<[1], [0], [0], [1], [0, 0, 1, 1], [], []>} : vector<10x30xf32>, vector<30x80xf32>, vector<10x80xf32> -> vector<10x80xf32>
    %54 = arith.addf %48, %53 : vector<10x80xf32>
    %c0_54 = arith.constant 0 : index
    %c0_55 = arith.constant 0 : index
    %55 = vector.load %arg4[%c0_54, %c0_55] : memref<1x80xf32, #tpu.memory_space<vmem>>, vector<1x80xf32>
    %56 = vector.broadcast %55 : vector<1x80xf32> to vector<10x80xf32>
    %57 = arith.addf %54, %56 : vector<10x80xf32>
    %cst_56 = arith.constant 0.000000e+00 : f32
    %58 = vector.broadcast %cst_56 : f32 to vector<10x80xf32>
    %59 = arith.maximumf %57, %58 : vector<10x80xf32>
    %c0_57 = arith.constant 0 : index
    %c0_58 = arith.constant 0 : index
    %60 = vector.load %arg12[%c0_57, %c0_58] : memref<10x80xf32, #tpu.memory_space<vmem>>, vector<10x80xf32>
    tpu.vector_store %arg12[%c0_57, %c0_58], %59 {strides = array<i32>} : memref<10x80xf32, #tpu.memory_space<vmem>>, vector<10x80xf32>,
    %cst_59 = arith.constant 0.000000e+00 : f32
    %61 = vector.broadcast %cst_59 : f32 to vector<8x128xf32>
    %c0_60 = arith.constant 0 : index
    %c0_61 = arith.constant 0 : index
    %62 = vector.load %arg12[%c0_60, %c0_61] : memref<10x80xf32, #tpu.memory_space<vmem>>, vector<8x64xf32>
    %c0_62 = arith.constant 0 : index
    %c0_63 = arith.constant 0 : index
    %c0_64 = arith.constant 0 : index
    %63 = vector.load %arg5[%c0_62, %c0_63, %c0_64] : memref<9x64x128xf32, #tpu.memory_space<vmem>>, vector<1x64x128xf32>
    %64 = vector.shape_cast %63 : vector<1x64x128xf32> to vector<64x128xf32>
    %cst_65 = arith.constant dense<0.000000e+00> : vector<8x128xf32>
    %65 = tpu.matmul %62, %64, %cst_65 {dimension_numbers = #tpu.dot_dimension_numbers<[1], [0], [0], [1], [0, 0, 1, 1], [], []>} : vector<8x64xf32>, vector<64x128xf32>, vector<8x128xf32> -> vector<8x128xf32>
    %66 = arith.addf %61, %65 : vector<8x128xf32>
    %c0_66 = arith.constant 0 : index
    %c8_67 = arith.constant 8 : index
    %67 = vector.load %arg12[%c0_66, %c8_67] : memref<10x80xf32, #tpu.memory_space<vmem>>, vector<8x64xf32>
    %c1_68 = arith.constant 1 : index
    %c0_69 = arith.constant 0 : index
    %c0_70 = arith.constant 0 : index
    %68 = vector.load %arg5[%c1_68, %c0_69, %c0_70] : memref<9x64x128xf32, #tpu.memory_space<vmem>>, vector<1x64x128xf32>
    %69 = vector.shape_cast %68 : vector<1x64x128xf32> to vector<64x128xf32>
    %cst_71 = arith.constant dense<0.000000e+00> : vector<8x128xf32>
    %70 = tpu.matmul %67, %69, %cst_71 {dimension_numbers = #tpu.dot_dimension_numbers<[1], [0], [0], [1], [0, 0, 1, 1], [], []>} : vector<8x64xf32>, vector<64x128xf32>, vector<8x128xf32> -> vector<8x128xf32>
    %71 = arith.addf %66, %70 : vector<8x128xf32>
    %c0_72 = arith.constant 0 : index
    %c16 = arith.constant 16 : index
    %72 = vector.load %arg12[%c0_72, %c16] : memref<10x80xf32, #tpu.memory_space<vmem>>, vector<8x64xf32>
    %c2_73 = arith.constant 2 : index
    %c0_74 = arith.constant 0 : index
    %c0_75 = arith.constant 0 : index
    %73 = vector.load %arg5[%c2_73, %c0_74, %c0_75] : memref<9x64x128xf32, #tpu.memory_space<vmem>>, vector<1x64x128xf32>
    %74 = vector.shape_cast %73 : vector<1x64x128xf32> to vector<64x128xf32>
    %cst_76 = arith.constant dense<0.000000e+00> : vector<8x128xf32>
    %75 = tpu.matmul %72, %74, %cst_76 {dimension_numbers = #tpu.dot_dimension_numbers<[1], [0], [0], [1], [0, 0, 1, 1], [], []>} : vector<8x64xf32>, vector<64x128xf32>, vector<8x128xf32> -> vector<8x128xf32>
    %76 = arith.addf %71, %75 : vector<8x128xf32>
    %c1_77 = arith.constant 1 : index
    %c0_78 = arith.constant 0 : index
    %77 = vector.load %arg12[%c1_77, %c0_78] : memref<10x80xf32, #tpu.memory_space<vmem>>, vector<8x64xf32>
    %c3_79 = arith.constant 3 : index
    %c0_80 = arith.constant 0 : index
    %c0_81 = arith.constant 0 : index
    %78 = vector.load %arg5[%c3_79, %c0_80, %c0_81] : memref<9x64x128xf32, #tpu.memory_space<vmem>>, vector<1x64x128xf32>
    %79 = vector.shape_cast %78 : vector<1x64x128xf32> to vector<64x128xf32>
    %cst_82 = arith.constant dense<0.000000e+00> : vector<8x128xf32>
    %80 = tpu.matmul %77, %79, %cst_82 {dimension_numbers = #tpu.dot_dimension_numbers<[1], [0], [0], [1], [0, 0, 1, 1], [], []>} : vector<8x64xf32>, vector<64x128xf32>, vector<8x128xf32> -> vector<8x128xf32>
    %81 = arith.addf %76, %80 : vector<8x128xf32>
    %c1_83 = arith.constant 1 : index
    %c8_84 = arith.constant 8 : index
    %82 = vector.load %arg12[%c1_83, %c8_84] : memref<10x80xf32, #tpu.memory_space<vmem>>, vector<8x64xf32>
    %c4_85 = arith.constant 4 : index
    %c0_86 = arith.constant 0 : index
    %c0_87 = arith.constant 0 : index
    %83 = vector.load %arg5[%c4_85, %c0_86, %c0_87] : memref<9x64x128xf32, #tpu.memory_space<vmem>>, vector<1x64x128xf32>
    %84 = vector.shape_cast %83 : vector<1x64x128xf32> to vector<64x128xf32>
    %cst_88 = arith.constant dense<0.000000e+00> : vector<8x128xf32>
    %85 = tpu.matmul %82, %84, %cst_88 {dimension_numbers = #tpu.dot_dimension_numbers<[1], [0], [0], [1], [0, 0, 1, 1], [], []>} : vector<8x64xf32>, vector<64x128xf32>, vector<8x128xf32> -> vector<8x128xf32>
    %86 = arith.addf %81, %85 : vector<8x128xf32>
    %c1_89 = arith.constant 1 : index
    %c16_90 = arith.constant 16 : index
    %87 = vector.load %arg12[%c1_89, %c16_90] : memref<10x80xf32, #tpu.memory_space<vmem>>, vector<8x64xf32>
    %c5_91 = arith.constant 5 : index
    %c0_92 = arith.constant 0 : index
    %c0_93 = arith.constant 0 : index
    %88 = vector.load %arg5[%c5_91, %c0_92, %c0_93] : memref<9x64x128xf32, #tpu.memory_space<vmem>>, vector<1x64x128xf32>
    %89 = vector.shape_cast %88 : vector<1x64x128xf32> to vector<64x128xf32>
    %cst_94 = arith.constant dense<0.000000e+00> : vector<8x128xf32>
    %90 = tpu.matmul %87, %89, %cst_94 {dimension_numbers = #tpu.dot_dimension_numbers<[1], [0], [0], [1], [0, 0, 1, 1], [], []>} : vector<8x64xf32>, vector<64x128xf32>, vector<8x128xf32> -> vector<8x128xf32>
    %91 = arith.addf %86, %90 : vector<8x128xf32>
    %c2_95 = arith.constant 2 : index
    %c0_96 = arith.constant 0 : index
    %92 = vector.load %arg12[%c2_95, %c0_96] : memref<10x80xf32, #tpu.memory_space<vmem>>, vector<8x64xf32>
    %c6_97 = arith.constant 6 : index
    %c0_98 = arith.constant 0 : index
    %c0_99 = arith.constant 0 : index
    %93 = vector.load %arg5[%c6_97, %c0_98, %c0_99] : memref<9x64x128xf32, #tpu.memory_space<vmem>>, vector<1x64x128xf32>
    %94 = vector.shape_cast %93 : vector<1x64x128xf32> to vector<64x128xf32>
    %cst_100 = arith.constant dense<0.000000e+00> : vector<8x128xf32>
    %95 = tpu.matmul %92, %94, %cst_100 {dimension_numbers = #tpu.dot_dimension_numbers<[1], [0], [0], [1], [0, 0, 1, 1], [], []>} : vector<8x64xf32>, vector<64x128xf32>, vector<8x128xf32> -> vector<8x128xf32>
    %96 = arith.addf %91, %95 : vector<8x128xf32>
    %c2_101 = arith.constant 2 : index
    %c8_102 = arith.constant 8 : index
    %97 = vector.load %arg12[%c2_101, %c8_102] : memref<10x80xf32, #tpu.memory_space<vmem>>, vector<8x64xf32>
    %c7_103 = arith.constant 7 : index
    %c0_104 = arith.constant 0 : index
    %c0_105 = arith.constant 0 : index
    %98 = vector.load %arg5[%c7_103, %c0_104, %c0_105] : memref<9x64x128xf32, #tpu.memory_space<vmem>>, vector<1x64x128xf32>
    %99 = vector.shape_cast %98 : vector<1x64x128xf32> to vector<64x128xf32>
    %cst_106 = arith.constant dense<0.000000e+00> : vector<8x128xf32>
    %100 = tpu.matmul %97, %99, %cst_106 {dimension_numbers = #tpu.dot_dimension_numbers<[1], [0], [0], [1], [0, 0, 1, 1], [], []>} : vector<8x64xf32>, vector<64x128xf32>, vector<8x128xf32> -> vector<8x128xf32>
    %101 = arith.addf %96, %100 : vector<8x128xf32>
    %c2_107 = arith.constant 2 : index
    %c16_108 = arith.constant 16 : index
    %102 = vector.load %arg12[%c2_107, %c16_108] : memref<10x80xf32, #tpu.memory_space<vmem>>, vector<8x64xf32>
    %c8_109 = arith.constant 8 : index
    %c0_110 = arith.constant 0 : index
    %c0_111 = arith.constant 0 : index
    %103 = vector.load %arg5[%c8_109, %c0_110, %c0_111] : memref<9x64x128xf32, #tpu.memory_space<vmem>>, vector<1x64x128xf32>
    %104 = vector.shape_cast %103 : vector<1x64x128xf32> to vector<64x128xf32>
    %cst_112 = arith.constant dense<0.000000e+00> : vector<8x128xf32>
    %105 = tpu.matmul %102, %104, %cst_112 {dimension_numbers = #tpu.dot_dimension_numbers<[1], [0], [0], [1], [0, 0, 1, 1], [], []>} : vector<8x64xf32>, vector<64x128xf32>, vector<8x128xf32> -> vector<8x128xf32>
    %106 = arith.addf %101, %105 : vector<8x128xf32>
    %c0_113 = arith.constant 0 : index
    %c0_114 = arith.constant 0 : index
    %107 = vector.load %arg6[%c0_113, %c0_114] : memref<1x128xf32, #tpu.memory_space<vmem>>, vector<1x128xf32>
    %108 = vector.broadcast %107 : vector<1x128xf32> to vector<8x128xf32>
    %109 = arith.addf %106, %108 : vector<8x128xf32>
    %c0_115 = arith.constant 0 : index
    %c0_116 = arith.constant 0 : index
    %110 = vector.load %arg13[%c0_115, %c0_116] : memref<8x128xf32, #tpu.memory_space<vmem>>, vector<8x128xf32>
    tpu.vector_store %arg13[%c0_115, %c0_116], %109 {strides = array<i32>} : memref<8x128xf32, #tpu.memory_space<vmem>>, vector<8x128xf32>,
    %cst_117 = arith.constant 0.000000e+00 : f32
    %111 = vector.broadcast %cst_117 : f32 to vector<14x112xf32>
    %c0_118 = arith.constant 0 : index
    %c0_119 = arith.constant 0 : index
    %c0_120 = arith.constant 0 : index
    %112 = vector.load %arg2[%c0_118, %c0_119, %c0_120] : memref<1x16x48xf32, #tpu.memory_space<vmem>>, vector<1x14x42xf32>
    %113 = vector.shape_cast %112 : vector<1x14x42xf32> to vector<14x42xf32>
    %c0_121 = arith.constant 0 : index
    %c0_122 = arith.constant 0 : index
    %c0_123 = arith.constant 0 : index
    %114 = vector.load %arg7[%c0_121, %c0_122, %c0_123] : memref<9x42x112xf32, #tpu.memory_space<vmem>>, vector<1x42x112xf32>
    %115 = vector.shape_cast %114 : vector<1x42x112xf32> to vector<42x112xf32>
    %cst_124 = arith.constant dense<0.000000e+00> : vector<14x112xf32>
    %116 = tpu.matmul %113, %115, %cst_124 {dimension_numbers = #tpu.dot_dimension_numbers<[1], [0], [0], [1], [0, 0, 1, 1], [], []>} : vector<14x42xf32>, vector<42x112xf32>, vector<14x112xf32> -> vector<14x112xf32>
    %117 = arith.addf %111, %116 : vector<14x112xf32>
    %c0_125 = arith.constant 0 : index
    %c0_126 = arith.constant 0 : index
    %c3_127 = arith.constant 3 : index
    %118 = vector.load %arg2[%c0_125, %c0_126, %c3_127] : memref<1x16x48xf32, #tpu.memory_space<vmem>>, vector<1x14x42xf32>
    %119 = vector.shape_cast %118 : vector<1x14x42xf32> to vector<14x42xf32>
    %c1_128 = arith.constant 1 : index
    %c0_129 = arith.constant 0 : index
    %c0_130 = arith.constant 0 : index
    %120 = vector.load %arg7[%c1_128, %c0_129, %c0_130] : memref<9x42x112xf32, #tpu.memory_space<vmem>>, vector<1x42x112xf32>
    %121 = vector.shape_cast %120 : vector<1x42x112xf32> to vector<42x112xf32>
    %cst_131 = arith.constant dense<0.000000e+00> : vector<14x112xf32>
    %122 = tpu.matmul %119, %121, %cst_131 {dimension_numbers = #tpu.dot_dimension_numbers<[1], [0], [0], [1], [0, 0, 1, 1], [], []>} : vector<14x42xf32>, vector<42x112xf32>, vector<14x112xf32> -> vector<14x112xf32>
    %123 = arith.addf %117, %122 : vector<14x112xf32>
    %c0_132 = arith.constant 0 : index
    %c0_133 = arith.constant 0 : index
    %c6_134 = arith.constant 6 : index
    %124 = vector.load %arg2[%c0_132, %c0_133, %c6_134] : memref<1x16x48xf32, #tpu.memory_space<vmem>>, vector<1x14x42xf32>
    %125 = vector.shape_cast %124 : vector<1x14x42xf32> to vector<14x42xf32>
    %c2_135 = arith.constant 2 : index
    %c0_136 = arith.constant 0 : index
    %c0_137 = arith.constant 0 : index
    %126 = vector.load %arg7[%c2_135, %c0_136, %c0_137] : memref<9x42x112xf32, #tpu.memory_space<vmem>>, vector<1x42x112xf32>
    %127 = vector.shape_cast %126 : vector<1x42x112xf32> to vector<42x112xf32>
    %cst_138 = arith.constant dense<0.000000e+00> : vector<14x112xf32>
    %128 = tpu.matmul %125, %127, %cst_138 {dimension_numbers = #tpu.dot_dimension_numbers<[1], [0], [0], [1], [0, 0, 1, 1], [], []>} : vector<14x42xf32>, vector<42x112xf32>, vector<14x112xf32> -> vector<14x112xf32>
    %129 = arith.addf %123, %128 : vector<14x112xf32>
    %c0_139 = arith.constant 0 : index
    %c1_140 = arith.constant 1 : index
    %c0_141 = arith.constant 0 : index
    %130 = vector.load %arg2[%c0_139, %c1_140, %c0_141] : memref<1x16x48xf32, #tpu.memory_space<vmem>>, vector<1x14x42xf32>
    %131 = vector.shape_cast %130 : vector<1x14x42xf32> to vector<14x42xf32>
    %c3_142 = arith.constant 3 : index
    %c0_143 = arith.constant 0 : index
    %c0_144 = arith.constant 0 : index
    %132 = vector.load %arg7[%c3_142, %c0_143, %c0_144] : memref<9x42x112xf32, #tpu.memory_space<vmem>>, vector<1x42x112xf32>
    %133 = vector.shape_cast %132 : vector<1x42x112xf32> to vector<42x112xf32>
    %cst_145 = arith.constant dense<0.000000e+00> : vector<14x112xf32>
    %134 = tpu.matmul %131, %133, %cst_145 {dimension_numbers = #tpu.dot_dimension_numbers<[1], [0], [0], [1], [0, 0, 1, 1], [], []>} : vector<14x42xf32>, vector<42x112xf32>, vector<14x112xf32> -> vector<14x112xf32>
    %135 = arith.addf %129, %134 : vector<14x112xf32>
    %c0_146 = arith.constant 0 : index
    %c1_147 = arith.constant 1 : index
    %c3_148 = arith.constant 3 : index
    %136 = vector.load %arg2[%c0_146, %c1_147, %c3_148] : memref<1x16x48xf32, #tpu.memory_space<vmem>>, vector<1x14x42xf32>
    %137 = vector.shape_cast %136 : vector<1x14x42xf32> to vector<14x42xf32>
    %c4_149 = arith.constant 4 : index
    %c0_150 = arith.constant 0 : index
    %c0_151 = arith.constant 0 : index
    %138 = vector.load %arg7[%c4_149, %c0_150, %c0_151] : memref<9x42x112xf32, #tpu.memory_space<vmem>>, vector<1x42x112xf32>
    %139 = vector.shape_cast %138 : vector<1x42x112xf32> to vector<42x112xf32>
    %cst_152 = arith.constant dense<0.000000e+00> : vector<14x112xf32>
    %140 = tpu.matmul %137, %139, %cst_152 {dimension_numbers = #tpu.dot_dimension_numbers<[1], [0], [0], [1], [0, 0, 1, 1], [], []>} : vector<14x42xf32>, vector<42x112xf32>, vector<14x112xf32> -> vector<14x112xf32>
    %141 = arith.addf %135, %140 : vector<14x112xf32>
    %c0_153 = arith.constant 0 : index
    %c1_154 = arith.constant 1 : index
    %c6_155 = arith.constant 6 : index
    %142 = vector.load %arg2[%c0_153, %c1_154, %c6_155] : memref<1x16x48xf32, #tpu.memory_space<vmem>>, vector<1x14x42xf32>
    %143 = vector.shape_cast %142 : vector<1x14x42xf32> to vector<14x42xf32>
    %c5_156 = arith.constant 5 : index
    %c0_157 = arith.constant 0 : index
    %c0_158 = arith.constant 0 : index
    %144 = vector.load %arg7[%c5_156, %c0_157, %c0_158] : memref<9x42x112xf32, #tpu.memory_space<vmem>>, vector<1x42x112xf32>
    %145 = vector.shape_cast %144 : vector<1x42x112xf32> to vector<42x112xf32>
    %cst_159 = arith.constant dense<0.000000e+00> : vector<14x112xf32>
    %146 = tpu.matmul %143, %145, %cst_159 {dimension_numbers = #tpu.dot_dimension_numbers<[1], [0], [0], [1], [0, 0, 1, 1], [], []>} : vector<14x42xf32>, vector<42x112xf32>, vector<14x112xf32> -> vector<14x112xf32>
    %147 = arith.addf %141, %146 : vector<14x112xf32>
    %c0_160 = arith.constant 0 : index
    %c2_161 = arith.constant 2 : index
    %c0_162 = arith.constant 0 : index
    %148 = vector.load %arg2[%c0_160, %c2_161, %c0_162] : memref<1x16x48xf32, #tpu.memory_space<vmem>>, vector<1x14x42xf32>
    %149 = vector.shape_cast %148 : vector<1x14x42xf32> to vector<14x42xf32>
    %c6_163 = arith.constant 6 : index
    %c0_164 = arith.constant 0 : index
    %c0_165 = arith.constant 0 : index
    %150 = vector.load %arg7[%c6_163, %c0_164, %c0_165] : memref<9x42x112xf32, #tpu.memory_space<vmem>>, vector<1x42x112xf32>
    %151 = vector.shape_cast %150 : vector<1x42x112xf32> to vector<42x112xf32>
    %cst_166 = arith.constant dense<0.000000e+00> : vector<14x112xf32>
    %152 = tpu.matmul %149, %151, %cst_166 {dimension_numbers = #tpu.dot_dimension_numbers<[1], [0], [0], [1], [0, 0, 1, 1], [], []>} : vector<14x42xf32>, vector<42x112xf32>, vector<14x112xf32> -> vector<14x112xf32>
    %153 = arith.addf %147, %152 : vector<14x112xf32>
    %c0_167 = arith.constant 0 : index
    %c2_168 = arith.constant 2 : index
    %c3_169 = arith.constant 3 : index
    %154 = vector.load %arg2[%c0_167, %c2_168, %c3_169] : memref<1x16x48xf32, #tpu.memory_space<vmem>>, vector<1x14x42xf32>
    %155 = vector.shape_cast %154 : vector<1x14x42xf32> to vector<14x42xf32>
    %c7_170 = arith.constant 7 : index
    %c0_171 = arith.constant 0 : index
    %c0_172 = arith.constant 0 : index
    %156 = vector.load %arg7[%c7_170, %c0_171, %c0_172] : memref<9x42x112xf32, #tpu.memory_space<vmem>>, vector<1x42x112xf32>
    %157 = vector.shape_cast %156 : vector<1x42x112xf32> to vector<42x112xf32>
    %cst_173 = arith.constant dense<0.000000e+00> : vector<14x112xf32>
    %158 = tpu.matmul %155, %157, %cst_173 {dimension_numbers = #tpu.dot_dimension_numbers<[1], [0], [0], [1], [0, 0, 1, 1], [], []>} : vector<14x42xf32>, vector<42x112xf32>, vector<14x112xf32> -> vector<14x112xf32>
    %159 = arith.addf %153, %158 : vector<14x112xf32>
    %c0_174 = arith.constant 0 : index
    %c2_175 = arith.constant 2 : index
    %c6_176 = arith.constant 6 : index
    %160 = vector.load %arg2[%c0_174, %c2_175, %c6_176] : memref<1x16x48xf32, #tpu.memory_space<vmem>>, vector<1x14x42xf32>
    %161 = vector.shape_cast %160 : vector<1x14x42xf32> to vector<14x42xf32>
    %c8_177 = arith.constant 8 : index
    %c0_178 = arith.constant 0 : index
    %c0_179 = arith.constant 0 : index
    %162 = vector.load %arg7[%c8_177, %c0_178, %c0_179] : memref<9x42x112xf32, #tpu.memory_space<vmem>>, vector<1x42x112xf32>
    %163 = vector.shape_cast %162 : vector<1x42x112xf32> to vector<42x112xf32>
    %cst_180 = arith.constant dense<0.000000e+00> : vector<14x112xf32>
    %164 = tpu.matmul %161, %163, %cst_180 {dimension_numbers = #tpu.dot_dimension_numbers<[1], [0], [0], [1], [0, 0, 1, 1], [], []>} : vector<14x42xf32>, vector<42x112xf32>, vector<14x112xf32> -> vector<14x112xf32>
    %165 = arith.addf %159, %164 : vector<14x112xf32>
    %c0_181 = arith.constant 0 : index
    %c0_182 = arith.constant 0 : index
    %166 = vector.load %arg8[%c0_181, %c0_182] : memref<1x112xf32, #tpu.memory_space<vmem>>, vector<1x112xf32>
    %167 = vector.broadcast %166 : vector<1x112xf32> to vector<14x112xf32>
    %168 = arith.addf %165, %167 : vector<14x112xf32>
    %cst_183 = arith.constant 0.000000e+00 : f32
    %169 = vector.broadcast %cst_183 : f32 to vector<14x112xf32>
    %170 = arith.maximumf %168, %169 : vector<14x112xf32>
    %c0_184 = arith.constant 0 : index
    %c0_185 = arith.constant 0 : index
    %171 = vector.load %arg14[%c0_184, %c0_185] : memref<14x112xf32, #tpu.memory_space<vmem>>, vector<14x112xf32>
    tpu.vector_store %arg14[%c0_184, %c0_185], %170 {strides = array<i32>} : memref<14x112xf32, #tpu.memory_space<vmem>>, vector<14x112xf32>,
    %cst_186 = arith.constant 0.000000e+00 : f32
    %172 = vector.broadcast %cst_186 : f32 to vector<12x192xf32>
    %c0_187 = arith.constant 0 : index
    %c0_188 = arith.constant 0 : index
    %173 = vector.load %arg14[%c0_187, %c0_188] : memref<14x112xf32, #tpu.memory_space<vmem>>, vector<12x96xf32>
    %c0_189 = arith.constant 0 : index
    %c0_190 = arith.constant 0 : index
    %c0_191 = arith.constant 0 : index
    %174 = vector.load %arg9[%c0_189, %c0_190, %c0_191] : memref<9x96x192xf32, #tpu.memory_space<vmem>>, vector<1x96x192xf32>
    %175 = vector.shape_cast %174 : vector<1x96x192xf32> to vector<96x192xf32>
    %cst_192 = arith.constant dense<0.000000e+00> : vector<12x192xf32>
    %176 = tpu.matmul %173, %175, %cst_192 {dimension_numbers = #tpu.dot_dimension_numbers<[1], [0], [0], [1], [0, 0, 1, 1], [], []>} : vector<12x96xf32>, vector<96x192xf32>, vector<12x192xf32> -> vector<12x192xf32>
    %177 = arith.addf %172, %176 : vector<12x192xf32>
    %c0_193 = arith.constant 0 : index
    %c8_194 = arith.constant 8 : index
    %178 = vector.load %arg14[%c0_193, %c8_194] : memref<14x112xf32, #tpu.memory_space<vmem>>, vector<12x96xf32>
    %c1_195 = arith.constant 1 : index
    %c0_196 = arith.constant 0 : index
    %c0_197 = arith.constant 0 : index
    %179 = vector.load %arg9[%c1_195, %c0_196, %c0_197] : memref<9x96x192xf32, #tpu.memory_space<vmem>>, vector<1x96x192xf32>
    %180 = vector.shape_cast %179 : vector<1x96x192xf32> to vector<96x192xf32>
    %cst_198 = arith.constant dense<0.000000e+00> : vector<12x192xf32>
    %181 = tpu.matmul %178, %180, %cst_198 {dimension_numbers = #tpu.dot_dimension_numbers<[1], [0], [0], [1], [0, 0, 1, 1], [], []>} : vector<12x96xf32>, vector<96x192xf32>, vector<12x192xf32> -> vector<12x192xf32>
    %182 = arith.addf %177, %181 : vector<12x192xf32>
    %c0_199 = arith.constant 0 : index
    %c16_200 = arith.constant 16 : index
    %183 = vector.load %arg14[%c0_199, %c16_200] : memref<14x112xf32, #tpu.memory_space<vmem>>, vector<12x96xf32>
    %c2_201 = arith.constant 2 : index
    %c0_202 = arith.constant 0 : index
    %c0_203 = arith.constant 0 : index
    %184 = vector.load %arg9[%c2_201, %c0_202, %c0_203] : memref<9x96x192xf32, #tpu.memory_space<vmem>>, vector<1x96x192xf32>
    %185 = vector.shape_cast %184 : vector<1x96x192xf32> to vector<96x192xf32>
    %cst_204 = arith.constant dense<0.000000e+00> : vector<12x192xf32>
    %186 = tpu.matmul %183, %185, %cst_204 {dimension_numbers = #tpu.dot_dimension_numbers<[1], [0], [0], [1], [0, 0, 1, 1], [], []>} : vector<12x96xf32>, vector<96x192xf32>, vector<12x192xf32> -> vector<12x192xf32>
    %187 = arith.addf %182, %186 : vector<12x192xf32>
    %c1_205 = arith.constant 1 : index
    %c0_206 = arith.constant 0 : index
    %188 = vector.load %arg14[%c1_205, %c0_206] : memref<14x112xf32, #tpu.memory_space<vmem>>, vector<12x96xf32>
    %c3_207 = arith.constant 3 : index
    %c0_208 = arith.constant 0 : index
    %c0_209 = arith.constant 0 : index
    %189 = vector.load %arg9[%c3_207, %c0_208, %c0_209] : memref<9x96x192xf32, #tpu.memory_space<vmem>>, vector<1x96x192xf32>
    %190 = vector.shape_cast %189 : vector<1x96x192xf32> to vector<96x192xf32>
    %cst_210 = arith.constant dense<0.000000e+00> : vector<12x192xf32>
    %191 = tpu.matmul %188, %190, %cst_210 {dimension_numbers = #tpu.dot_dimension_numbers<[1], [0], [0], [1], [0, 0, 1, 1], [], []>} : vector<12x96xf32>, vector<96x192xf32>, vector<12x192xf32> -> vector<12x192xf32>
    %192 = arith.addf %187, %191 : vector<12x192xf32>
    %c1_211 = arith.constant 1 : index
    %c8_212 = arith.constant 8 : index
    %193 = vector.load %arg14[%c1_211, %c8_212] : memref<14x112xf32, #tpu.memory_space<vmem>>, vector<12x96xf32>
    %c4_213 = arith.constant 4 : index
    %c0_214 = arith.constant 0 : index
    %c0_215 = arith.constant 0 : index
    %194 = vector.load %arg9[%c4_213, %c0_214, %c0_215] : memref<9x96x192xf32, #tpu.memory_space<vmem>>, vector<1x96x192xf32>
    %195 = vector.shape_cast %194 : vector<1x96x192xf32> to vector<96x192xf32>
    %cst_216 = arith.constant dense<0.000000e+00> : vector<12x192xf32>
    %196 = tpu.matmul %193, %195, %cst_216 {dimension_numbers = #tpu.dot_dimension_numbers<[1], [0], [0], [1], [0, 0, 1, 1], [], []>} : vector<12x96xf32>, vector<96x192xf32>, vector<12x192xf32> -> vector<12x192xf32>
    %197 = arith.addf %192, %196 : vector<12x192xf32>
    %c1_217 = arith.constant 1 : index
    %c16_218 = arith.constant 16 : index
    %198 = vector.load %arg14[%c1_217, %c16_218] : memref<14x112xf32, #tpu.memory_space<vmem>>, vector<12x96xf32>
    %c5_219 = arith.constant 5 : index
    %c0_220 = arith.constant 0 : index
    %c0_221 = arith.constant 0 : index
    %199 = vector.load %arg9[%c5_219, %c0_220, %c0_221] : memref<9x96x192xf32, #tpu.memory_space<vmem>>, vector<1x96x192xf32>
    %200 = vector.shape_cast %199 : vector<1x96x192xf32> to vector<96x192xf32>
    %cst_222 = arith.constant dense<0.000000e+00> : vector<12x192xf32>
    %201 = tpu.matmul %198, %200, %cst_222 {dimension_numbers = #tpu.dot_dimension_numbers<[1], [0], [0], [1], [0, 0, 1, 1], [], []>} : vector<12x96xf32>, vector<96x192xf32>, vector<12x192xf32> -> vector<12x192xf32>
    %202 = arith.addf %197, %201 : vector<12x192xf32>
    %c2_223 = arith.constant 2 : index
    %c0_224 = arith.constant 0 : index
    %203 = vector.load %arg14[%c2_223, %c0_224] : memref<14x112xf32, #tpu.memory_space<vmem>>, vector<12x96xf32>
    %c6_225 = arith.constant 6 : index
    %c0_226 = arith.constant 0 : index
    %c0_227 = arith.constant 0 : index
    %204 = vector.load %arg9[%c6_225, %c0_226, %c0_227] : memref<9x96x192xf32, #tpu.memory_space<vmem>>, vector<1x96x192xf32>
    %205 = vector.shape_cast %204 : vector<1x96x192xf32> to vector<96x192xf32>
    %cst_228 = arith.constant dense<0.000000e+00> : vector<12x192xf32>
    %206 = tpu.matmul %203, %205, %cst_228 {dimension_numbers = #tpu.dot_dimension_numbers<[1], [0], [0], [1], [0, 0, 1, 1], [], []>} : vector<12x96xf32>, vector<96x192xf32>, vector<12x192xf32> -> vector<12x192xf32>
    %207 = arith.addf %202, %206 : vector<12x192xf32>
    %c2_229 = arith.constant 2 : index
    %c8_230 = arith.constant 8 : index
    %208 = vector.load %arg14[%c2_229, %c8_230] : memref<14x112xf32, #tpu.memory_space<vmem>>, vector<12x96xf32>
    %c7_231 = arith.constant 7 : index
    %c0_232 = arith.constant 0 : index
    %c0_233 = arith.constant 0 : index
    %209 = vector.load %arg9[%c7_231, %c0_232, %c0_233] : memref<9x96x192xf32, #tpu.memory_space<vmem>>, vector<1x96x192xf32>
    %210 = vector.shape_cast %209 : vector<1x96x192xf32> to vector<96x192xf32>
    %cst_234 = arith.constant dense<0.000000e+00> : vector<12x192xf32>
    %211 = tpu.matmul %208, %210, %cst_234 {dimension_numbers = #tpu.dot_dimension_numbers<[1], [0], [0], [1], [0, 0, 1, 1], [], []>} : vector<12x96xf32>, vector<96x192xf32>, vector<12x192xf32> -> vector<12x192xf32>
    %212 = arith.addf %207, %211 : vector<12x192xf32>
    %c2_235 = arith.constant 2 : index
    %c16_236 = arith.constant 16 : index
    %213 = vector.load %arg14[%c2_235, %c16_236] : memref<14x112xf32, #tpu.memory_space<vmem>>, vector<12x96xf32>
    %c8_237 = arith.constant 8 : index
    %c0_238 = arith.constant 0 : index
    %c0_239 = arith.constant 0 : index
    %214 = vector.load %arg9[%c8_237, %c0_238, %c0_239] : memref<9x96x192xf32, #tpu.memory_space<vmem>>, vector<1x96x192xf32>
    %215 = vector.shape_cast %214 : vector<1x96x192xf32> to vector<96x192xf32>
    %cst_240 = arith.constant dense<0.000000e+00> : vector<12x192xf32>
    %216 = tpu.matmul %213, %215, %cst_240 {dimension_numbers = #tpu.dot_dimension_numbers<[1], [0], [0], [1], [0, 0, 1, 1], [], []>} : vector<12x96xf32>, vector<96x192xf32>, vector<12x192xf32> -> vector<12x192xf32>
    %217 = arith.addf %212, %216 : vector<12x192xf32>
    %c0_241 = arith.constant 0 : index
    %c0_242 = arith.constant 0 : index
    %218 = vector.load %arg10[%c0_241, %c0_242] : memref<1x192xf32, #tpu.memory_space<vmem>>, vector<1x192xf32>
    %219 = vector.broadcast %218 : vector<1x192xf32> to vector<12x192xf32>
    %220 = arith.addf %217, %219 : vector<12x192xf32>
    %c0_243 = arith.constant 0 : index
    %c0_244 = arith.constant 0 : index
    %221 = vector.load %arg15[%c0_243, %c0_244] : memref<12x192xf32, #tpu.memory_space<vmem>>, vector<12x192xf32>
    tpu.vector_store %arg15[%c0_243, %c0_244], %220 {strides = array<i32>} : memref<12x192xf32, #tpu.memory_space<vmem>>, vector<12x192xf32>,
    %c0_245 = arith.constant 0 : index
    %c0_246 = arith.constant 0 : index
    %222 = vector.load %arg13[%c0_245, %c0_246] : memref<8x128xf32, #tpu.memory_space<vmem>>, vector<8x128xf32>
    %223 = tpu.iota {dimensions = array<i32: 0>} : vector<8x128xi32>
    %224 = tpu.iota {dimensions = array<i32: 1>} : vector<8x128xi32>
    %cst_247 = arith.constant 0.000000e+00 : f32
    %225 = vector.broadcast %cst_247 : f32 to vector<8x128xf32>
    %c0_248 = arith.constant 0 : index
    %c0_249 = arith.constant 0 : index
    %226 = vector.load %arg15[%c0_248, %c0_249] : memref<12x192xf32, #tpu.memory_space<vmem>>, vector<8x128xf32>
    %227 = arith.mulf %226, %222 : vector<8x128xf32>
    %228 = vector.shape_cast %227 : vector<8x128xf32> to vector<1x8x128xf32>
    %cst_250 = arith.constant dense<0.000000e+00> : vector<1xf32>
    %229 = vector.multi_reduction <add>, %228, %cst_250 [1, 2] : vector<1x8x128xf32> to vector<1xf32>
    %230 = vector.shape_cast %229 : vector<1xf32> to vector<1x1x1xf32>
    %231 = vector.extract %230[0, 0, 0] : f32 from vector<1x1x1xf32>
    %cst_251 = arith.constant 1.000000e-03 : f32
    %232 = arith.mulf %231, %cst_251 : f32
    %c0_i32 = arith.constant 0 : i32
    %233 = vector.broadcast %c0_i32 : i32 to vector<8x128xi32>
    %234 = arith.cmpi eq, %223, %233 : vector<8x128xi32>
    %c0_i32_252 = arith.constant 0 : i32
    %235 = vector.broadcast %c0_i32_252 : i32 to vector<8x128xi32>
    %236 = arith.cmpi eq, %224, %235 : vector<8x128xi32>
    %237 = arith.andi %234, %236 : vector<8x128xi1>
    %238 = vector.broadcast %232 : f32 to vector<8x128xf32>
    %239 = arith.select %237, %238, %225 : vector<8x128xi1>, vector<8x128xf32>
    %c0_253 = arith.constant 0 : index
    %c16_254 = arith.constant 16 : index
    %240 = vector.load %arg15[%c0_253, %c16_254] : memref<12x192xf32, #tpu.memory_space<vmem>>, vector<8x128xf32>
    %241 = arith.mulf %240, %222 : vector<8x128xf32>
    %242 = vector.shape_cast %241 : vector<8x128xf32> to vector<1x8x128xf32>
    %cst_255 = arith.constant dense<0.000000e+00> : vector<1xf32>
    %243 = vector.multi_reduction <add>, %242, %cst_255 [1, 2] : vector<1x8x128xf32> to vector<1xf32>
    %244 = vector.shape_cast %243 : vector<1xf32> to vector<1x1x1xf32>
    %245 = vector.extract %244[0, 0, 0] : f32 from vector<1x1x1xf32>
    %cst_256 = arith.constant 1.000000e-03 : f32
    %246 = arith.mulf %245, %cst_256 : f32
    %c0_i32_257 = arith.constant 0 : i32
    %247 = vector.broadcast %c0_i32_257 : i32 to vector<8x128xi32>
    %248 = arith.cmpi eq, %223, %247 : vector<8x128xi32>
    %c1_i32 = arith.constant 1 : i32
    %249 = vector.broadcast %c1_i32 : i32 to vector<8x128xi32>
    %250 = arith.cmpi eq, %224, %249 : vector<8x128xi32>
    %251 = arith.andi %248, %250 : vector<8x128xi1>
    %252 = vector.broadcast %246 : f32 to vector<8x128xf32>
    %253 = arith.select %251, %252, %239 : vector<8x128xi1>, vector<8x128xf32>
    %c0_258 = arith.constant 0 : index
    %c32 = arith.constant 32 : index
    %254 = vector.load %arg15[%c0_258, %c32] : memref<12x192xf32, #tpu.memory_space<vmem>>, vector<8x128xf32>
    %255 = arith.mulf %254, %222 : vector<8x128xf32>
    %256 = vector.shape_cast %255 : vector<8x128xf32> to vector<1x8x128xf32>
    %cst_259 = arith.constant dense<0.000000e+00> : vector<1xf32>
    %257 = vector.multi_reduction <add>, %256, %cst_259 [1, 2] : vector<1x8x128xf32> to vector<1xf32>
    %258 = vector.shape_cast %257 : vector<1xf32> to vector<1x1x1xf32>
    %259 = vector.extract %258[0, 0, 0] : f32 from vector<1x1x1xf32>
    %cst_260 = arith.constant 1.000000e-03 : f32
    %260 = arith.mulf %259, %cst_260 : f32
    %c0_i32_261 = arith.constant 0 : i32
    %261 = vector.broadcast %c0_i32_261 : i32 to vector<8x128xi32>
    %262 = arith.cmpi eq, %223, %261 : vector<8x128xi32>
    %c2_i32 = arith.constant 2 : i32
    %263 = vector.broadcast %c2_i32 : i32 to vector<8x128xi32>
    %264 = arith.cmpi eq, %224, %263 : vector<8x128xi32>
    %265 = arith.andi %262, %264 : vector<8x128xi1>
    %266 = vector.broadcast %260 : f32 to vector<8x128xf32>
    %267 = arith.select %265, %266, %253 : vector<8x128xi1>, vector<8x128xf32>
    %c0_262 = arith.constant 0 : index
    %c48 = arith.constant 48 : index
    %268 = vector.load %arg15[%c0_262, %c48] : memref<12x192xf32, #tpu.memory_space<vmem>>, vector<8x128xf32>
    %269 = arith.mulf %268, %222 : vector<8x128xf32>
    %270 = vector.shape_cast %269 : vector<8x128xf32> to vector<1x8x128xf32>
    %cst_263 = arith.constant dense<0.000000e+00> : vector<1xf32>
    %271 = vector.multi_reduction <add>, %270, %cst_263 [1, 2] : vector<1x8x128xf32> to vector<1xf32>
    %272 = vector.shape_cast %271 : vector<1xf32> to vector<1x1x1xf32>
    %273 = vector.extract %272[0, 0, 0] : f32 from vector<1x1x1xf32>
    %cst_264 = arith.constant 1.000000e-03 : f32
    %274 = arith.mulf %273, %cst_264 : f32
    %c0_i32_265 = arith.constant 0 : i32
    %275 = vector.broadcast %c0_i32_265 : i32 to vector<8x128xi32>
    %276 = arith.cmpi eq, %223, %275 : vector<8x128xi32>
    %c3_i32 = arith.constant 3 : i32
    %277 = vector.broadcast %c3_i32 : i32 to vector<8x128xi32>
    %278 = arith.cmpi eq, %224, %277 : vector<8x128xi32>
    %279 = arith.andi %276, %278 : vector<8x128xi1>
    %280 = vector.broadcast %274 : f32 to vector<8x128xf32>
    %281 = arith.select %279, %280, %267 : vector<8x128xi1>, vector<8x128xf32>
    %c0_266 = arith.constant 0 : index
    %c64 = arith.constant 64 : index
    %282 = vector.load %arg15[%c0_266, %c64] : memref<12x192xf32, #tpu.memory_space<vmem>>, vector<8x128xf32>
    %283 = arith.mulf %282, %222 : vector<8x128xf32>
    %284 = vector.shape_cast %283 : vector<8x128xf32> to vector<1x8x128xf32>
    %cst_267 = arith.constant dense<0.000000e+00> : vector<1xf32>
    %285 = vector.multi_reduction <add>, %284, %cst_267 [1, 2] : vector<1x8x128xf32> to vector<1xf32>
    %286 = vector.shape_cast %285 : vector<1xf32> to vector<1x1x1xf32>
    %287 = vector.extract %286[0, 0, 0] : f32 from vector<1x1x1xf32>
    %cst_268 = arith.constant 1.000000e-03 : f32
    %288 = arith.mulf %287, %cst_268 : f32
    %c0_i32_269 = arith.constant 0 : i32
    %289 = vector.broadcast %c0_i32_269 : i32 to vector<8x128xi32>
    %290 = arith.cmpi eq, %223, %289 : vector<8x128xi32>
    %c4_i32 = arith.constant 4 : i32
    %291 = vector.broadcast %c4_i32 : i32 to vector<8x128xi32>
    %292 = arith.cmpi eq, %224, %291 : vector<8x128xi32>
    %293 = arith.andi %290, %292 : vector<8x128xi1>
    %294 = vector.broadcast %288 : f32 to vector<8x128xf32>
    %295 = arith.select %293, %294, %281 : vector<8x128xi1>, vector<8x128xf32>
    %c1_270 = arith.constant 1 : index
    %c0_271 = arith.constant 0 : index
    %296 = vector.load %arg15[%c1_270, %c0_271] : memref<12x192xf32, #tpu.memory_space<vmem>>, vector<8x128xf32>
    %297 = arith.mulf %296, %222 : vector<8x128xf32>
    %298 = vector.shape_cast %297 : vector<8x128xf32> to vector<1x8x128xf32>
    %cst_272 = arith.constant dense<0.000000e+00> : vector<1xf32>
    %299 = vector.multi_reduction <add>, %298, %cst_272 [1, 2] : vector<1x8x128xf32> to vector<1xf32>
    %300 = vector.shape_cast %299 : vector<1xf32> to vector<1x1x1xf32>
    %301 = vector.extract %300[0, 0, 0] : f32 from vector<1x1x1xf32>
    %cst_273 = arith.constant 1.000000e-03 : f32
    %302 = arith.mulf %301, %cst_273 : f32
    %c1_i32_274 = arith.constant 1 : i32
    %303 = vector.broadcast %c1_i32_274 : i32 to vector<8x128xi32>
    %304 = arith.cmpi eq, %223, %303 : vector<8x128xi32>
    %c0_i32_275 = arith.constant 0 : i32
    %305 = vector.broadcast %c0_i32_275 : i32 to vector<8x128xi32>
    %306 = arith.cmpi eq, %224, %305 : vector<8x128xi32>
    %307 = arith.andi %304, %306 : vector<8x128xi1>
    %308 = vector.broadcast %302 : f32 to vector<8x128xf32>
    %309 = arith.select %307, %308, %295 : vector<8x128xi1>, vector<8x128xf32>
    %c1_276 = arith.constant 1 : index
    %c16_277 = arith.constant 16 : index
    %310 = vector.load %arg15[%c1_276, %c16_277] : memref<12x192xf32, #tpu.memory_space<vmem>>, vector<8x128xf32>
    %311 = arith.mulf %310, %222 : vector<8x128xf32>
    %312 = vector.shape_cast %311 : vector<8x128xf32> to vector<1x8x128xf32>
    %cst_278 = arith.constant dense<0.000000e+00> : vector<1xf32>
    %313 = vector.multi_reduction <add>, %312, %cst_278 [1, 2] : vector<1x8x128xf32> to vector<1xf32>
    %314 = vector.shape_cast %313 : vector<1xf32> to vector<1x1x1xf32>
    %315 = vector.extract %314[0, 0, 0] : f32 from vector<1x1x1xf32>
    %cst_279 = arith.constant 1.000000e-03 : f32
    %316 = arith.mulf %315, %cst_279 : f32
    %c1_i32_280 = arith.constant 1 : i32
    %317 = vector.broadcast %c1_i32_280 : i32 to vector<8x128xi32>
    %318 = arith.cmpi eq, %223, %317 : vector<8x128xi32>
    %c1_i32_281 = arith.constant 1 : i32
    %319 = vector.broadcast %c1_i32_281 : i32 to vector<8x128xi32>
    %320 = arith.cmpi eq, %224, %319 : vector<8x128xi32>
    %321 = arith.andi %318, %320 : vector<8x128xi1>
    %322 = vector.broadcast %316 : f32 to vector<8x128xf32>
    %323 = arith.select %321, %322, %309 : vector<8x128xi1>, vector<8x128xf32>
    %c1_282 = arith.constant 1 : index
    %c32_283 = arith.constant 32 : index
    %324 = vector.load %arg15[%c1_282, %c32_283] : memref<12x192xf32, #tpu.memory_space<vmem>>, vector<8x128xf32>
    %325 = arith.mulf %324, %222 : vector<8x128xf32>
    %326 = vector.shape_cast %325 : vector<8x128xf32> to vector<1x8x128xf32>
    %cst_284 = arith.constant dense<0.000000e+00> : vector<1xf32>
    %327 = vector.multi_reduction <add>, %326, %cst_284 [1, 2] : vector<1x8x128xf32> to vector<1xf32>
    %328 = vector.shape_cast %327 : vector<1xf32> to vector<1x1x1xf32>
    %329 = vector.extract %328[0, 0, 0] : f32 from vector<1x1x1xf32>
    %cst_285 = arith.constant 1.000000e-03 : f32
    %330 = arith.mulf %329, %cst_285 : f32
    %c1_i32_286 = arith.constant 1 : i32
    %331 = vector.broadcast %c1_i32_286 : i32 to vector<8x128xi32>
    %332 = arith.cmpi eq, %223, %331 : vector<8x128xi32>
    %c2_i32_287 = arith.constant 2 : i32
    %333 = vector.broadcast %c2_i32_287 : i32 to vector<8x128xi32>
    %334 = arith.cmpi eq, %224, %333 : vector<8x128xi32>
    %335 = arith.andi %332, %334 : vector<8x128xi1>
    %336 = vector.broadcast %330 : f32 to vector<8x128xf32>
    %337 = arith.select %335, %336, %323 : vector<8x128xi1>, vector<8x128xf32>
    %c1_288 = arith.constant 1 : index
    %c48_289 = arith.constant 48 : index
    %338 = vector.load %arg15[%c1_288, %c48_289] : memref<12x192xf32, #tpu.memory_space<vmem>>, vector<8x128xf32>
    %339 = arith.mulf %338, %222 : vector<8x128xf32>
    %340 = vector.shape_cast %339 : vector<8x128xf32> to vector<1x8x128xf32>
    %cst_290 = arith.constant dense<0.000000e+00> : vector<1xf32>
    %341 = vector.multi_reduction <add>, %340, %cst_290 [1, 2] : vector<1x8x128xf32> to vector<1xf32>
    %342 = vector.shape_cast %341 : vector<1xf32> to vector<1x1x1xf32>
    %343 = vector.extract %342[0, 0, 0] : f32 from vector<1x1x1xf32>
    %cst_291 = arith.constant 1.000000e-03 : f32
    %344 = arith.mulf %343, %cst_291 : f32
    %c1_i32_292 = arith.constant 1 : i32
    %345 = vector.broadcast %c1_i32_292 : i32 to vector<8x128xi32>
    %346 = arith.cmpi eq, %223, %345 : vector<8x128xi32>
    %c3_i32_293 = arith.constant 3 : i32
    %347 = vector.broadcast %c3_i32_293 : i32 to vector<8x128xi32>
    %348 = arith.cmpi eq, %224, %347 : vector<8x128xi32>
    %349 = arith.andi %346, %348 : vector<8x128xi1>
    %350 = vector.broadcast %344 : f32 to vector<8x128xf32>
    %351 = arith.select %349, %350, %337 : vector<8x128xi1>, vector<8x128xf32>
    %c1_294 = arith.constant 1 : index
    %c64_295 = arith.constant 64 : index
    %352 = vector.load %arg15[%c1_294, %c64_295] : memref<12x192xf32, #tpu.memory_space<vmem>>, vector<8x128xf32>
    %353 = arith.mulf %352, %222 : vector<8x128xf32>
    %354 = vector.shape_cast %353 : vector<8x128xf32> to vector<1x8x128xf32>
    %cst_296 = arith.constant dense<0.000000e+00> : vector<1xf32>
    %355 = vector.multi_reduction <add>, %354, %cst_296 [1, 2] : vector<1x8x128xf32> to vector<1xf32>
    %356 = vector.shape_cast %355 : vector<1xf32> to vector<1x1x1xf32>
    %357 = vector.extract %356[0, 0, 0] : f32 from vector<1x1x1xf32>
    %cst_297 = arith.constant 1.000000e-03 : f32
    %358 = arith.mulf %357, %cst_297 : f32
    %c1_i32_298 = arith.constant 1 : i32
    %359 = vector.broadcast %c1_i32_298 : i32 to vector<8x128xi32>
    %360 = arith.cmpi eq, %223, %359 : vector<8x128xi32>
    %c4_i32_299 = arith.constant 4 : i32
    %361 = vector.broadcast %c4_i32_299 : i32 to vector<8x128xi32>
    %362 = arith.cmpi eq, %224, %361 : vector<8x128xi32>
    %363 = arith.andi %360, %362 : vector<8x128xi1>
    %364 = vector.broadcast %358 : f32 to vector<8x128xf32>
    %365 = arith.select %363, %364, %351 : vector<8x128xi1>, vector<8x128xf32>
    %c2_300 = arith.constant 2 : index
    %c0_301 = arith.constant 0 : index
    %366 = vector.load %arg15[%c2_300, %c0_301] : memref<12x192xf32, #tpu.memory_space<vmem>>, vector<8x128xf32>
    %367 = arith.mulf %366, %222 : vector<8x128xf32>
    %368 = vector.shape_cast %367 : vector<8x128xf32> to vector<1x8x128xf32>
    %cst_302 = arith.constant dense<0.000000e+00> : vector<1xf32>
    %369 = vector.multi_reduction <add>, %368, %cst_302 [1, 2] : vector<1x8x128xf32> to vector<1xf32>
    %370 = vector.shape_cast %369 : vector<1xf32> to vector<1x1x1xf32>
    %371 = vector.extract %370[0, 0, 0] : f32 from vector<1x1x1xf32>
    %cst_303 = arith.constant 1.000000e-03 : f32
    %372 = arith.mulf %371, %cst_303 : f32
    %c2_i32_304 = arith.constant 2 : i32
    %373 = vector.broadcast %c2_i32_304 : i32 to vector<8x128xi32>
    %374 = arith.cmpi eq, %223, %373 : vector<8x128xi32>
    %c0_i32_305 = arith.constant 0 : i32
    %375 = vector.broadcast %c0_i32_305 : i32 to vector<8x128xi32>
    %376 = arith.cmpi eq, %224, %375 : vector<8x128xi32>
    %377 = arith.andi %374, %376 : vector<8x128xi1>
    %378 = vector.broadcast %372 : f32 to vector<8x128xf32>
    %379 = arith.select %377, %378, %365 : vector<8x128xi1>, vector<8x128xf32>
    %c2_306 = arith.constant 2 : index
    %c16_307 = arith.constant 16 : index
    %380 = vector.load %arg15[%c2_306, %c16_307] : memref<12x192xf32, #tpu.memory_space<vmem>>, vector<8x128xf32>
    %381 = arith.mulf %380, %222 : vector<8x128xf32>
    %382 = vector.shape_cast %381 : vector<8x128xf32> to vector<1x8x128xf32>
    %cst_308 = arith.constant dense<0.000000e+00> : vector<1xf32>
    %383 = vector.multi_reduction <add>, %382, %cst_308 [1, 2] : vector<1x8x128xf32> to vector<1xf32>
    %384 = vector.shape_cast %383 : vector<1xf32> to vector<1x1x1xf32>
    %385 = vector.extract %384[0, 0, 0] : f32 from vector<1x1x1xf32>
    %cst_309 = arith.constant 1.000000e-03 : f32
    %386 = arith.mulf %385, %cst_309 : f32
    %c2_i32_310 = arith.constant 2 : i32
    %387 = vector.broadcast %c2_i32_310 : i32 to vector<8x128xi32>
    %388 = arith.cmpi eq, %223, %387 : vector<8x128xi32>
    %c1_i32_311 = arith.constant 1 : i32
    %389 = vector.broadcast %c1_i32_311 : i32 to vector<8x128xi32>
    %390 = arith.cmpi eq, %224, %389 : vector<8x128xi32>
    %391 = arith.andi %388, %390 : vector<8x128xi1>
    %392 = vector.broadcast %386 : f32 to vector<8x128xf32>
    %393 = arith.select %391, %392, %379 : vector<8x128xi1>, vector<8x128xf32>
    %c2_312 = arith.constant 2 : index
    %c32_313 = arith.constant 32 : index
    %394 = vector.load %arg15[%c2_312, %c32_313] : memref<12x192xf32, #tpu.memory_space<vmem>>, vector<8x128xf32>
    %395 = arith.mulf %394, %222 : vector<8x128xf32>
    %396 = vector.shape_cast %395 : vector<8x128xf32> to vector<1x8x128xf32>
    %cst_314 = arith.constant dense<0.000000e+00> : vector<1xf32>
    %397 = vector.multi_reduction <add>, %396, %cst_314 [1, 2] : vector<1x8x128xf32> to vector<1xf32>
    %398 = vector.shape_cast %397 : vector<1xf32> to vector<1x1x1xf32>
    %399 = vector.extract %398[0, 0, 0] : f32 from vector<1x1x1xf32>
    %cst_315 = arith.constant 1.000000e-03 : f32
    %400 = arith.mulf %399, %cst_315 : f32
    %c2_i32_316 = arith.constant 2 : i32
    %401 = vector.broadcast %c2_i32_316 : i32 to vector<8x128xi32>
    %402 = arith.cmpi eq, %223, %401 : vector<8x128xi32>
    %c2_i32_317 = arith.constant 2 : i32
    %403 = vector.broadcast %c2_i32_317 : i32 to vector<8x128xi32>
    %404 = arith.cmpi eq, %224, %403 : vector<8x128xi32>
    %405 = arith.andi %402, %404 : vector<8x128xi1>
    %406 = vector.broadcast %400 : f32 to vector<8x128xf32>
    %407 = arith.select %405, %406, %393 : vector<8x128xi1>, vector<8x128xf32>
    %c2_318 = arith.constant 2 : index
    %c48_319 = arith.constant 48 : index
    %408 = vector.load %arg15[%c2_318, %c48_319] : memref<12x192xf32, #tpu.memory_space<vmem>>, vector<8x128xf32>
    %409 = arith.mulf %408, %222 : vector<8x128xf32>
    %410 = vector.shape_cast %409 : vector<8x128xf32> to vector<1x8x128xf32>
    %cst_320 = arith.constant dense<0.000000e+00> : vector<1xf32>
    %411 = vector.multi_reduction <add>, %410, %cst_320 [1, 2] : vector<1x8x128xf32> to vector<1xf32>
    %412 = vector.shape_cast %411 : vector<1xf32> to vector<1x1x1xf32>
    %413 = vector.extract %412[0, 0, 0] : f32 from vector<1x1x1xf32>
    %cst_321 = arith.constant 1.000000e-03 : f32
    %414 = arith.mulf %413, %cst_321 : f32
    %c2_i32_322 = arith.constant 2 : i32
    %415 = vector.broadcast %c2_i32_322 : i32 to vector<8x128xi32>
    %416 = arith.cmpi eq, %223, %415 : vector<8x128xi32>
    %c3_i32_323 = arith.constant 3 : i32
    %417 = vector.broadcast %c3_i32_323 : i32 to vector<8x128xi32>
    %418 = arith.cmpi eq, %224, %417 : vector<8x128xi32>
    %419 = arith.andi %416, %418 : vector<8x128xi1>
    %420 = vector.broadcast %414 : f32 to vector<8x128xf32>
    %421 = arith.select %419, %420, %407 : vector<8x128xi1>, vector<8x128xf32>
    %c2_324 = arith.constant 2 : index
    %c64_325 = arith.constant 64 : index
    %422 = vector.load %arg15[%c2_324, %c64_325] : memref<12x192xf32, #tpu.memory_space<vmem>>, vector<8x128xf32>
    %423 = arith.mulf %422, %222 : vector<8x128xf32>
    %424 = vector.shape_cast %423 : vector<8x128xf32> to vector<1x8x128xf32>
    %cst_326 = arith.constant dense<0.000000e+00> : vector<1xf32>
    %425 = vector.multi_reduction <add>, %424, %cst_326 [1, 2] : vector<1x8x128xf32> to vector<1xf32>
    %426 = vector.shape_cast %425 : vector<1xf32> to vector<1x1x1xf32>
    %427 = vector.extract %426[0, 0, 0] : f32 from vector<1x1x1xf32>
    %cst_327 = arith.constant 1.000000e-03 : f32
    %428 = arith.mulf %427, %cst_327 : f32
    %c2_i32_328 = arith.constant 2 : i32
    %429 = vector.broadcast %c2_i32_328 : i32 to vector<8x128xi32>
    %430 = arith.cmpi eq, %223, %429 : vector<8x128xi32>
    %c4_i32_329 = arith.constant 4 : i32
    %431 = vector.broadcast %c4_i32_329 : i32 to vector<8x128xi32>
    %432 = arith.cmpi eq, %224, %431 : vector<8x128xi32>
    %433 = arith.andi %430, %432 : vector<8x128xi1>
    %434 = vector.broadcast %428 : f32 to vector<8x128xf32>
    %435 = arith.select %433, %434, %421 : vector<8x128xi1>, vector<8x128xf32>
    %c3_330 = arith.constant 3 : index
    %c0_331 = arith.constant 0 : index
    %436 = vector.load %arg15[%c3_330, %c0_331] : memref<12x192xf32, #tpu.memory_space<vmem>>, vector<8x128xf32>
    %437 = arith.mulf %436, %222 : vector<8x128xf32>
    %438 = vector.shape_cast %437 : vector<8x128xf32> to vector<1x8x128xf32>
    %cst_332 = arith.constant dense<0.000000e+00> : vector<1xf32>
    %439 = vector.multi_reduction <add>, %438, %cst_332 [1, 2] : vector<1x8x128xf32> to vector<1xf32>
    %440 = vector.shape_cast %439 : vector<1xf32> to vector<1x1x1xf32>
    %441 = vector.extract %440[0, 0, 0] : f32 from vector<1x1x1xf32>
    %cst_333 = arith.constant 1.000000e-03 : f32
    %442 = arith.mulf %441, %cst_333 : f32
    %c3_i32_334 = arith.constant 3 : i32
    %443 = vector.broadcast %c3_i32_334 : i32 to vector<8x128xi32>
    %444 = arith.cmpi eq, %223, %443 : vector<8x128xi32>
    %c0_i32_335 = arith.constant 0 : i32
    %445 = vector.broadcast %c0_i32_335 : i32 to vector<8x128xi32>
    %446 = arith.cmpi eq, %224, %445 : vector<8x128xi32>
    %447 = arith.andi %444, %446 : vector<8x128xi1>
    %448 = vector.broadcast %442 : f32 to vector<8x128xf32>
    %449 = arith.select %447, %448, %435 : vector<8x128xi1>, vector<8x128xf32>
    %c3_336 = arith.constant 3 : index
    %c16_337 = arith.constant 16 : index
    %450 = vector.load %arg15[%c3_336, %c16_337] : memref<12x192xf32, #tpu.memory_space<vmem>>, vector<8x128xf32>
    %451 = arith.mulf %450, %222 : vector<8x128xf32>
    %452 = vector.shape_cast %451 : vector<8x128xf32> to vector<1x8x128xf32>
    %cst_338 = arith.constant dense<0.000000e+00> : vector<1xf32>
    %453 = vector.multi_reduction <add>, %452, %cst_338 [1, 2] : vector<1x8x128xf32> to vector<1xf32>
    %454 = vector.shape_cast %453 : vector<1xf32> to vector<1x1x1xf32>
    %455 = vector.extract %454[0, 0, 0] : f32 from vector<1x1x1xf32>
    %cst_339 = arith.constant 1.000000e-03 : f32
    %456 = arith.mulf %455, %cst_339 : f32
    %c3_i32_340 = arith.constant 3 : i32
    %457 = vector.broadcast %c3_i32_340 : i32 to vector<8x128xi32>
    %458 = arith.cmpi eq, %223, %457 : vector<8x128xi32>
    %c1_i32_341 = arith.constant 1 : i32
    %459 = vector.broadcast %c1_i32_341 : i32 to vector<8x128xi32>
    %460 = arith.cmpi eq, %224, %459 : vector<8x128xi32>
    %461 = arith.andi %458, %460 : vector<8x128xi1>
    %462 = vector.broadcast %456 : f32 to vector<8x128xf32>
    %463 = arith.select %461, %462, %449 : vector<8x128xi1>, vector<8x128xf32>
    %c3_342 = arith.constant 3 : index
    %c32_343 = arith.constant 32 : index
    %464 = vector.load %arg15[%c3_342, %c32_343] : memref<12x192xf32, #tpu.memory_space<vmem>>, vector<8x128xf32>
    %465 = arith.mulf %464, %222 : vector<8x128xf32>
    %466 = vector.shape_cast %465 : vector<8x128xf32> to vector<1x8x128xf32>
    %cst_344 = arith.constant dense<0.000000e+00> : vector<1xf32>
    %467 = vector.multi_reduction <add>, %466, %cst_344 [1, 2] : vector<1x8x128xf32> to vector<1xf32>
    %468 = vector.shape_cast %467 : vector<1xf32> to vector<1x1x1xf32>
    %469 = vector.extract %468[0, 0, 0] : f32 from vector<1x1x1xf32>
    %cst_345 = arith.constant 1.000000e-03 : f32
    %470 = arith.mulf %469, %cst_345 : f32
    %c3_i32_346 = arith.constant 3 : i32
    %471 = vector.broadcast %c3_i32_346 : i32 to vector<8x128xi32>
    %472 = arith.cmpi eq, %223, %471 : vector<8x128xi32>
    %c2_i32_347 = arith.constant 2 : i32
    %473 = vector.broadcast %c2_i32_347 : i32 to vector<8x128xi32>
    %474 = arith.cmpi eq, %224, %473 : vector<8x128xi32>
    %475 = arith.andi %472, %474 : vector<8x128xi1>
    %476 = vector.broadcast %470 : f32 to vector<8x128xf32>
    %477 = arith.select %475, %476, %463 : vector<8x128xi1>, vector<8x128xf32>
    %c3_348 = arith.constant 3 : index
    %c48_349 = arith.constant 48 : index
    %478 = vector.load %arg15[%c3_348, %c48_349] : memref<12x192xf32, #tpu.memory_space<vmem>>, vector<8x128xf32>
    %479 = arith.mulf %478, %222 : vector<8x128xf32>
    %480 = vector.shape_cast %479 : vector<8x128xf32> to vector<1x8x128xf32>
    %cst_350 = arith.constant dense<0.000000e+00> : vector<1xf32>
    %481 = vector.multi_reduction <add>, %480, %cst_350 [1, 2] : vector<1x8x128xf32> to vector<1xf32>
    %482 = vector.shape_cast %481 : vector<1xf32> to vector<1x1x1xf32>
    %483 = vector.extract %482[0, 0, 0] : f32 from vector<1x1x1xf32>
    %cst_351 = arith.constant 1.000000e-03 : f32
    %484 = arith.mulf %483, %cst_351 : f32
    %c3_i32_352 = arith.constant 3 : i32
    %485 = vector.broadcast %c3_i32_352 : i32 to vector<8x128xi32>
    %486 = arith.cmpi eq, %223, %485 : vector<8x128xi32>
    %c3_i32_353 = arith.constant 3 : i32
    %487 = vector.broadcast %c3_i32_353 : i32 to vector<8x128xi32>
    %488 = arith.cmpi eq, %224, %487 : vector<8x128xi32>
    %489 = arith.andi %486, %488 : vector<8x128xi1>
    %490 = vector.broadcast %484 : f32 to vector<8x128xf32>
    %491 = arith.select %489, %490, %477 : vector<8x128xi1>, vector<8x128xf32>
    %c3_354 = arith.constant 3 : index
    %c64_355 = arith.constant 64 : index
    %492 = vector.load %arg15[%c3_354, %c64_355] : memref<12x192xf32, #tpu.memory_space<vmem>>, vector<8x128xf32>
    %493 = arith.mulf %492, %222 : vector<8x128xf32>
    %494 = vector.shape_cast %493 : vector<8x128xf32> to vector<1x8x128xf32>
    %cst_356 = arith.constant dense<0.000000e+00> : vector<1xf32>
    %495 = vector.multi_reduction <add>, %494, %cst_356 [1, 2] : vector<1x8x128xf32> to vector<1xf32>
    %496 = vector.shape_cast %495 : vector<1xf32> to vector<1x1x1xf32>
    %497 = vector.extract %496[0, 0, 0] : f32 from vector<1x1x1xf32>
    %cst_357 = arith.constant 1.000000e-03 : f32
    %498 = arith.mulf %497, %cst_357 : f32
    %c3_i32_358 = arith.constant 3 : i32
    %499 = vector.broadcast %c3_i32_358 : i32 to vector<8x128xi32>
    %500 = arith.cmpi eq, %223, %499 : vector<8x128xi32>
    %c4_i32_359 = arith.constant 4 : i32
    %501 = vector.broadcast %c4_i32_359 : i32 to vector<8x128xi32>
    %502 = arith.cmpi eq, %224, %501 : vector<8x128xi32>
    %503 = arith.andi %500, %502 : vector<8x128xi1>
    %504 = vector.broadcast %498 : f32 to vector<8x128xf32>
    %505 = arith.select %503, %504, %491 : vector<8x128xi1>, vector<8x128xf32>
    %c4_360 = arith.constant 4 : index
    %c0_361 = arith.constant 0 : index
    %506 = vector.load %arg15[%c4_360, %c0_361] : memref<12x192xf32, #tpu.memory_space<vmem>>, vector<8x128xf32>
    %507 = arith.mulf %506, %222 : vector<8x128xf32>
    %508 = vector.shape_cast %507 : vector<8x128xf32> to vector<1x8x128xf32>
    %cst_362 = arith.constant dense<0.000000e+00> : vector<1xf32>
    %509 = vector.multi_reduction <add>, %508, %cst_362 [1, 2] : vector<1x8x128xf32> to vector<1xf32>
    %510 = vector.shape_cast %509 : vector<1xf32> to vector<1x1x1xf32>
    %511 = vector.extract %510[0, 0, 0] : f32 from vector<1x1x1xf32>
    %cst_363 = arith.constant 1.000000e-03 : f32
    %512 = arith.mulf %511, %cst_363 : f32
    %c4_i32_364 = arith.constant 4 : i32
    %513 = vector.broadcast %c4_i32_364 : i32 to vector<8x128xi32>
    %514 = arith.cmpi eq, %223, %513 : vector<8x128xi32>
    %c0_i32_365 = arith.constant 0 : i32
    %515 = vector.broadcast %c0_i32_365 : i32 to vector<8x128xi32>
    %516 = arith.cmpi eq, %224, %515 : vector<8x128xi32>
    %517 = arith.andi %514, %516 : vector<8x128xi1>
    %518 = vector.broadcast %512 : f32 to vector<8x128xf32>
    %519 = arith.select %517, %518, %505 : vector<8x128xi1>, vector<8x128xf32>
    %c4_366 = arith.constant 4 : index
    %c16_367 = arith.constant 16 : index
    %520 = vector.load %arg15[%c4_366, %c16_367] : memref<12x192xf32, #tpu.memory_space<vmem>>, vector<8x128xf32>
    %521 = arith.mulf %520, %222 : vector<8x128xf32>
    %522 = vector.shape_cast %521 : vector<8x128xf32> to vector<1x8x128xf32>
    %cst_368 = arith.constant dense<0.000000e+00> : vector<1xf32>
    %523 = vector.multi_reduction <add>, %522, %cst_368 [1, 2] : vector<1x8x128xf32> to vector<1xf32>
    %524 = vector.shape_cast %523 : vector<1xf32> to vector<1x1x1xf32>
    %525 = vector.extract %524[0, 0, 0] : f32 from vector<1x1x1xf32>
    %cst_369 = arith.constant 1.000000e-03 : f32
    %526 = arith.mulf %525, %cst_369 : f32
    %c4_i32_370 = arith.constant 4 : i32
    %527 = vector.broadcast %c4_i32_370 : i32 to vector<8x128xi32>
    %528 = arith.cmpi eq, %223, %527 : vector<8x128xi32>
    %c1_i32_371 = arith.constant 1 : i32
    %529 = vector.broadcast %c1_i32_371 : i32 to vector<8x128xi32>
    %530 = arith.cmpi eq, %224, %529 : vector<8x128xi32>
    %531 = arith.andi %528, %530 : vector<8x128xi1>
    %532 = vector.broadcast %526 : f32 to vector<8x128xf32>
    %533 = arith.select %531, %532, %519 : vector<8x128xi1>, vector<8x128xf32>
    %c4_372 = arith.constant 4 : index
    %c32_373 = arith.constant 32 : index
    %534 = vector.load %arg15[%c4_372, %c32_373] : memref<12x192xf32, #tpu.memory_space<vmem>>, vector<8x128xf32>
    %535 = arith.mulf %534, %222 : vector<8x128xf32>
    %536 = vector.shape_cast %535 : vector<8x128xf32> to vector<1x8x128xf32>
    %cst_374 = arith.constant dense<0.000000e+00> : vector<1xf32>
    %537 = vector.multi_reduction <add>, %536, %cst_374 [1, 2] : vector<1x8x128xf32> to vector<1xf32>
    %538 = vector.shape_cast %537 : vector<1xf32> to vector<1x1x1xf32>
    %539 = vector.extract %538[0, 0, 0] : f32 from vector<1x1x1xf32>
    %cst_375 = arith.constant 1.000000e-03 : f32
    %540 = arith.mulf %539, %cst_375 : f32
    %c4_i32_376 = arith.constant 4 : i32
    %541 = vector.broadcast %c4_i32_376 : i32 to vector<8x128xi32>
    %542 = arith.cmpi eq, %223, %541 : vector<8x128xi32>
    %c2_i32_377 = arith.constant 2 : i32
    %543 = vector.broadcast %c2_i32_377 : i32 to vector<8x128xi32>
    %544 = arith.cmpi eq, %224, %543 : vector<8x128xi32>
    %545 = arith.andi %542, %544 : vector<8x128xi1>
    %546 = vector.broadcast %540 : f32 to vector<8x128xf32>
    %547 = arith.select %545, %546, %533 : vector<8x128xi1>, vector<8x128xf32>
    %c4_378 = arith.constant 4 : index
    %c48_379 = arith.constant 48 : index
    %548 = vector.load %arg15[%c4_378, %c48_379] : memref<12x192xf32, #tpu.memory_space<vmem>>, vector<8x128xf32>
    %549 = arith.mulf %548, %222 : vector<8x128xf32>
    %550 = vector.shape_cast %549 : vector<8x128xf32> to vector<1x8x128xf32>
    %cst_380 = arith.constant dense<0.000000e+00> : vector<1xf32>
    %551 = vector.multi_reduction <add>, %550, %cst_380 [1, 2] : vector<1x8x128xf32> to vector<1xf32>
    %552 = vector.shape_cast %551 : vector<1xf32> to vector<1x1x1xf32>
    %553 = vector.extract %552[0, 0, 0] : f32 from vector<1x1x1xf32>
    %cst_381 = arith.constant 1.000000e-03 : f32
    %554 = arith.mulf %553, %cst_381 : f32
    %c4_i32_382 = arith.constant 4 : i32
    %555 = vector.broadcast %c4_i32_382 : i32 to vector<8x128xi32>
    %556 = arith.cmpi eq, %223, %555 : vector<8x128xi32>
    %c3_i32_383 = arith.constant 3 : i32
    %557 = vector.broadcast %c3_i32_383 : i32 to vector<8x128xi32>
    %558 = arith.cmpi eq, %224, %557 : vector<8x128xi32>
    %559 = arith.andi %556, %558 : vector<8x128xi1>
    %560 = vector.broadcast %554 : f32 to vector<8x128xf32>
    %561 = arith.select %559, %560, %547 : vector<8x128xi1>, vector<8x128xf32>
    %c4_384 = arith.constant 4 : index
    %c64_385 = arith.constant 64 : index
    %562 = vector.load %arg15[%c4_384, %c64_385] : memref<12x192xf32, #tpu.memory_space<vmem>>, vector<8x128xf32>
    %563 = arith.mulf %562, %222 : vector<8x128xf32>
    %564 = vector.shape_cast %563 : vector<8x128xf32> to vector<1x8x128xf32>
    %cst_386 = arith.constant dense<0.000000e+00> : vector<1xf32>
    %565 = vector.multi_reduction <add>, %564, %cst_386 [1, 2] : vector<1x8x128xf32> to vector<1xf32>
    %566 = vector.shape_cast %565 : vector<1xf32> to vector<1x1x1xf32>
    %567 = vector.extract %566[0, 0, 0] : f32 from vector<1x1x1xf32>
    %cst_387 = arith.constant 1.000000e-03 : f32
    %568 = arith.mulf %567, %cst_387 : f32
    %c4_i32_388 = arith.constant 4 : i32
    %569 = vector.broadcast %c4_i32_388 : i32 to vector<8x128xi32>
    %570 = arith.cmpi eq, %223, %569 : vector<8x128xi32>
    %c4_i32_389 = arith.constant 4 : i32
    %571 = vector.broadcast %c4_i32_389 : i32 to vector<8x128xi32>
    %572 = arith.cmpi eq, %224, %571 : vector<8x128xi32>
    %573 = arith.andi %570, %572 : vector<8x128xi1>
    %574 = vector.broadcast %568 : f32 to vector<8x128xf32>
    %575 = arith.select %573, %574, %561 : vector<8x128xi1>, vector<8x128xf32>
    %c0_390 = arith.constant 0 : index
    %c0_391 = arith.constant 0 : index
    %c0_392 = arith.constant 0 : index
    %576 = vector.load %arg11[%c0_390, %c0_391, %c0_392] : memref<1x8x128xf32, #tpu.memory_space<vmem>>, vector<1x8x128xf32>
    %577 = vector.shape_cast %576 : vector<1x8x128xf32> to vector<8x128xf32>
    %578 = vector.shape_cast %575 : vector<8x128xf32> to vector<1x8x128xf32>
    tpu.vector_store %arg11[%c0_390, %c0_391, %c0_392], %578 {strides = array<i32>} : memref<1x8x128xf32, #tpu.memory_space<vmem>>, vector<1x8x128xf32>,
    return
  }
  func.func @transform_0(%arg0: i32) -> (i32, i32, i32) {
    %c0_i32 = arith.constant 0 : i32
    %c0_i32_0 = arith.constant 0 : i32
    %c0_i32_1 = arith.constant 0 : i32
    return %arg0, %c0_i32, %c0_i32_0 : i32, i32, i32
  }
  func.func @transform_1(%arg0: i32) -> (i32, i32, i32) {
    %c0_i32 = arith.constant 0 : i32
    %c0_i32_0 = arith.constant 0 : i32
    %c0_i32_1 = arith.constant 0 : i32
    return %arg0, %c0_i32, %c0_i32_0 : i32, i32, i32
  }
  func.func @transform_2(%arg0: i32) -> (i32, i32, i32) {
    %c0_i32 = arith.constant 0 : i32
    %c0_i32_0 = arith.constant 0 : i32
    %c0_i32_1 = arith.constant 0 : i32
    %c0_i32_2 = arith.constant 0 : i32
    return %c0_i32, %c0_i32_0, %c0_i32_1 : i32, i32, i32
  }
  func.func @transform_3(%arg0: i32) -> (i32, i32) {
    %c0_i32 = arith.constant 0 : i32
    %c0_i32_0 = arith.constant 0 : i32
    %c0_i32_1 = arith.constant 0 : i32
    return %c0_i32, %c0_i32_0 : i32, i32
  }
  func.func @transform_4(%arg0: i32) -> (i32, i32, i32) {
    %c0_i32 = arith.constant 0 : i32
    %c0_i32_0 = arith.constant 0 : i32
    %c0_i32_1 = arith.constant 0 : i32
    %c0_i32_2 = arith.constant 0 : i32
    return %c0_i32, %c0_i32_0, %c0_i32_1 : i32, i32, i32
  }
  func.func @transform_5(%arg0: i32) -> (i32, i32) {
    %c0_i32 = arith.constant 0 : i32
    %c0_i32_0 = arith.constant 0 : i32
    %c0_i32_1 = arith.constant 0 : i32
    return %c0_i32, %c0_i32_0 : i32, i32
  }
  func.func @transform_6(%arg0: i32) -> (i32, i32, i32) {
    %c0_i32 = arith.constant 0 : i32
    %c0_i32_0 = arith.constant 0 : i32
    %c0_i32_1 = arith.constant 0 : i32
    %c0_i32_2 = arith.constant 0 : i32
    return %c0_i32, %c0_i32_0, %c0_i32_1 : i32, i32, i32
  }
  func.func @transform_7(%arg0: i32) -> (i32, i32) {
    %c0_i32 = arith.constant 0 : i32
    %c0_i32_0 = arith.constant 0 : i32
    %c0_i32_1 = arith.constant 0 : i32
    return %c0_i32, %c0_i32_0 : i32, i32
  }
  func.func @transform_8(%arg0: i32) -> (i32, i32, i32) {
    %c0_i32 = arith.constant 0 : i32
    %c0_i32_0 = arith.constant 0 : i32
    %c0_i32_1 = arith.constant 0 : i32
    %c0_i32_2 = arith.constant 0 : i32
    return %c0_i32, %c0_i32_0, %c0_i32_1 : i32, i32, i32
  }
  func.func @transform_9(%arg0: i32) -> (i32, i32) {
    %c0_i32 = arith.constant 0 : i32
    %c0_i32_0 = arith.constant 0 : i32
    %c0_i32_1 = arith.constant 0 : i32
    return %c0_i32, %c0_i32_0 : i32, i32
  }
  func.func @transform_10(%arg0: i32) -> (i32, i32, i32) {
    %c0_i32 = arith.constant 0 : i32
    %c0_i32_0 = arith.constant 0 : i32
    %c0_i32_1 = arith.constant 0 : i32
    return %arg0, %c0_i32, %c0_i32_0 : i32, i32, i32
  }
}

</mosaic_0001>

<llo_original>
// kernel: tile.38
$region0: #{tile.38}
  #allocation0 [shape = 's32[1]{0}', space=sflag, size = 0x4, scoped, tag = 'scoped memory for tile.38']
  %s0 = inlined_call_operand.vmem [shape: f32[16], index: 0, kind: input, shape index: {}]
  %s1 = inlined_call_operand.vmem [shape: f32[12,16], index: 1, kind: output, shape index: {}]
  // Predicated region
  $region2: #{tile.38} parent=0 // pred_check
    _
  $region3: #{tile.38} parent=0 // pred_check_branch
    %3 = sbr.rel (0) target = $region5
  $region4: #{tile.38} parent=0 // pred_region
    _
  $region5: #{tile.38} parent=0 // pred_fallthru
    _
  %v4 = vld [vmem:[%s0] ss:$0 sm:$0xff]
  %5 = vst [vmem:[%s1] sm:$0xff] %v4
  %s6 = scalar_lea.vmem %s1, 8
  %7 = vst [vmem:[%s6] sm:$0xff] %v4

// kernel: tile.39
$region0: #{tile.39}
  %s0 = inlined_call_operand.vmem [shape: f32[12,16], index: 0, kind: input, shape index: {}]
  %s1 = inlined_call_operand.vmem [shape: f32[1,192], index: 1, kind: output, shape index: {}]
  $region1: #{tile.39} parent=0
    #allocation0 [shape = 'u8[8192]{0}', space=vmem, size = 0x2000, scoped, tag = 'scoped mem for output reshape']
    %s2 = smov 3
    %v3 = vld [vmem:[%s0] ss:$8 sm:%s2]
    %vm4 = vcmask 130048
    %5 = vst.msk [vmem:[#allocation0] ss:$8 sm:$0x3] %vm4, %v3
    %s6 = scalar_lea.vmem %s0, 7
    %v7 = vld [vmem:[%s6] sm:$0x1]
    %8 = vrot.lane.b32.xlu0 %v7, 112
    %v9 = vpop.permute.xlu0 %8
    %vm10 = vcmask 1048448
    %11 = vst.msk [vmem:[#allocation0] sm:$0x1] %vm10, %v9
    %s12 = scalar_lea.vmem %s0, 6
    %v13 = vld [vmem:[%s12] sm:$0x1]
    %14 = vrot.lane.b32.xlu0 %v13, 96
    %v15 = vpop.permute.xlu0 %14
    %vm16 = vcmask 917248
    %17 = vst.msk [vmem:[#allocation0] sm:$0x1] %vm16, %v15
    %s18 = scalar_lea.vmem %s0, 5
    %v19 = vld [vmem:[%s18] sm:$0x1]
    %20 = vrot.lane.b32.xlu0 %v19, 80
    %v21 = vpop.permute.xlu0 %20
    %vm22 = vcmask 786048
    %23 = vst.msk [vmem:[#allocation0] sm:$0x1] %vm22, %v21
    %s24 = scalar_lea.vmem %s0, 4
    %v25 = vld [vmem:[%s24] sm:$0x1]
    %26 = vrot.lane.b32.xlu0 %v25, 64
    %v27 = vpop.permute.xlu0 %26
    %vm28 = vcmask 654848
    %29 = vst.msk [vmem:[#allocation0] sm:$0x1] %vm28, %v27
    %s30 = scalar_lea.vmem %s0, 3
    %s31 = smov 3
    %v32 = vld [vmem:[%s30] ss:$8 sm:%s31]
    %33 = vrot.lane.b32.xlu0 %v32, 48
    %v34 = vpop.permute.xlu0 %33
    %vm35 = vcmask 523648
    %36 = vst.msk [vmem:[#allocation0] ss:$8 sm:$0x3] %vm35, %v34
    %s37 = scalar_lea.vmem %s0, 2
    %s38 = smov 3
    %v39 = vld [vmem:[%s37] ss:$8 sm:%s38]
    %40 = vrot.lane.b32.xlu0 %v39, 32
    %v41 = vpop.permute.xlu0 %40
    %vm42 = vcmask 392448
    %43 = vst.msk [vmem:[#allocation0] ss:$8 sm:$0x3] %vm42, %v41
    %s44 = scalar_lea.vmem %s0, 1
    %s45 = smov 3
    %v46 = vld [vmem:[%s44] ss:$8 sm:%s45]
    %47 = vrot.lane.b32.xlu0 %v46, 16
    %v48 = vpop.permute.xlu0 %47
    %vm49 = vcmask 261248
    %50 = vst.msk [vmem:[#allocation0] ss:$8 sm:$0x3] %vm49, %v48
    %s52 = sshllo.u32 0, 1
    %v54 = vld [vmem:[#allocation0] sm:%s52]
    %s55 = sshllo.u32 0, 1
    %56 = vst [vmem:[%s1] sm:%s55] %v54
    %s57 = scalar_lea.vmem [#allocation0], 8
    %v58 = vld [vmem:[%s57] sm:%s52]
    %s59 = sshllo.u32 0, 1
    %s60 = scalar_lea.vmem %s1, 1
    %61 = vst [vmem:[%s60] sm:%s59] %v58

// kernel: tile.23
$region0: #{tile.23}
  #allocation0 [shape = 's32[1]{0}', space=sflag, size = 0x4, scoped, tag = 'scoped memory for tile.23']
  %s0 = inlined_call_operand.vmem [shape: f32[8], index: 0, kind: input, shape index: {}]
  %s1 = inlined_call_operand.vmem [shape: f32[10,8], index: 1, kind: output, shape index: {}]
  // Predicated region
  $region2: #{tile.23} parent=0 // pred_check
    _
  $region3: #{tile.23} parent=0 // pred_check_branch
    %3 = sbr.rel (0) target = $region5
  $region4: #{tile.23} parent=0 // pred_region
    _
  $region5: #{tile.23} parent=0 // pred_fallthru
    _
  %v4 = vld [vmem:[%s0] ss:$0 sm:$0xff]
  %5 = vst [vmem:[%s1] sm:$0xff] %v4
  %s6 = scalar_lea.vmem %s1, 8
  %7 = vst [vmem:[%s6] sm:$0xff] %v4

// kernel: tile.24
$region0: #{tile.24}
  %s0 = inlined_call_operand.vmem [shape: f32[10,8], index: 0, kind: input, shape index: {}]
  %s1 = inlined_call_operand.vmem [shape: f32[1,80], index: 1, kind: output, shape index: {}]
  $region1: #{tile.24} parent=0
    #allocation0 [shape = 'u8[4096]{0}', space=vmem, size = 0x1000, scoped, tag = 'scoped mem for output reshape']
    %v2 = vld [vmem:[%s0] sm:$0x1]
    %vm3 = vcmask 64512
    %4 = vst.msk [vmem:[#allocation0] sm:$0x1] %vm3, %v2
    %s5 = scalar_lea.vmem %s0, 9
    %v6 = vld [vmem:[%s5] sm:$0x1]
    %7 = vrot.lane.b32.xlu0 %v6, 72
    %v8 = vpop.permute.xlu0 %7
    %vm9 = vcmask 654912
    %10 = vst.msk [vmem:[#allocation0] sm:$0x1] %vm9, %v8
    %s11 = scalar_lea.vmem %s0, 8
    %v12 = vld [vmem:[%s11] sm:$0x1]
    %13 = vrot.lane.b32.xlu0 %v12, 64
    %v14 = vpop.permute.xlu0 %13
    %vm15 = vcmask 589312
    %16 = vst.msk [vmem:[#allocation0] sm:$0x1] %vm15, %v14
    %s17 = scalar_lea.vmem %s0, 7
    %v18 = vld [vmem:[%s17] sm:$0x1]
    %19 = vrot.lane.b32.xlu0 %v18, 56
    %v20 = vpop.permute.xlu0 %19
    %vm21 = vcmask 523712
    %22 = vst.msk [vmem:[#allocation0] sm:$0x1] %vm21, %v20
    %s23 = scalar_lea.vmem %s0, 6
    %v24 = vld [vmem:[%s23] sm:$0x1]
    %25 = vrot.lane.b32.xlu0 %v24, 48
    %v26 = vpop.permute.xlu0 %25
    %vm27 = vcmask 458112
    %28 = vst.msk [vmem:[#allocation0] sm:$0x1] %vm27, %v26
    %s29 = scalar_lea.vmem %s0, 5
    %v30 = vld [vmem:[%s29] sm:$0x1]
    %31 = vrot.lane.b32.xlu0 %v30, 40
    %v32 = vpop.permute.xlu0 %31
    %vm33 = vcmask 392512
    %34 = vst.msk [vmem:[#allocation0] sm:$0x1] %vm33, %v32
    %s35 = scalar_lea.vmem %s0, 4
    %v36 = vld [vmem:[%s35] sm:$0x1]
    %37 = vrot.lane.b32.xlu0 %v36, 32
    %v38 = vpop.permute.xlu0 %37
    %vm39 = vcmask 326912
    %40 = vst.msk [vmem:[#allocation0] sm:$0x1] %vm39, %v38
    %s41 = scalar_lea.vmem %s0, 3
    %v42 = vld [vmem:[%s41] sm:$0x1]
    %43 = vrot.lane.b32.xlu0 %v42, 24
    %v44 = vpop.permute.xlu0 %43
    %vm45 = vcmask 261312
    %46 = vst.msk [vmem:[#allocation0] sm:$0x1] %vm45, %v44
    %s47 = scalar_lea.vmem %s0, 2
    %v48 = vld [vmem:[%s47] sm:$0x1]
    %49 = vrot.lane.b32.xlu0 %v48, 16
    %v50 = vpop.permute.xlu0 %49
    %vm51 = vcmask 195712
    %52 = vst.msk [vmem:[#allocation0] sm:$0x1] %vm51, %v50
    %s53 = scalar_lea.vmem %s0, 1
    %v54 = vld [vmem:[%s53] sm:$0x1]
    %55 = vrot.lane.b32.xlu0 %v54, 8
    %v56 = vpop.permute.xlu0 %55
    %vm57 = vcmask 130112
    %58 = vst.msk [vmem:[#allocation0] sm:$0x1] %vm57, %v56
    %s60 = sshllo.u32 0, 1
    %v62 = vld [vmem:[#allocation0] sm:%s60]
    %s63 = sshllo.u32 0, 1
    %64 = vst [vmem:[%s1] sm:%s63] %v62

// kernel: tile.33
$region0: #{tile.33}
  #allocation0 [shape = 's32[1]{0}', space=sflag, size = 0x4, scoped, tag = 'scoped memory for tile.33']
  %s0 = inlined_call_operand.vmem [shape: f32[8], index: 0, kind: input, shape index: {}]
  %s1 = inlined_call_operand.vmem [shape: f32[14,8], index: 1, kind: output, shape index: {}]
  // Predicated region
  $region2: #{tile.33} parent=0 // pred_check
    _
  $region3: #{tile.33} parent=0 // pred_check_branch
    %3 = sbr.rel (0) target = $region5
  $region4: #{tile.33} parent=0 // pred_region
    _
  $region5: #{tile.33} parent=0 // pred_fallthru
    _
  %v4 = vld [vmem:[%s0] ss:$0 sm:$0xff]
  %5 = vst [vmem:[%s1] sm:$0xff] %v4
  %s6 = scalar_lea.vmem %s1, 8
  %7 = vst [vmem:[%s6] sm:$0xff] %v4

// kernel: tile.34
$region0: #{tile.34}
  %s0 = inlined_call_operand.vmem [shape: f32[14,8], index: 0, kind: input, shape index: {}]
  %s1 = inlined_call_operand.vmem [shape: f32[1,112], index: 1, kind: output, shape index: {}]
  $region1: #{tile.34} parent=0
    #allocation0 [shape = 'u8[4096]{0}', space=vmem, size = 0x1000, scoped, tag = 'scoped mem for output reshape']
    %v2 = vld [vmem:[%s0] sm:$0x1]
    %vm3 = vcmask 64512
    %4 = vst.msk [vmem:[#allocation0] sm:$0x1] %vm3, %v2
    %s5 = scalar_lea.vmem %s0, 13
    %v6 = vld [vmem:[%s5] sm:$0x1]
    %7 = vrot.lane.b32.xlu0 %v6, 104
    %v8 = vpop.permute.xlu0 %7
    %vm9 = vcmask 917312
    %10 = vst.msk [vmem:[#allocation0] sm:$0x1] %vm9, %v8
    %s11 = scalar_lea.vmem %s0, 12
    %v12 = vld [vmem:[%s11] sm:$0x1]
    %13 = vrot.lane.b32.xlu0 %v12, 96
    %v14 = vpop.permute.xlu0 %13
    %vm15 = vcmask 851712
    %16 = vst.msk [vmem:[#allocation0] sm:$0x1] %vm15, %v14
    %s17 = scalar_lea.vmem %s0, 11
    %v18 = vld [vmem:[%s17] sm:$0x1]
    %19 = vrot.lane.b32.xlu0 %v18, 88
    %v20 = vpop.permute.xlu0 %19
    %vm21 = vcmask 786112
    %22 = vst.msk [vmem:[#allocation0] sm:$0x1] %vm21, %v20
    %s23 = scalar_lea.vmem %s0, 10
    %v24 = vld [vmem:[%s23] sm:$0x1]
    %25 = vrot.lane.b32.xlu0 %v24, 80
    %v26 = vpop.permute.xlu0 %25
    %vm27 = vcmask 720512
    %28 = vst.msk [vmem:[#allocation0] sm:$0x1] %vm27, %v26
    %s29 = scalar_lea.vmem %s0, 9
    %v30 = vld [vmem:[%s29] sm:$0x1]
    %31 = vrot.lane.b32.xlu0 %v30, 72
    %v32 = vpop.permute.xlu0 %31
    %vm33 = vcmask 654912
    %34 = vst.msk [vmem:[#allocation0] sm:$0x1] %vm33, %v32
    %s35 = scalar_lea.vmem %s0, 8
    %v36 = vld [vmem:[%s35] sm:$0x1]
    %37 = vrot.lane.b32.xlu0 %v36, 64
    %v38 = vpop.permute.xlu0 %37
    %vm39 = vcmask 589312
    %40 = vst.msk [vmem:[#allocation0] sm:$0x1] %vm39, %v38
    %s41 = scalar_lea.vmem %s0, 7
    %v42 = vld [vmem:[%s41] sm:$0x1]
    %43 = vrot.lane.b32.xlu0 %v42, 56
    %v44 = vpop.permute.xlu0 %43
    %vm45 = vcmask 523712
    %46 = vst.msk [vmem:[#allocation0] sm:$0x1] %vm45, %v44
    %s47 = scalar_lea.vmem %s0, 6
    %v48 = vld [vmem:[%s47] sm:$0x1]
    %49 = vrot.lane.b32.xlu0 %v48, 48
    %v50 = vpop.permute.xlu0 %49
    %vm51 = vcmask 458112
    %52 = vst.msk [vmem:[#allocation0] sm:$0x1] %vm51, %v50
    %s53 = scalar_lea.vmem %s0, 5
    %v54 = vld [vmem:[%s53] sm:$0x1]
    %55 = vrot.lane.b32.xlu0 %v54, 40
    %v56 = vpop.permute.xlu0 %55
    %vm57 = vcmask 392512
    %58 = vst.msk [vmem:[#allocation0] sm:$0x1] %vm57, %v56
    %s59 = scalar_lea.vmem %s0, 4
    %v60 = vld [vmem:[%s59] sm:$0x1]
    %61 = vrot.lane.b32.xlu0 %v60, 32
    %v62 = vpop.permute.xlu0 %61
    %vm63 = vcmask 326912
    %64 = vst.msk [vmem:[#allocation0] sm:$0x1] %vm63, %v62
    %s65 = scalar_lea.vmem %s0, 3
    %v66 = vld [vmem:[%s65] sm:$0x1]
    %67 = vrot.lane.b32.xlu0 %v66, 24
    %v68 = vpop.permute.xlu0 %67
    %vm69 = vcmask 261312
    %70 = vst.msk [vmem:[#allocation0] sm:$0x1] %vm69, %v68
    %s71 = scalar_lea.vmem %s0, 2
    %v72 = vld [vmem:[%s71] sm:$0x1]
    %73 = vrot.lane.b32.xlu0 %v72, 16
    %v74 = vpop.permute.xlu0 %73
    %vm75 = vcmask 195712
    %76 = vst.msk [vmem:[#allocation0] sm:$0x1] %vm75, %v74
    %s77 = scalar_lea.vmem %s0, 1
    %v78 = vld [vmem:[%s77] sm:$0x1]
    %79 = vrot.lane.b32.xlu0 %v78, 8
    %v80 = vpop.permute.xlu0 %79
    %vm81 = vcmask 130112
    %82 = vst.msk [vmem:[#allocation0] sm:$0x1] %vm81, %v80
    %s84 = sshllo.u32 0, 1
    %v86 = vld [vmem:[#allocation0] sm:%s84]
    %s87 = sshllo.u32 0, 1
    %88 = vst [vmem:[%s1] sm:%s87] %v86

// kernel: tile.28
$region0: #{tile.28}
  #allocation0 [shape = 's32[1]{0}', space=sflag, size = 0x4, scoped, tag = 'scoped memory for tile.28']
  %s0 = inlined_call_operand.vmem [shape: f32[16], index: 0, kind: input, shape index: {}]
  %s1 = inlined_call_operand.vmem [shape: f32[8,16], index: 1, kind: output, shape index: {}]
  // Predicated region
  $region2: #{tile.28} parent=0 // pred_check
    _
  $region3: #{tile.28} parent=0 // pred_check_branch
    %3 = sbr.rel (0) target = $region5
  $region4: #{tile.28} parent=0 // pred_region
    _
  $region5: #{tile.28} parent=0 // pred_fallthru
    _
  %v4 = vld [vmem:[%s0] ss:$0 sm:$0xff]
  %5 = vst [vmem:[%s1] sm:$0xff] %v4

// kernel: tile.29
$region0: #{tile.29}
  %s0 = inlined_call_operand.vmem [shape: f32[8,16], index: 0, kind: input, shape index: {}]
  %s1 = inlined_call_operand.vmem [shape: f32[1,128], index: 1, kind: output, shape index: {}]
  $region1: #{tile.29} parent=0
    #allocation0 [shape = 'u8[4096]{0}', space=vmem, size = 0x1000, scoped, tag = 'scoped mem for output reshape']
    %v2 = vld [vmem:[%s0] sm:$0x1]
    %vm3 = vcmask 130048
    %4 = vst.msk [vmem:[#allocation0] sm:$0x1] %vm3, %v2
    %s5 = scalar_lea.vmem %s0, 7
    %v6 = vld [vmem:[%s5] sm:$0x1]
    %7 = vrot.lane.b32.xlu0 %v6, 112
    %v8 = vpop.permute.xlu0 %7
    %vm9 = vcmask 1048448
    %10 = vst.msk [vmem:[#allocation0] sm:$0x1] %vm9, %v8
    %s11 = scalar_lea.vmem %s0, 6
    %v12 = vld [vmem:[%s11] sm:$0x1]
    %13 = vrot.lane.b32.xlu0 %v12, 96
    %v14 = vpop.permute.xlu0 %13
    %vm15 = vcmask 917248
    %16 = vst.msk [vmem:[#allocation0] sm:$0x1] %vm15, %v14
    %s17 = scalar_lea.vmem %s0, 5
    %v18 = vld [vmem:[%s17] sm:$0x1]
    %19 = vrot.lane.b32.xlu0 %v18, 80
    %v20 = vpop.permute.xlu0 %19
    %vm21 = vcmask 786048
    %22 = vst.msk [vmem:[#allocation0] sm:$0x1] %vm21, %v20
    %s23 = scalar_lea.vmem %s0, 4
    %v24 = vld [vmem:[%s23] sm:$0x1]
    %25 = vrot.lane.b32.xlu0 %v24, 64
    %v26 = vpop.permute.xlu0 %25
    %vm27 = vcmask 654848
    %28 = vst.msk [vmem:[#allocation0] sm:$0x1] %vm27, %v26
    %s29 = scalar_lea.vmem %s0, 3
    %v30 = vld [vmem:[%s29] sm:$0x1]
    %31 = vrot.lane.b32.xlu0 %v30, 48
    %v32 = vpop.permute.xlu0 %31
    %vm33 = vcmask 523648
    %34 = vst.msk [vmem:[#allocation0] sm:$0x1] %vm33, %v32
    %s35 = scalar_lea.vmem %s0, 2
    %v36 = vld [vmem:[%s35] sm:$0x1]
    %37 = vrot.lane.b32.xlu0 %v36, 32
    %v38 = vpop.permute.xlu0 %37
    %vm39 = vcmask 392448
    %40 = vst.msk [vmem:[#allocation0] sm:$0x1] %vm39, %v38
    %s41 = scalar_lea.vmem %s0, 1
    %v42 = vld [vmem:[%s41] sm:$0x1]
    %43 = vrot.lane.b32.xlu0 %v42, 16
    %v44 = vpop.permute.xlu0 %43
    %vm45 = vcmask 261248
    %46 = vst.msk [vmem:[#allocation0] sm:$0x1] %vm45, %v44
    %s48 = sshllo.u32 0, 1
    %v50 = vld [vmem:[#allocation0] sm:%s48]
    %s51 = sshllo.u32 0, 1
    %52 = vst [vmem:[%s1] sm:%s51] %v50

// kernel: net_forward.1
$region0: #{net_forward.1}
  #allocation0 [shape = 'u32[]', space=smem, size = 0x4, offset = 0x4, fixed_abs, tag = 'smem constant byte address 0x4 - core index']
  #allocation1 [shape = 'u32[144,128]{1,0:T(1,128)}', space=vmem, size = 0x12000, scoped, tag = 'internal scratch']
  #allocation2 [shape = 'f32[10,80]{1,0:T(8,128)}', space=vmem, size = 0x2000, scoped, tag = 'scratch operand']
  #allocation3 [shape = 'f32[8,128]{1,0:T(8,128)}', space=vmem, size = 0x1000, scoped, tag = 'scratch operand']
  #allocation4 [shape = 'f32[14,112]{1,0:T(8,128)}', space=vmem, size = 0x2000, scoped, tag = 'scratch operand']
  #allocation5 [shape = 'f32[12,192]{1,0:T(8,128)}', space=vmem, size = 0x4000, scoped, tag = 'scratch operand']
  %s0 = inlined_call_operand.vmem [shape: f32[2,12,36], index: 0, kind: input, shape index: {}]
  %s1 = inlined_call_operand.vmem [shape: f32[2,16,48], index: 1, kind: input, shape index: {}]
  %s2 = inlined_call_operand.vmem [shape: f32[9,30,80], index: 2, kind: input, shape index: {}]
  %s3 = inlined_call_operand.vmem [shape: f32[1,80], index: 3, kind: input, shape index: {}]
  %s4 = inlined_call_operand.vmem [shape: f32[9,64,128], index: 4, kind: input, shape index: {}]
  %s5 = inlined_call_operand.vmem [shape: f32[1,128], index: 5, kind: input, shape index: {}]
  %s6 = inlined_call_operand.vmem [shape: f32[9,42,112], index: 6, kind: input, shape index: {}]
  %s7 = inlined_call_operand.vmem [shape: f32[1,112], index: 7, kind: input, shape index: {}]
  %s8 = inlined_call_operand.vmem [shape: f32[9,96,192], index: 8, kind: input, shape index: {}]
  %s9 = inlined_call_operand.vmem [shape: f32[1,192], index: 9, kind: input, shape index: {}]
  %s10 = inlined_call_operand.vmem [shape: f32[2,8,128], index: 10, kind: output, shape index: {}]
  %s11 = sld [smem:[#allocation0]]
  $region73: #{net_forward.1} parent=0
    _
  %s13 = ssub.s32 1, %s11
  %s14 = scalar_select 0, %s13, %s11
  loop: start=0, step=1, limit=4
  $region2: #{net_forward.1} parent=0 // loop_pre_header
    _
  $region3: #{net_forward.1} parent=0 // loop_header
    %s16 = sphi 0, %s20
    %p17 = scmp.ge.s32.totalorder %s16, 4
    %s26 = sphi 0, %s28
    %s29 = sphi 0, %s26
    %s30 = sphi 0, %s29
    %s46 = sphi 0, %s30
    %s52 = sphi 0, %s54
    %s55 = sphi 0, %s52
    %s56 = sphi 0, %s55
    %s72 = sphi 0, %s56
    %s76 = sphi 0, %s76
    %s78 = sphi 0, %s76
    %s79 = sphi 0, %s78
    %s93 = sphi 0, %s79
    %s97 = sphi 0, %s97
    %s99 = sphi 0, %s97
    %s100 = sphi 0, %s99
    %s114 = sphi 0, %s100
    %s118 = sphi 0, %s118
    %s120 = sphi 0, %s118
    %s121 = sphi 0, %s120
    %s135 = sphi 0, %s121
    %s139 = sphi 0, %s139
    %s141 = sphi 0, %s139
    %s142 = sphi 0, %s141
    %s156 = sphi 0, %s142
    %s160 = sphi 0, %s160
    %s162 = sphi 0, %s160
    %s163 = sphi 0, %s162
    %s177 = sphi 0, %s163
    %s181 = sphi 0, %s181
    %s183 = sphi 0, %s181
    %s184 = sphi 0, %s183
    %s198 = sphi 0, %s184
    %s202 = sphi 0, %s202
    %s204 = sphi 0, %s202
    %s205 = sphi 0, %s204
    %s219 = sphi 0, %s205
    %s223 = sphi 0, %s223
    %s225 = sphi 0, %s223
    %s226 = sphi 0, %s225
    %s240 = sphi 0, %s226
    %s246 = sphi 0, %s248
    %s249 = sphi 0, %s246
    %s250 = sphi 0, %s249
    %s266 = sphi 0, %s250
  $region4: #{net_forward.1} parent=0 // loop_header_branch
    %19 = sbr.rel (%p17) target = $region8
  $region5: #{net_forward.1} parent=0 // loop_body
    %s21 = ssub.s32 %s16, 1
    %s22 = ssub.s32 %s16, 2
    %s23 = sadd.s32 %s16, 1
    %s24 = ssub.s32 %s16, %s23
    %p25 = scmp.eq.s32.totalorder %s24, 0
    %s27 = sadd.s32 %s26, 1
    %s28 = scalar_select %p25, %s26, %s27
    %p31 = pneg %p25
    %p32 = scmp.eq.s32.totalorder %s16, 1
    %p33 = por %p31, %p32
    %p34 = scmp.ne.s32.totalorder %s26, %s29
    %p35 = scmp.eq.s32.totalorder %s16, 0
    %p36 = por %p34, %p35
    %p37 = scmp.ne.s32.totalorder %s26, %s29
    %p38 = scmp.eq.s32.totalorder %s21, 1
    %p39 = por %p37, %p38
    %p40 = scmp.ne.s32.totalorder %s29, %s30
    %p41 = scmp.eq.s32.totalorder %s21, 0
    %p42 = por %p40, %p41
    %p43 = scmp.ne.s32.totalorder %s29, %s30
    %p44 = scmp.eq.s32.totalorder %s22, 1
    %p45 = por %p43, %p44
    %p47 = scmp.ne.s32.totalorder %s30, %s46
    %p48 = scmp.eq.s32.totalorder %s22, 0
    %p49 = por %p47, %p48
    %s50 = ssub.s32 %s16, %s23
    %p51 = scmp.eq.s32.totalorder %s50, 0
    %s53 = sadd.s32 %s52, 1
    %s54 = scalar_select %p51, %s52, %s53
    %p57 = pneg %p51
    %p58 = scmp.eq.s32.totalorder %s16, 1
    %p59 = por %p57, %p58
    %p60 = scmp.ne.s32.totalorder %s52, %s55
    %p61 = scmp.eq.s32.totalorder %s16, 0
    %p62 = por %p60, %p61
    %p63 = scmp.ne.s32.totalorder %s52, %s55
    %p64 = scmp.eq.s32.totalorder %s21, 1
    %p65 = por %p63, %p64
    %p66 = scmp.ne.s32.totalorder %s55, %s56
    %p67 = scmp.eq.s32.totalorder %s21, 0
    %p68 = por %p66, %p67
    %p69 = scmp.ne.s32.totalorder %s55, %s56
    %p70 = scmp.eq.s32.totalorder %s22, 1
    %p71 = por %p69, %p70
    %p73 = scmp.ne.s32.totalorder %s56, %s72
    %p74 = scmp.eq.s32.totalorder %s22, 0
    %p75 = por %p73, %p74
    %s77 = sadd.s32 %s76, 1
    %p80 = scmp.eq.s32.totalorder %s16, 1
    %p81 = scmp.ne.s32.totalorder %s76, %s78
    %p82 = scmp.eq.s32.totalorder %s16, 0
    %p83 = por %p81, %p82
    %p84 = scmp.ne.s32.totalorder %s76, %s78
    %p85 = scmp.eq.s32.totalorder %s21, 1
    %p86 = por %p84, %p85
    %p87 = scmp.ne.s32.totalorder %s78, %s79
    %p88 = scmp.eq.s32.totalorder %s21, 0
    %p89 = por %p87, %p88
    %p90 = scmp.ne.s32.totalorder %s78, %s79
    %p91 = scmp.eq.s32.totalorder %s22, 1
    %p92 = por %p90, %p91
    %p94 = scmp.ne.s32.totalorder %s79, %s93
    %p95 = scmp.eq.s32.totalorder %s22, 0
    %p96 = por %p94, %p95
    %s98 = sadd.s32 %s97, 1
    %p101 = scmp.eq.s32.totalorder %s16, 1
    %p102 = scmp.ne.s32.totalorder %s97, %s99
    %p103 = scmp.eq.s32.totalorder %s16, 0
    %p104 = por %p102, %p103
    %p105 = scmp.ne.s32.totalorder %s97, %s99
    %p106 = scmp.eq.s32.totalorder %s21, 1
    %p107 = por %p105, %p106
    %p108 = scmp.ne.s32.totalorder %s99, %s100
    %p109 = scmp.eq.s32.totalorder %s21, 0
    %p110 = por %p108, %p109
    %p111 = scmp.ne.s32.totalorder %s99, %s100
    %p112 = scmp.eq.s32.totalorder %s22, 1
    %p113 = por %p111, %p112
    %p115 = scmp.ne.s32.totalorder %s100, %s114
    %p116 = scmp.eq.s32.totalorder %s22, 0
    %p117 = por %p115, %p116
    %s119 = sadd.s32 %s118, 1
    %p122 = scmp.eq.s32.totalorder %s16, 1
    %p123 = scmp.ne.s32.totalorder %s118, %s120
    %p124 = scmp.eq.s32.totalorder %s16, 0
    %p125 = por %p123, %p124
    %p126 = scmp.ne.s32.totalorder %s118, %s120
    %p127 = scmp.eq.s32.totalorder %s21, 1
    %p128 = por %p126, %p127
    %p129 = scmp.ne.s32.totalorder %s120, %s121
    %p130 = scmp.eq.s32.totalorder %s21, 0
    %p131 = por %p129, %p130
    %p132 = scmp.ne.s32.totalorder %s120, %s121
    %p133 = scmp.eq.s32.totalorder %s22, 1
    %p134 = por %p132, %p133
    %p136 = scmp.ne.s32.totalorder %s121, %s135
    %p137 = scmp.eq.s32.totalorder %s22, 0
    %p138 = por %p136, %p137
    %s140 = sadd.s32 %s139, 1
    %p143 = scmp.eq.s32.totalorder %s16, 1
    %p144 = scmp.ne.s32.totalorder %s139, %s141
    %p145 = scmp.eq.s32.totalorder %s16, 0
    %p146 = por %p144, %p145
    %p147 = scmp.ne.s32.totalorder %s139, %s141
    %p148 = scmp.eq.s32.totalorder %s21, 1
    %p149 = por %p147, %p148
    %p150 = scmp.ne.s32.totalorder %s141, %s142
    %p151 = scmp.eq.s32.totalorder %s21, 0
    %p152 = por %p150, %p151
    %p153 = scmp.ne.s32.totalorder %s141, %s142
    %p154 = scmp.eq.s32.totalorder %s22, 1
    %p155 = por %p153, %p154
    %p157 = scmp.ne.s32.totalorder %s142, %s156
    %p158 = scmp.eq.s32.totalorder %s22, 0
    %p159 = por %p157, %p158
    %s161 = sadd.s32 %s160, 1
    %p164 = scmp.eq.s32.totalorder %s16, 1
    %p165 = scmp.ne.s32.totalorder %s160, %s162
    %p166 = scmp.eq.s32.totalorder %s16, 0
    %p167 = por %p165, %p166
    %p168 = scmp.ne.s32.totalorder %s160, %s162
    %p169 = scmp.eq.s32.totalorder %s21, 1
    %p170 = por %p168, %p169
    %p171 = scmp.ne.s32.totalorder %s162, %s163
    %p172 = scmp.eq.s32.totalorder %s21, 0
    %p173 = por %p171, %p172
    %p174 = scmp.ne.s32.totalorder %s162, %s163
    %p175 = scmp.eq.s32.totalorder %s22, 1
    %p176 = por %p174, %p175
    %p178 = scmp.ne.s32.totalorder %s163, %s177
    %p179 = scmp.eq.s32.totalorder %s22, 0
    %p180 = por %p178, %p179
    %s182 = sadd.s32 %s181, 1
    %p185 = scmp.eq.s32.totalorder %s16, 1
    %p186 = scmp.ne.s32.totalorder %s181, %s183
    %p187 = scmp.eq.s32.totalorder %s16, 0
    %p188 = por %p186, %p187
    %p189 = scmp.ne.s32.totalorder %s181, %s183
    %p190 = scmp.eq.s32.totalorder %s21, 1
    %p191 = por %p189, %p190
    %p192 = scmp.ne.s32.totalorder %s183, %s184
    %p193 = scmp.eq.s32.totalorder %s21, 0
    %p194 = por %p192, %p193
    %p195 = scmp.ne.s32.totalorder %s183, %s184
    %p196 = scmp.eq.s32.totalorder %s22, 1
    %p197 = por %p195, %p196
    %p199 = scmp.ne.s32.totalorder %s184, %s198
    %p200 = scmp.eq.s32.totalorder %s22, 0
    %p201 = por %p199, %p200
    %s203 = sadd.s32 %s202, 1
    %p206 = scmp.eq.s32.totalorder %s16, 1
    %p207 = scmp.ne.s32.totalorder %s202, %s204
    %p208 = scmp.eq.s32.totalorder %s16, 0
    %p209 = por %p207, %p208
    %p210 = scmp.ne.s32.totalorder %s202, %s204
    %p211 = scmp.eq.s32.totalorder %s21, 1
    %p212 = por %p210, %p211
    %p213 = scmp.ne.s32.totalorder %s204, %s205
    %p214 = scmp.eq.s32.totalorder %s21, 0
    %p215 = por %p213, %p214
    %p216 = scmp.ne.s32.totalorder %s204, %s205
    %p217 = scmp.eq.s32.totalorder %s22, 1
    %p218 = por %p216, %p217
    %p220 = scmp.ne.s32.totalorder %s205, %s219
    %p221 = scmp.eq.s32.totalorder %s22, 0
    %p222 = por %p220, %p221
    %s224 = sadd.s32 %s223, 1
    %p227 = scmp.eq.s32.totalorder %s16, 1
    %p228 = scmp.ne.s32.totalorder %s223, %s225
    %p229 = scmp.eq.s32.totalorder %s16, 0
    %p230 = por %p228, %p229
    %p231 = scmp.ne.s32.totalorder %s223, %s225
    %p232 = scmp.eq.s32.totalorder %s21, 1
    %p233 = por %p231, %p232
    %p234 = scmp.ne.s32.totalorder %s225, %s226
    %p235 = scmp.eq.s32.totalorder %s21, 0
    %p236 = por %p234, %p235
    %p237 = scmp.ne.s32.totalorder %s225, %s226
    %p238 = scmp.eq.s32.totalorder %s22, 1
    %p239 = por %p237, %p238
    %p241 = scmp.ne.s32.totalorder %s226, %s240
    %p242 = scmp.eq.s32.totalorder %s22, 0
    %p243 = por %p241, %p242
    %s244 = ssub.s32 %s16, %s23
    %p245 = scmp.eq.s32.totalorder %s244, 0
    %s247 = sadd.s32 %s246, 1
    %s248 = scalar_select %p245, %s246, %s247
    %p251 = pneg %p245
    %p252 = scmp.eq.s32.totalorder %s16, 1
    %p253 = por %p251, %p252
    %p254 = scmp.ne.s32.totalorder %s246, %s249
    %p255 = scmp.eq.s32.totalorder %s16, 0
    %p256 = por %p254, %p255
    %p257 = scmp.ne.s32.totalorder %s246, %s249
    %p258 = scmp.eq.s32.totalorder %s21, 1
    %p259 = por %p257, %p258
    %p260 = scmp.ne.s32.totalorder %s249, %s250
    %p261 = scmp.eq.s32.totalorder %s21, 0
    %p262 = por %p260, %p261
    %p263 = scmp.ne.s32.totalorder %s249, %s250
    %p264 = scmp.eq.s32.totalorder %s22, 1
    %p265 = por %p263, %p264
    %p267 = scmp.ne.s32.totalorder %s250, %s266
    %p268 = scmp.eq.s32.totalorder %s22, 0
    %p269 = por %p267, %p268
    %p270 = scmp.le.s32.totalorder 1, %s16
    %p271 = scmp.lt.s32.totalorder %s16, 3
    %p272 = pnand %p270, %p271
    %p273 = pneg %p272
    // Predicated region
    $region9: #{net_forward.1} parent=5 // pred_check
      _
    $region10: #{net_forward.1} parent=5 // pred_check_branch
      %275 = sbr.rel (%p272) target = $region12
    $region11: #{net_forward.1} parent=5 // pred_region
      %s276 = ssub.s32 %s16, 1
      // Predicated region
      $region13: #{net_forward.1} parent=11 // pred_check
        %p277 = pneg %p89
      $region14: #{net_forward.1} parent=11 // pred_check_branch
        %279 = sbr.rel (%p277) target = $region16
      $region15: #{net_forward.1} parent=11 // pred_region
        _
      $region16: #{net_forward.1} parent=11 // pred_fallthru
        _
      // Predicated region
      $region17: #{net_forward.1} parent=11 // pred_check
        %p280 = pneg %p110
      $region18: #{net_forward.1} parent=11 // pred_check_branch
        %282 = sbr.rel (%p280) target = $region20
      $region19: #{net_forward.1} parent=11 // pred_region
        _
      $region20: #{net_forward.1} parent=11 // pred_fallthru
        _
      // Predicated region
      $region21: #{net_forward.1} parent=11 // pred_check
        %p283 = pneg %p131
      $region22: #{net_forward.1} parent=11 // pred_check_branch
        %285 = sbr.rel (%p283) target = $region24
      $region23: #{net_forward.1} parent=11 // pred_region
        _
      $region24: #{net_forward.1} parent=11 // pred_fallthru
        _
      // Predicated region
      $region25: #{net_forward.1} parent=11 // pred_check
        %p286 = pneg %p152
      $region26: #{net_forward.1} parent=11 // pred_check_branch
        %288 = sbr.rel (%p286) target = $region28
      $region27: #{net_forward.1} parent=11 // pred_region
        _
      $region28: #{net_forward.1} parent=11 // pred_fallthru
        _
      // Predicated region
      $region29: #{net_forward.1} parent=11 // pred_check
        %p289 = pneg %p173
      $region30: #{net_forward.1} parent=11 // pred_check_branch
        %291 = sbr.rel (%p289) target = $region32
      $region31: #{net_forward.1} parent=11 // pred_region
        _
      $region32: #{net_forward.1} parent=11 // pred_fallthru
        _
      // Predicated region
      $region33: #{net_forward.1} parent=11 // pred_check
        %p292 = pneg %p194
      $region34: #{net_forward.1} parent=11 // pred_check_branch
        %294 = sbr.rel (%p292) target = $region36
      $region35: #{net_forward.1} parent=11 // pred_region
        _
      $region36: #{net_forward.1} parent=11 // pred_fallthru
        _
      // Predicated region
      $region37: #{net_forward.1} parent=11 // pred_check
        %p295 = pneg %p215
      $region38: #{net_forward.1} parent=11 // pred_check_branch
        %297 = sbr.rel (%p295) target = $region40
      $region39: #{net_forward.1} parent=11 // pred_region
        _
      $region40: #{net_forward.1} parent=11 // pred_fallthru
        _
      // Predicated region
      $region41: #{net_forward.1} parent=11 // pred_check
        %p298 = pneg %p236
      $region42: #{net_forward.1} parent=11 // pred_check_branch
        %300 = sbr.rel (%p298) target = $region44
      $region43: #{net_forward.1} parent=11 // pred_region
        _
      $region44: #{net_forward.1} parent=11 // pred_fallthru
        _
    $region12: #{net_forward.1} parent=5 // pred_fallthru
      _
    %p301 = scmp.lt.s32.totalorder %s16, 2
    // Predicated region
    $region45: #{net_forward.1} parent=5 // pred_check
      %p302 = pneg %p301
    $region46: #{net_forward.1} parent=5 // pred_check_branch
      %304 = sbr.rel (%p302) target = $region48
    $region47: #{net_forward.1} parent=5 // pred_region
      // Predicated region
      $region49: #{net_forward.1} parent=47 // pred_check
        %p305 = pneg %p36
      $region50: #{net_forward.1} parent=47 // pred_check_branch
        %307 = sbr.rel (%p305) target = $region52
      $region51: #{net_forward.1} parent=47 // pred_region
        %p308 = scmp.lt.s32.totalorder %s16, 1
        %s309 = scalar_select %p308, %s16, 1
        %s310 = smul.addr %s309, 2
        %s311 = smul.addr %s310, 8
        %s312 = scalar_lea.vmem %s0, %s311
      $region52: #{net_forward.1} parent=47 // pred_fallthru
        _
      // Predicated region
      $region53: #{net_forward.1} parent=47 // pred_check
        %p313 = pneg %p62
      $region54: #{net_forward.1} parent=47 // pred_check_branch
        %315 = sbr.rel (%p313) target = $region56
      $region55: #{net_forward.1} parent=47 // pred_region
        %p316 = scmp.lt.s32.totalorder %s16, 1
        %s317 = scalar_select %p316, %s16, 1
        %s318 = smul.addr %s317, 2
        %s319 = smul.addr %s318, 8
        %s320 = scalar_lea.vmem %s1, %s319
      $region56: #{net_forward.1} parent=47 // pred_fallthru
        _
    $region48: #{net_forward.1} parent=5 // pred_fallthru
      _
    %p321 = scmp.le.s32.totalorder 1, %s16
    %p322 = scmp.lt.s32.totalorder %s16, 3
    %p323 = pnand %p321, %p322
    %p324 = pneg %p323
    // Predicated region
    $region57: #{net_forward.1} parent=5 // pred_check
      _
    $region58: #{net_forward.1} parent=5 // pred_check_branch
      %326 = sbr.rel (%p323) target = $region60
    $region59: #{net_forward.1} parent=5 // pred_region
      %s327 = ssub.s32 %s16, 1
      %p328 = scmp.lt.s32.totalorder %s21, 1
      %s329 = scalar_select %p328, %s21, 1
      %s330 = smul.addr %s329, 2
      %s331 = smul.addr %s330, 8
      %s332 = scalar_lea.vmem %s0, %s331
      %p333 = pneg %p42
      %p334 = pneg %p39
      %p335 = scmp.lt.s32.totalorder %s21, 1
      %s336 = scalar_select %p335, %s21, 1
      %s337 = smul.addr %s336, 2
      %s338 = smul.addr %s337, 8
      %s339 = scalar_lea.vmem %s1, %s338
      %p340 = pneg %p68
      %p341 = pneg %p65
      %p342 = pneg %p89
      %p343 = pneg %p86
      %p344 = pneg %p110
      %p345 = pneg %p107
      %p346 = pneg %p131
      %p347 = pneg %p128
      %p348 = pneg %p152
      %p349 = pneg %p149
      %p350 = pneg %p173
      %p351 = pneg %p170
      %p352 = pneg %p194
      %p353 = pneg %p191
      %p354 = pneg %p215
      %p355 = pneg %p212
      %p356 = pneg %p236
      %p357 = pneg %p233
      %p358 = pneg %p262
      %p359 = pneg %p259
      %p360 = scmp.lt.s32.totalorder %s21, 1
      %s361 = scalar_select %p360, %s21, 1
      %s362 = smul.addr %s361, 8
      %s363 = scalar_lea.vmem %s10, %s362
      %p364 = scmp.lt.s32.totalorder %s21, 1
      %s365 = scalar_select %p364, %s21, 1
      %s366 = smul.addr %s365, 2
      %s367 = smul.addr %s366, 8
      %s368 = scalar_lea.vmem %s0, %s367
      %p369 = scmp.lt.s32.totalorder %s21, 1
      %s370 = scalar_select %p369, %s21, 1
      %s371 = smul.addr %s370, 2
      %s372 = smul.addr %s371, 8
      %s373 = scalar_lea.vmem %s1, %s372
      %p374 = scmp.lt.s32.totalorder %s21, 1
      %s375 = scalar_select %p374, %s21, 1
      %s376 = smul.addr %s375, 8
      %s377 = scalar_lea.vmem %s10, %s376
      %v378 = vld [vmem:[%s368] sm:$0xff]
      %v379 = vld [vmem:[%s368 + $0x8] sm:$0x3]
      %v380 = vld [vmem:[%s2] sm:$0xff]
      %v381 = vld [vmem:[%s2 + $0x8] sm:$0xff]
      %v382 = vld [vmem:[%s2 + $0x10] sm:$0xff]
      %v383 = vld [vmem:[%s2 + $0x18] sm:$0x3f]
      %s384 = scalar_lea.vmem %s2, 32
      %v385 = vld [vmem:[%s384] sm:$0xff]
      %v386 = vld [vmem:[%s384 + $0x8] sm:$0xff]
      %v387 = vld [vmem:[%s384 + $0x10] sm:$0xff]
      %v388 = vld [vmem:[%s384 + $0x18] sm:$0x3f]
      %391 = vrot.lane.b32.xlu0 %v378, 125
      %v392 = vpop.permute.xlu0 %391
      %393 = vrot.lane.b32.xlu0 %v379, 125
      %v394 = vpop.permute.xlu0 %393
      %vm395 = vcmask 244736
      %v396 = vsel %vm395, %v392, 0
      %v398 = vsel %vm395, %v394, 0
      %vm400 = vcmask 1045504
      %v402 = vsel %vm400, %v388, 0
      %404 = vmatprep.subr.mxu0 0.0
      %405 = vmatpush1.msra.mxu0 %v385
      %406 = vmatprep.subr.mxu0 0.0
      %407 = vmatpush1.msra.mxu0 %v386
      %408 = vmatprep.subr.mxu0 0.0
      %409 = vmatpush1.msra.mxu0 %v387
      %410 = vmatprep.subr.mxu0 0.0
      %411 = vmatpush1.msra.mxu0 %v402
      %412 = vmatprep.subr.mxu0 0.0
      %413 = vmatpush1.msra.mxu0 0.0
      %414 = vmatprep.subr.mxu0 0.0
      %415 = vmatpush1.msra.mxu0 0.0
      %416 = vmatprep.subr.mxu0 0.0
      %417 = vmatpush1.msra.mxu0 0.0
      %418 = vmatprep.subr.mxu0 0.0
      %419 = vmatpush1.msra.mxu0 0.0
      %420 = vmatprep.subr.mxu0 0.0
      %421 = vmatpush1.msra.mxu0 0.0
      %422 = vmatprep.subr.mxu0 0.0
      %423 = vmatpush1.msra.mxu0 0.0
      %424 = vmatprep.subr.mxu0 0.0
      %425 = vmatpush1.msra.mxu0 0.0
      %426 = vmatprep.subr.mxu0 0.0
      %427 = vmatpush1.msra.mxu0 0.0
      %428 = vmatprep.subr.mxu0 0.0
      %429 = vmatpush1.msra.mxu0 0.0
      %430 = vmatprep.subr.mxu0 0.0
      %431 = vmatpush1.msra.mxu0 0.0
      %432 = vmatprep.subr.mxu0 0.0
      %433 = vmatpush1.msra.mxu0 0.0
      %434 = vmatprep.subr.mxu0 0.0
      %435 = vmatpush1.msra.mxu0 0.0
      %436 = vmatprep.subr.mxu0 0.0
      %437 = vmatpush1.msra.mxu0 0.0
      %438 = vmatprep.subr.mxu0 0.0
      %439 = vmatpush1.msra.mxu0 0.0
      %440 = vmatprep.subr.mxu0 0.0
      %441 = vmatpush1.msra.mxu0 0.0
      %442 = vmatprep.subr.mxu0 0.0
      %443 = vmatpush1.msra.mxu0 0.0
      %444 = vmatprep.subr.mxu0 0.0
      %445 = vmatpush1.msra.mxu0 0.0
      %446 = vmatprep.subr.mxu0 0.0
      %447 = vmatpush1.msra.mxu0 0.0
      %448 = vmatprep.subr.mxu0 0.0
      %449 = vmatpush1.msra.mxu0 0.0
      %450 = vmatprep.subr.mxu0 0.0
      %451 = vmatpush1.msra.mxu0 0.0
      %452 = vmatprep.subr.mxu0 0.0
      %453 = vmatpush1.msra.mxu0 0.0
      %454 = vmatprep.subr.mxu0 0.0
      %455 = vmatpush1.msra.mxu0 0.0
      %456 = vmatprep.subr.mxu0 0.0
      %457 = vmatpush1.msra.mxu0 0.0
      %458 = vmatprep.subr.mxu0 0.0
      %459 = vmatpush1.msra.mxu0 0.0
      %460 = vmatprep.subr.mxu0 0.0
      %461 = vmatpush1.msra.mxu0 0.0
      %462 = vmatprep.subr.mxu0 0.0
      %463 = vmatpush1.msra.mxu0 0.0
      %464 = vmatprep.subr.mxu0 0.0
      %465 = vmatpush1.msra.mxu0 0.0
      %466 = vmatprep.subr.mxu0 0.0
      %467 = vmatpush1.msra.mxu0 0.0
      %468 = vmatprep.mubr.f32.mxu0 0.0
      %469 = vmatmul.mubr.f32.gmra.mrb[0].mxu0 %v396
      %v470 = vpop.f32.mrb[0].mxu0
      %v471 = vadd.f32 0.0, %v470
      %v472 = vpop.f32.mrb[0].mxu0
      %473 = vmatprep.mubr.f32.mxu0 0.0
      %474 = vmatmul.mubr.f32.gmra.mrb[0].mxu0 %v398
      %v475 = vpop.f32.mrb[0].mxu0
      %v476 = vadd.f32 0.0, %v475
      %v477 = vpop.f32.mrb[0].mxu0
      %478 = vdwg.mxu0
      %v479 = vsel %vm395, %v378, 0
      %v481 = vsel %vm395, %v379, 0
      %v484 = vsel %vm400, %v383, 0
      %486 = vmatprep.subr.mxu0 0.0
      %487 = vmatpush1.msra.mxu0 %v380
      %488 = vmatprep.subr.mxu0 0.0
      %489 = vmatpush1.msra.mxu0 %v381
      %490 = vmatprep.subr.mxu0 0.0
      %491 = vmatpush1.msra.mxu0 %v382
      %492 = vmatprep.subr.mxu0 0.0
      %493 = vmatpush1.msra.mxu0 %v484
      %494 = vmatprep.subr.mxu0 0.0
      %495 = vmatpush1.msra.mxu0 0.0
      %496 = vmatprep.subr.mxu0 0.0
      %497 = vmatpush1.msra.mxu0 0.0
      %498 = vmatprep.subr.mxu0 0.0
      %499 = vmatpush1.msra.mxu0 0.0
      %500 = vmatprep.subr.mxu0 0.0
      %501 = vmatpush1.msra.mxu0 0.0
      %502 = vmatprep.subr.mxu0 0.0
      %503 = vmatpush1.msra.mxu0 0.0
      %504 = vmatprep.subr.mxu0 0.0
      %505 = vmatpush1.msra.mxu0 0.0
      %506 = vmatprep.subr.mxu0 0.0
      %507 = vmatpush1.msra.mxu0 0.0
      %508 = vmatprep.subr.mxu0 0.0
      %509 = vmatpush1.msra.mxu0 0.0
      %510 = vmatprep.subr.mxu0 0.0
      %511 = vmatpush1.msra.mxu0 0.0
      %512 = vmatprep.subr.mxu0 0.0
      %513 = vmatpush1.msra.mxu0 0.0
      %514 = vmatprep.subr.mxu0 0.0
      %515 = vmatpush1.msra.mxu0 0.0
      %516 = vmatprep.subr.mxu0 0.0
      %517 = vmatpush1.msra.mxu0 0.0
      %518 = vmatprep.subr.mxu0 0.0
      %519 = vmatpush1.msra.mxu0 0.0
      %520 = vmatprep.subr.mxu0 0.0
      %521 = vmatpush1.msra.mxu0 0.0
      %522 = vmatprep.subr.mxu0 0.0
      %523 = vmatpush1.msra.mxu0 0.0
      %524 = vmatprep.subr.mxu0 0.0
      %525 = vmatpush1.msra.mxu0 0.0
      %526 = vmatprep.subr.mxu0 0.0
      %527 = vmatpush1.msra.mxu0 0.0
      %528 = vmatprep.subr.mxu0 0.0
      %529 = vmatpush1.msra.mxu0 0.0
      %530 = vmatprep.subr.mxu0 0.0
      %531 = vmatpush1.msra.mxu0 0.0
      %532 = vmatprep.subr.mxu0 0.0
      %533 = vmatpush1.msra.mxu0 0.0
      %534 = vmatprep.subr.mxu0 0.0
      %535 = vmatpush1.msra.mxu0 0.0
      %536 = vmatprep.subr.mxu0 0.0
      %537 = vmatpush1.msra.mxu0 0.0
      %538 = vmatprep.subr.mxu0 0.0
      %539 = vmatpush1.msra.mxu0 0.0
      %540 = vmatprep.subr.mxu0 0.0
      %541 = vmatpush1.msra.mxu0 0.0
      %542 = vmatprep.subr.mxu0 0.0
      %543 = vmatpush1.msra.mxu0 0.0
      %544 = vmatprep.subr.mxu0 0.0
      %545 = vmatpush1.msra.mxu0 0.0
      %546 = vmatprep.subr.mxu0 0.0
      %547 = vmatpush1.msra.mxu0 0.0
      %548 = vmatprep.subr.mxu0 0.0
      %549 = vmatpush1.msra.mxu0 0.0
      %550 = vmatprep.mubr.f32.mxu0 0.0
      %551 = vmatmul.mubr.f32.gmra.mrb[0].mxu0 %v479
      %v552 = vpop.f32.mrb[0].mxu0
      %v553 = vadd.f32 %v471, %v552
      %v554 = vpop.f32.mrb[0].mxu0
      %555 = vmatprep.mubr.f32.mxu0 0.0
      %556 = vmatmul.mubr.f32.gmra.mrb[0].mxu0 %v481
      %v557 = vpop.f32.mrb[0].mxu0
      %v558 = vadd.f32 %v476, %v557
      %v559 = vpop.f32.mrb[0].mxu0
      %560 = vdwg.mxu0
      %s561 = scalar_lea.vmem %s2, 64
      %v562 = vld [vmem:[%s561] sm:$0xff]
      %v563 = vld [vmem:[%s561 + $0x8] sm:$0xff]
      %v564 = vld [vmem:[%s561 + $0x10] sm:$0xff]
      %v565 = vld [vmem:[%s561 + $0x18] sm:$0x3f]
      %566 = vrot.lane.b32.xlu0 %v378, 122
      %v567 = vpop.permute.xlu0 %566
      %568 = vrot.lane.b32.xlu0 %v379, 122
      %v569 = vpop.permute.xlu0 %568
      %v570 = vsel %vm395, %v567, 0
      %v572 = vsel %vm395, %v569, 0
      %v575 = vsel %vm400, %v565, 0
      %577 = vmatprep.subr.mxu0 0.0
      %578 = vmatpush1.msra.mxu0 %v562
      %579 = vmatprep.subr.mxu0 0.0
      %580 = vmatpush1.msra.mxu0 %v563
      %581 = vmatprep.subr.mxu0 0.0
      %582 = vmatpush1.msra.mxu0 %v564
      %583 = vmatprep.subr.mxu0 0.0
      %584 = vmatpush1.msra.mxu0 %v575
      %585 = vmatprep.subr.mxu0 0.0
      %586 = vmatpush1.msra.mxu0 0.0
      %587 = vmatprep.subr.mxu0 0.0
      %588 = vmatpush1.msra.mxu0 0.0
      %589 = vmatprep.subr.mxu0 0.0
      %590 = vmatpush1.msra.mxu0 0.0
      %591 = vmatprep.subr.mxu0 0.0
      %592 = vmatpush1.msra.mxu0 0.0
      %593 = vmatprep.subr.mxu0 0.0
      %594 = vmatpush1.msra.mxu0 0.0
      %595 = vmatprep.subr.mxu0 0.0
      %596 = vmatpush1.msra.mxu0 0.0
      %597 = vmatprep.subr.mxu0 0.0
      %598 = vmatpush1.msra.mxu0 0.0
      %599 = vmatprep.subr.mxu0 0.0
      %600 = vmatpush1.msra.mxu0 0.0
      %601 = vmatprep.subr.mxu0 0.0
      %602 = vmatpush1.msra.mxu0 0.0
      %603 = vmatprep.subr.mxu0 0.0
      %604 = vmatpush1.msra.mxu0 0.0
      %605 = vmatprep.subr.mxu0 0.0
      %606 = vmatpush1.msra.mxu0 0.0
      %607 = vmatprep.subr.mxu0 0.0
      %608 = vmatpush1.msra.mxu0 0.0
      %609 = vmatprep.subr.mxu0 0.0
      %610 = vmatpush1.msra.mxu0 0.0
      %611 = vmatprep.subr.mxu0 0.0
      %612 = vmatpush1.msra.mxu0 0.0
      %613 = vmatprep.subr.mxu0 0.0
      %614 = vmatpush1.msra.mxu0 0.0
      %615 = vmatprep.subr.mxu0 0.0
      %616 = vmatpush1.msra.mxu0 0.0
      %617 = vmatprep.subr.mxu0 0.0
      %618 = vmatpush1.msra.mxu0 0.0
      %619 = vmatprep.subr.mxu0 0.0
      %620 = vmatpush1.msra.mxu0 0.0
      %621 = vmatprep.subr.mxu0 0.0
      %622 = vmatpush1.msra.mxu0 0.0
      %623 = vmatprep.subr.mxu0 0.0
      %624 = vmatpush1.msra.mxu0 0.0
      %625 = vmatprep.subr.mxu0 0.0
      %626 = vmatpush1.msra.mxu0 0.0
      %627 = vmatprep.subr.mxu0 0.0
      %628 = vmatpush1.msra.mxu0 0.0
      %629 = vmatprep.subr.mxu0 0.0
      %630 = vmatpush1.msra.mxu0 0.0
      %631 = vmatprep.subr.mxu0 0.0
      %632 = vmatpush1.msra.mxu0 0.0
      %633 = vmatprep.subr.mxu0 0.0
      %634 = vmatpush1.msra.mxu0 0.0
      %635 = vmatprep.subr.mxu0 0.0
      %636 = vmatpush1.msra.mxu0 0.0
      %637 = vmatprep.subr.mxu0 0.0
      %638 = vmatpush1.msra.mxu0 0.0
      %639 = vmatprep.subr.mxu0 0.0
      %640 = vmatpush1.msra.mxu0 0.0
      %641 = vmatprep.mubr.f32.mxu0 0.0
      %642 = vmatmul.mubr.f32.gmra.mrb[0].mxu0 %v570
      %v643 = vpop.f32.mrb[0].mxu0
      %v644 = vadd.f32 0.0, %v643
      %v645 = vpop.f32.mrb[0].mxu0
      %646 = vmatprep.mubr.f32.mxu0 0.0
      %647 = vmatmul.mubr.f32.gmra.mrb[0].mxu0 %v572
      %v648 = vpop.f32.mrb[0].mxu0
      %v649 = vadd.f32 0.0, %v648
      %v650 = vpop.f32.mrb[0].mxu0
      %651 = vdwg.mxu0
      %v652 = vadd.f32 %v553, %v644
      %v653 = vadd.f32 %v558, %v649
      %v654 = vld [vmem:[%s368 + $0x1] sm:$0xff]
      %v655 = vld [vmem:[%s368 + $0x9] sm:$0x3]
      %s656 = scalar_lea.vmem %s2, 96
      %v657 = vld [vmem:[%s656] sm:$0xff]
      %v658 = vld [vmem:[%s656 + $0x8] sm:$0xff]
      %v659 = vld [vmem:[%s656 + $0x10] sm:$0xff]
      %v660 = vld [vmem:[%s656 + $0x18] sm:$0x3f]
      %v662 = vsel %vm395, %v654, 0
      %v665 = vsel %vm395, %v655, 0
      %v668 = vsel %vm400, %v660, 0
      %670 = vmatprep.subr.mxu0 0.0
      %671 = vmatpush1.msra.mxu0 %v657
      %672 = vmatprep.subr.mxu0 0.0
      %673 = vmatpush1.msra.mxu0 %v658
      %674 = vmatprep.subr.mxu0 0.0
      %675 = vmatpush1.msra.mxu0 %v659
      %676 = vmatprep.subr.mxu0 0.0
      %677 = vmatpush1.msra.mxu0 %v668
      %678 = vmatprep.subr.mxu0 0.0
      %679 = vmatpush1.msra.mxu0 0.0
      %680 = vmatprep.subr.mxu0 0.0
      %681 = vmatpush1.msra.mxu0 0.0
      %682 = vmatprep.subr.mxu0 0.0
      %683 = vmatpush1.msra.mxu0 0.0
      %684 = vmatprep.subr.mxu0 0.0
      %685 = vmatpush1.msra.mxu0 0.0
      %686 = vmatprep.subr.mxu0 0.0
      %687 = vmatpush1.msra.mxu0 0.0
      %688 = vmatprep.subr.mxu0 0.0
      %689 = vmatpush1.msra.mxu0 0.0
      %690 = vmatprep.subr.mxu0 0.0
      %691 = vmatpush1.msra.mxu0 0.0
      %692 = vmatprep.subr.mxu0 0.0
      %693 = vmatpush1.msra.mxu0 0.0
      %694 = vmatprep.subr.mxu0 0.0
      %695 = vmatpush1.msra.mxu0 0.0
      %696 = vmatprep.subr.mxu0 0.0
      %697 = vmatpush1.msra.mxu0 0.0
      %698 = vmatprep.subr.mxu0 0.0
      %699 = vmatpush1.msra.mxu0 0.0
      %700 = vmatprep.subr.mxu0 0.0
      %701 = vmatpush1.msra.mxu0 0.0
      %702 = vmatprep.subr.mxu0 0.0
      %703 = vmatpush1.msra.mxu0 0.0
      %704 = vmatprep.subr.mxu0 0.0
      %705 = vmatpush1.msra.mxu0 0.0
      %706 = vmatprep.subr.mxu0 0.0
      %707 = vmatpush1.msra.mxu0 0.0
      %708 = vmatprep.subr.mxu0 0.0
      %709 = vmatpush1.msra.mxu0 0.0
      %710 = vmatprep.subr.mxu0 0.0
      %711 = vmatpush1.msra.mxu0 0.0
      %712 = vmatprep.subr.mxu0 0.0
      %713 = vmatpush1.msra.mxu0 0.0
      %714 = vmatprep.subr.mxu0 0.0
      %715 = vmatpush1.msra.mxu0 0.0
      %716 = vmatprep.subr.mxu0 0.0
      %717 = vmatpush1.msra.mxu0 0.0
      %718 = vmatprep.subr.mxu0 0.0
      %719 = vmatpush1.msra.mxu0 0.0
      %720 = vmatprep.subr.mxu0 0.0
      %721 = vmatpush1.msra.mxu0 0.0
      %722 = vmatprep.subr.mxu0 0.0
      %723 = vmatpush1.msra.mxu0 0.0
      %724 = vmatprep.subr.mxu0 0.0
      %725 = vmatpush1.msra.mxu0 0.0
      %726 = vmatprep.subr.mxu0 0.0
      %727 = vmatpush1.msra.mxu0 0.0
      %728 = vmatprep.subr.mxu0 0.0
      %729 = vmatpush1.msra.mxu0 0.0
      %730 = vmatprep.subr.mxu0 0.0
      %731 = vmatpush1.msra.mxu0 0.0
      %732 = vmatprep.subr.mxu0 0.0
      %733 = vmatpush1.msra.mxu0 0.0
      %734 = vmatprep.mubr.f32.mxu0 0.0
      %735 = vmatmul.mubr.f32.gmra.mrb[0].mxu0 %v662
      %v736 = vpop.f32.mrb[0].mxu0
      %v737 = vadd.f32 0.0, %v736
      %v738 = vpop.f32.mrb[0].mxu0
      %739 = vmatprep.mubr.f32.mxu0 0.0
      %740 = vmatmul.mubr.f32.gmra.mrb[0].mxu0 %v665
      %v741 = vpop.f32.mrb[0].mxu0
      %v742 = vadd.f32 0.0, %v741
      %v743 = vpop.f32.mrb[0].mxu0
      %744 = vdwg.mxu0
      %v745 = vadd.f32 %v652, %v737
      %v746 = vadd.f32 %v653, %v742
      %s747 = scalar_lea.vmem %s2, 128
      %v748 = vld [vmem:[%s747] sm:$0xff]
      %v749 = vld [vmem:[%s747 + $0x8] sm:$0xff]
      %v750 = vld [vmem:[%s747 + $0x10] sm:$0xff]
      %v751 = vld [vmem:[%s747 + $0x18] sm:$0x3f]
      %752 = vrot.lane.b32.xlu0 %v654, 125
      %v753 = vpop.permute.xlu0 %752
      %754 = vrot.lane.b32.xlu0 %v655, 125
      %v755 = vpop.permute.xlu0 %754
      %v756 = vsel %vm395, %v753, 0
      %v758 = vsel %vm395, %v755, 0
      %v761 = vsel %vm400, %v751, 0
      %763 = vmatprep.subr.mxu0 0.0
      %764 = vmatpush1.msra.mxu0 %v748
      %765 = vmatprep.subr.mxu0 0.0
      %766 = vmatpush1.msra.mxu0 %v749
      %767 = vmatprep.subr.mxu0 0.0
      %768 = vmatpush1.msra.mxu0 %v750
      %769 = vmatprep.subr.mxu0 0.0
      %770 = vmatpush1.msra.mxu0 %v761
      %771 = vmatprep.subr.mxu0 0.0
      %772 = vmatpush1.msra.mxu0 0.0
      %773 = vmatprep.subr.mxu0 0.0
      %774 = vmatpush1.msra.mxu0 0.0
      %775 = vmatprep.subr.mxu0 0.0
      %776 = vmatpush1.msra.mxu0 0.0
      %777 = vmatprep.subr.mxu0 0.0
      %778 = vmatpush1.msra.mxu0 0.0
      %779 = vmatprep.subr.mxu0 0.0
      %780 = vmatpush1.msra.mxu0 0.0
      %781 = vmatprep.subr.mxu0 0.0
      %782 = vmatpush1.msra.mxu0 0.0
      %783 = vmatprep.subr.mxu0 0.0
      %784 = vmatpush1.msra.mxu0 0.0
      %785 = vmatprep.subr.mxu0 0.0
      %786 = vmatpush1.msra.mxu0 0.0
      %787 = vmatprep.subr.mxu0 0.0
      %788 = vmatpush1.msra.mxu0 0.0
      %789 = vmatprep.subr.mxu0 0.0
      %790 = vmatpush1.msra.mxu0 0.0
      %791 = vmatprep.subr.mxu0 0.0
      %792 = vmatpush1.msra.mxu0 0.0
      %793 = vmatprep.subr.mxu0 0.0
      %794 = vmatpush1.msra.mxu0 0.0
      %795 = vmatprep.subr.mxu0 0.0
      %796 = vmatpush1.msra.mxu0 0.0
      %797 = vmatprep.subr.mxu0 0.0
      %798 = vmatpush1.msra.mxu0 0.0
      %799 = vmatprep.subr.mxu0 0.0
      %800 = vmatpush1.msra.mxu0 0.0
      %801 = vmatprep.subr.mxu0 0.0
      %802 = vmatpush1.msra.mxu0 0.0
      %803 = vmatprep.subr.mxu0 0.0
      %804 = vmatpush1.msra.mxu0 0.0
      %805 = vmatprep.subr.mxu0 0.0
      %806 = vmatpush1.msra.mxu0 0.0
      %807 = vmatprep.subr.mxu0 0.0
      %808 = vmatpush1.msra.mxu0 0.0
      %809 = vmatprep.subr.mxu0 0.0
      %810 = vmatpush1.msra.mxu0 0.0
      %811 = vmatprep.subr.mxu0 0.0
      %812 = vmatpush1.msra.mxu0 0.0
      %813 = vmatprep.subr.mxu0 0.0
      %814 = vmatpush1.msra.mxu0 0.0
      %815 = vmatprep.subr.mxu0 0.0
      %816 = vmatpush1.msra.mxu0 0.0
      %817 = vmatprep.subr.mxu0 0.0
      %818 = vmatpush1.msra.mxu0 0.0
      %819 = vmatprep.subr.mxu0 0.0
      %820 = vmatpush1.msra.mxu0 0.0
      %821 = vmatprep.subr.mxu0 0.0
      %822 = vmatpush1.msra.mxu0 0.0
      %823 = vmatprep.subr.mxu0 0.0
      %824 = vmatpush1.msra.mxu0 0.0
      %825 = vmatprep.subr.mxu0 0.0
      %826 = vmatpush1.msra.mxu0 0.0
      %827 = vmatprep.mubr.f32.mxu0 0.0
      %828 = vmatmul.mubr.f32.gmra.mrb[0].mxu0 %v756
      %v829 = vpop.f32.mrb[0].mxu0
      %v830 = vadd.f32 0.0, %v829
      %v831 = vpop.f32.mrb[0].mxu0
      %832 = vmatprep.mubr.f32.mxu0 0.0
      %833 = vmatmul.mubr.f32.gmra.mrb[0].mxu0 %v758
      %v834 = vpop.f32.mrb[0].mxu0
      %v835 = vadd.f32 0.0, %v834
      %v836 = vpop.f32.mrb[0].mxu0
      %837 = vdwg.mxu0
      %v838 = vadd.f32 %v745, %v830
      %v839 = vadd.f32 %v746, %v835
      %s840 = scalar_lea.vmem %s2, 160
      %v841 = vld [vmem:[%s840] sm:$0xff]
      %v842 = vld [vmem:[%s840 + $0x8] sm:$0xff]
      %v843 = vld [vmem:[%s840 + $0x10] sm:$0xff]
      %v844 = vld [vmem:[%s840 + $0x18] sm:$0x3f]
      %845 = vrot.lane.b32.xlu0 %v654, 122
      %v846 = vpop.permute.xlu0 %845
      %847 = vrot.lane.b32.xlu0 %v655, 122
      %v848 = vpop.permute.xlu0 %847
      %v849 = vsel %vm395, %v846, 0
      %v851 = vsel %vm395, %v848, 0
      %v854 = vsel %vm400, %v844, 0
      %856 = vmatprep.subr.mxu0 0.0
      %857 = vmatpush1.msra.mxu0 %v841
      %858 = vmatprep.subr.mxu0 0.0
      %859 = vmatpush1.msra.mxu0 %v842
      %860 = vmatprep.subr.mxu0 0.0
      %861 = vmatpush1.msra.mxu0 %v843
      %862 = vmatprep.subr.mxu0 0.0
      %863 = vmatpush1.msra.mxu0 %v854
      %864 = vmatprep.subr.mxu0 0.0
      %865 = vmatpush1.msra.mxu0 0.0
      %866 = vmatprep.subr.mxu0 0.0
      %867 = vmatpush1.msra.mxu0 0.0
      %868 = vmatprep.subr.mxu0 0.0
      %869 = vmatpush1.msra.mxu0 0.0
      %870 = vmatprep.subr.mxu0 0.0
      %871 = vmatpush1.msra.mxu0 0.0
      %872 = vmatprep.subr.mxu0 0.0
      %873 = vmatpush1.msra.mxu0 0.0
      %874 = vmatprep.subr.mxu0 0.0
      %875 = vmatpush1.msra.mxu0 0.0
      %876 = vmatprep.subr.mxu0 0.0
      %877 = vmatpush1.msra.mxu0 0.0
      %878 = vmatprep.subr.mxu0 0.0
      %879 = vmatpush1.msra.mxu0 0.0
      %880 = vmatprep.subr.mxu0 0.0
      %881 = vmatpush1.msra.mxu0 0.0
      %882 = vmatprep.subr.mxu0 0.0
      %883 = vmatpush1.msra.mxu0 0.0
      %884 = vmatprep.subr.mxu0 0.0
      %885 = vmatpush1.msra.mxu0 0.0
      %886 = vmatprep.subr.mxu0 0.0
      %887 = vmatpush1.msra.mxu0 0.0
      %888 = vmatprep.subr.mxu0 0.0
      %889 = vmatpush1.msra.mxu0 0.0
      %890 = vmatprep.subr.mxu0 0.0
      %891 = vmatpush1.msra.mxu0 0.0
      %892 = vmatprep.subr.mxu0 0.0
      %893 = vmatpush1.msra.mxu0 0.0
      %894 = vmatprep.subr.mxu0 0.0
      %895 = vmatpush1.msra.mxu0 0.0
      %896 = vmatprep.subr.mxu0 0.0
      %897 = vmatpush1.msra.mxu0 0.0
      %898 = vmatprep.subr.mxu0 0.0
      %899 = vmatpush1.msra.mxu0 0.0
      %900 = vmatprep.subr.mxu0 0.0
      %901 = vmatpush1.msra.mxu0 0.0
      %902 = vmatprep.subr.mxu0 0.0
      %903 = vmatpush1.msra.mxu0 0.0
      %904 = vmatprep.subr.mxu0 0.0
      %905 = vmatpush1.msra.mxu0 0.0
      %906 = vmatprep.subr.mxu0 0.0
      %907 = vmatpush1.msra.mxu0 0.0
      %908 = vmatprep.subr.mxu0 0.0
      %909 = vmatpush1.msra.mxu0 0.0
      %910 = vmatprep.subr.mxu0 0.0
      %911 = vmatpush1.msra.mxu0 0.0
      %912 = vmatprep.subr.mxu0 0.0
      %913 = vmatpush1.msra.mxu0 0.0
      %914 = vmatprep.subr.mxu0 0.0
      %915 = vmatpush1.msra.mxu0 0.0
      %916 = vmatprep.subr.mxu0 0.0
      %917 = vmatpush1.msra.mxu0 0.0
      %918 = vmatprep.subr.mxu0 0.0
      %919 = vmatpush1.msra.mxu0 0.0
      %920 = vmatprep.mubr.f32.mxu0 0.0
      %921 = vmatmul.mubr.f32.gmra.mrb[0].mxu0 %v849
      %v922 = vpop.f32.mrb[0].mxu0
      %v923 = vadd.f32 0.0, %v922
      %v924 = vpop.f32.mrb[0].mxu0
      %925 = vmatprep.mubr.f32.mxu0 0.0
      %926 = vmatmul.mubr.f32.gmra.mrb[0].mxu0 %v851
      %v927 = vpop.f32.mrb[0].mxu0
      %v928 = vadd.f32 0.0, %v927
      %v929 = vpop.f32.mrb[0].mxu0
      %930 = vdwg.mxu0
      %v931 = vadd.f32 %v838, %v923
      %v932 = vadd.f32 %v839, %v928
      %v933 = vld [vmem:[%s368 + $0x2] sm:$0xff]
      %v934 = vld [vmem:[%s368 + $0xa] sm:$0x3]
      %s935 = scalar_lea.vmem %s2, 192
      %v936 = vld [vmem:[%s935] sm:$0xff]
      %v937 = vld [vmem:[%s935 + $0x8] sm:$0xff]
      %v938 = vld [vmem:[%s935 + $0x10] sm:$0xff]
      %v939 = vld [vmem:[%s935 + $0x18] sm:$0x3f]
      %v941 = vsel %vm395, %v933, 0
      %v944 = vsel %vm395, %v934, 0
      %v947 = vsel %vm400, %v939, 0
      %949 = vmatprep.subr.mxu0 0.0
      %950 = vmatpush1.msra.mxu0 %v936
      %951 = vmatprep.subr.mxu0 0.0
      %952 = vmatpush1.msra.mxu0 %v937
      %953 = vmatprep.subr.mxu0 0.0
      %954 = vmatpush1.msra.mxu0 %v938
      %955 = vmatprep.subr.mxu0 0.0
      %956 = vmatpush1.msra.mxu0 %v947
      %957 = vmatprep.subr.mxu0 0.0
      %958 = vmatpush1.msra.mxu0 0.0
      %959 = vmatprep.subr.mxu0 0.0
      %960 = vmatpush1.msra.mxu0 0.0
      %961 = vmatprep.subr.mxu0 0.0
      %962 = vmatpush1.msra.mxu0 0.0
      %963 = vmatprep.subr.mxu0 0.0
      %964 = vmatpush1.msra.mxu0 0.0
      %965 = vmatprep.subr.mxu0 0.0
      %966 = vmatpush1.msra.mxu0 0.0
      %967 = vmatprep.subr.mxu0 0.0
      %968 = vmatpush1.msra.mxu0 0.0
      %969 = vmatprep.subr.mxu0 0.0
      %970 = vmatpush1.msra.mxu0 0.0
      %971 = vmatprep.subr.mxu0 0.0
      %972 = vmatpush1.msra.mxu0 0.0
      %973 = vmatprep.subr.mxu0 0.0
      %974 = vmatpush1.msra.mxu0 0.0
      %975 = vmatprep.subr.mxu0 0.0
      %976 = vmatpush1.msra.mxu0 0.0
      %977 = vmatprep.subr.mxu0 0.0
      %978 = vmatpush1.msra.mxu0 0.0
      %979 = vmatprep.subr.mxu0 0.0
      %980 = vmatpush1.msra.mxu0 0.0
      %981 = vmatprep.subr.mxu0 0.0
      %982 = vmatpush1.msra.mxu0 0.0
      %983 = vmatprep.subr.mxu0 0.0
      %984 = vmatpush1.msra.mxu0 0.0
      %985 = vmatprep.subr.mxu0 0.0
      %986 = vmatpush1.msra.mxu0 0.0
      %987 = vmatprep.subr.mxu0 0.0
      %988 = vmatpush1.msra.mxu0 0.0
      %989 = vmatprep.subr.mxu0 0.0
      %990 = vmatpush1.msra.mxu0 0.0
      %991 = vmatprep.subr.mxu0 0.0
      %992 = vmatpush1.msra.mxu0 0.0
      %993 = vmatprep.subr.mxu0 0.0
      %994 = vmatpush1.msra.mxu0 0.0
      %995 = vmatprep.subr.mxu0 0.0
      %996 = vmatpush1.msra.mxu0 0.0
      %997 = vmatprep.subr.mxu0 0.0
      %998 = vmatpush1.msra.mxu0 0.0
      %999 = vmatprep.subr.mxu0 0.0
      %1000 = vmatpush1.msra.mxu0 0.0
      %1001 = vmatprep.subr.mxu0 0.0
      %1002 = vmatpush1.msra.mxu0 0.0
      %1003 = vmatprep.subr.mxu0 0.0
      %1004 = vmatpush1.msra.mxu0 0.0
      %1005 = vmatprep.subr.mxu0 0.0
      %1006 = vmatpush1.msra.mxu0 0.0
      %1007 = vmatprep.subr.mxu0 0.0
      %1008 = vmatpush1.msra.mxu0 0.0
      %1009 = vmatprep.subr.mxu0 0.0
      %1010 = vmatpush1.msra.mxu0 0.0
      %1011 = vmatprep.subr.mxu0 0.0
      %1012 = vmatpush1.msra.mxu0 0.0
      %1013 = vmatprep.mubr.f32.mxu0 0.0
      %1014 = vmatmul.mubr.f32.gmra.mrb[0].mxu0 %v941
      %v1015 = vpop.f32.mrb[0].mxu0
      %v1016 = vadd.f32 0.0, %v1015
      %v1017 = vpop.f32.mrb[0].mxu0
      %1018 = vmatprep.mubr.f32.mxu0 0.0
      %1019 = vmatmul.mubr.f32.gmra.mrb[0].mxu0 %v944
      %v1020 = vpop.f32.mrb[0].mxu0
      %v1021 = vadd.f32 0.0, %v1020
      %v1022 = vpop.f32.mrb[0].mxu0
      %1023 = vdwg.mxu0
      %v1024 = vadd.f32 %v931, %v1016
      %v1025 = vadd.f32 %v932, %v1021
      %s1026 = scalar_lea.vmem %s2, 224
      %v1027 = vld [vmem:[%s1026] sm:$0xff]
      %v1028 = vld [vmem:[%s1026 + $0x8] sm:$0xff]
      %v1029 = vld [vmem:[%s1026 + $0x10] sm:$0xff]
      %v1030 = vld [vmem:[%s1026 + $0x18] sm:$0x3f]
      %1031 = vrot.lane.b32.xlu0 %v933, 125
      %v1032 = vpop.permute.xlu0 %1031
      %1033 = vrot.lane.b32.xlu0 %v934, 125
      %v1034 = vpop.permute.xlu0 %1033
      %v1035 = vsel %vm395, %v1032, 0
      %v1037 = vsel %vm395, %v1034, 0
      %v1040 = vsel %vm400, %v1030, 0
      %1042 = vmatprep.subr.mxu0 0.0
      %1043 = vmatpush1.msra.mxu0 %v1027
      %1044 = vmatprep.subr.mxu0 0.0
      %1045 = vmatpush1.msra.mxu0 %v1028
      %1046 = vmatprep.subr.mxu0 0.0
      %1047 = vmatpush1.msra.mxu0 %v1029
      %1048 = vmatprep.subr.mxu0 0.0
      %1049 = vmatpush1.msra.mxu0 %v1040
      %1050 = vmatprep.subr.mxu0 0.0
      %1051 = vmatpush1.msra.mxu0 0.0
      %1052 = vmatprep.subr.mxu0 0.0
      %1053 = vmatpush1.msra.mxu0 0.0
      %1054 = vmatprep.subr.mxu0 0.0
      %1055 = vmatpush1.msra.mxu0 0.0
      %1056 = vmatprep.subr.mxu0 0.0
      %1057 = vmatpush1.msra.mxu0 0.0
      %1058 = vmatprep.subr.mxu0 0.0
      %1059 = vmatpush1.msra.mxu0 0.0
      %1060 = vmatprep.subr.mxu0 0.0
      %1061 = vmatpush1.msra.mxu0 0.0
      %1062 = vmatprep.subr.mxu0 0.0
      %1063 = vmatpush1.msra.mxu0 0.0
      %1064 = vmatprep.subr.mxu0 0.0
      %1065 = vmatpush1.msra.mxu0 0.0
      %1066 = vmatprep.subr.mxu0 0.0
      %1067 = vmatpush1.msra.mxu0 0.0
      %1068 = vmatprep.subr.mxu0 0.0
      %1069 = vmatpush1.msra.mxu0 0.0
      %1070 = vmatprep.subr.mxu0 0.0
      %1071 = vmatpush1.msra.mxu0 0.0
      %1072 = vmatprep.subr.mxu0 0.0
      %1073 = vmatpush1.msra.mxu0 0.0
      %1074 = vmatprep.subr.mxu0 0.0
      %1075 = vmatpush1.msra.mxu0 0.0
      %1076 = vmatprep.subr.mxu0 0.0
      %1077 = vmatpush1.msra.mxu0 0.0
      %1078 = vmatprep.subr.mxu0 0.0
      %1079 = vmatpush1.msra.mxu0 0.0
      %1080 = vmatprep.subr.mxu0 0.0
      %1081 = vmatpush1.msra.mxu0 0.0
      %1082 = vmatprep.subr.mxu0 0.0
      %1083 = vmatpush1.msra.mxu0 0.0
      %1084 = vmatprep.subr.mxu0 0.0
      %1085 = vmatpush1.msra.mxu0 0.0
      %1086 = vmatprep.subr.mxu0 0.0
      %1087 = vmatpush1.msra.mxu0 0.0
      %1088 = vmatprep.subr.mxu0 0.0
      %1089 = vmatpush1.msra.mxu0 0.0
      %1090 = vmatprep.subr.mxu0 0.0
      %1091 = vmatpush1.msra.mxu0 0.0
      %1092 = vmatprep.subr.mxu0 0.0
      %1093 = vmatpush1.msra.mxu0 0.0
      %1094 = vmatprep.subr.mxu0 0.0
      %1095 = vmatpush1.msra.mxu0 0.0
      %1096 = vmatprep.subr.mxu0 0.0
      %1097 = vmatpush1.msra.mxu0 0.0
      %1098 = vmatprep.subr.mxu0 0.0
      %1099 = vmatpush1.msra.mxu0 0.0
      %1100 = vmatprep.subr.mxu0 0.0
      %1101 = vmatpush1.msra.mxu0 0.0
      %1102 = vmatprep.subr.mxu0 0.0
      %1103 = vmatpush1.msra.mxu0 0.0
      %1104 = vmatprep.subr.mxu0 0.0
      %1105 = vmatpush1.msra.mxu0 0.0
      %1106 = vmatprep.mubr.f32.mxu0 0.0
      %1107 = vmatmul.mubr.f32.gmra.mrb[0].mxu0 %v1035
      %v1108 = vpop.f32.mrb[0].mxu0
      %v1109 = vadd.f32 0.0, %v1108
      %v1110 = vpop.f32.mrb[0].mxu0
      %1111 = vmatprep.mubr.f32.mxu0 0.0
      %1112 = vmatmul.mubr.f32.gmra.mrb[0].mxu0 %v1037
      %v1113 = vpop.f32.mrb[0].mxu0
      %v1114 = vadd.f32 0.0, %v1113
      %v1115 = vpop.f32.mrb[0].mxu0
      %1116 = vdwg.mxu0
      %v1117 = vadd.f32 %v1024, %v1109
      %v1118 = vadd.f32 %v1025, %v1114
      %s1119 = scalar_lea.vmem %s2, 256
      %v1120 = vld [vmem:[%s1119] sm:$0xff]
      %v1121 = vld [vmem:[%s1119 + $0x8] sm:$0xff]
      %v1122 = vld [vmem:[%s1119 + $0x10] sm:$0xff]
      %v1123 = vld [vmem:[%s1119 + $0x18] sm:$0x3f]
      %1124 = vrot.lane.b32.xlu0 %v933, 122
      %v1125 = vpop.permute.xlu0 %1124
      %1126 = vrot.lane.b32.xlu0 %v934, 122
      %v1127 = vpop.permute.xlu0 %1126
      %v1128 = vsel %vm395, %v1125, 0
      %v1130 = vsel %vm395, %v1127, 0
      %v1133 = vsel %vm400, %v1123, 0
      %1135 = vmatprep.subr.mxu0 0.0
      %1136 = vmatpush1.msra.mxu0 %v1120
      %1137 = vmatprep.subr.mxu0 0.0
      %1138 = vmatpush1.msra.mxu0 %v1121
      %1139 = vmatprep.subr.mxu0 0.0
      %1140 = vmatpush1.msra.mxu0 %v1122
      %1141 = vmatprep.subr.mxu0 0.0
      %1142 = vmatpush1.msra.mxu0 %v1133
      %1143 = vmatprep.subr.mxu0 0.0
      %1144 = vmatpush1.msra.mxu0 0.0
      %1145 = vmatprep.subr.mxu0 0.0
      %1146 = vmatpush1.msra.mxu0 0.0
      %1147 = vmatprep.subr.mxu0 0.0
      %1148 = vmatpush1.msra.mxu0 0.0
      %1149 = vmatprep.subr.mxu0 0.0
      %1150 = vmatpush1.msra.mxu0 0.0
      %1151 = vmatprep.subr.mxu0 0.0
      %1152 = vmatpush1.msra.mxu0 0.0
      %1153 = vmatprep.subr.mxu0 0.0
      %1154 = vmatpush1.msra.mxu0 0.0
      %1155 = vmatprep.subr.mxu0 0.0
      %1156 = vmatpush1.msra.mxu0 0.0
      %1157 = vmatprep.subr.mxu0 0.0
      %1158 = vmatpush1.msra.mxu0 0.0
      %1159 = vmatprep.subr.mxu0 0.0
      %1160 = vmatpush1.msra.mxu0 0.0
      %1161 = vmatprep.subr.mxu0 0.0
      %1162 = vmatpush1.msra.mxu0 0.0
      %1163 = vmatprep.subr.mxu0 0.0
      %1164 = vmatpush1.msra.mxu0 0.0
      %1165 = vmatprep.subr.mxu0 0.0
      %1166 = vmatpush1.msra.mxu0 0.0
      %1167 = vmatprep.subr.mxu0 0.0
      %1168 = vmatpush1.msra.mxu0 0.0
      %1169 = vmatprep.subr.mxu0 0.0
      %1170 = vmatpush1.msra.mxu0 0.0
      %1171 = vmatprep.subr.mxu0 0.0
      %1172 = vmatpush1.msra.mxu0 0.0
      %1173 = vmatprep.subr.mxu0 0.0
      %1174 = vmatpush1.msra.mxu0 0.0
      %1175 = vmatprep.subr.mxu0 0.0
      %1176 = vmatpush1.msra.mxu0 0.0
      %1177 = vmatprep.subr.mxu0 0.0
      %1178 = vmatpush1.msra.mxu0 0.0
      %1179 = vmatprep.subr.mxu0 0.0
      %1180 = vmatpush1.msra.mxu0 0.0
      %1181 = vmatprep.subr.mxu0 0.0
      %1182 = vmatpush1.msra.mxu0 0.0
      %1183 = vmatprep.subr.mxu0 0.0
      %1184 = vmatpush1.msra.mxu0 0.0
      %1185 = vmatprep.subr.mxu0 0.0
      %1186 = vmatpush1.msra.mxu0 0.0
      %1187 = vmatprep.subr.mxu0 0.0
      %1188 = vmatpush1.msra.mxu0 0.0
      %1189 = vmatprep.subr.mxu0 0.0
      %1190 = vmatpush1.msra.mxu0 0.0
      %1191 = vmatprep.subr.mxu0 0.0
      %1192 = vmatpush1.msra.mxu0 0.0
      %1193 = vmatprep.subr.mxu0 0.0
      %1194 = vmatpush1.msra.mxu0 0.0
      %1195 = vmatprep.subr.mxu0 0.0
      %1196 = vmatpush1.msra.mxu0 0.0
      %1197 = vmatprep.subr.mxu0 0.0
      %1198 = vmatpush1.msra.mxu0 0.0
      %1199 = vmatprep.mubr.f32.mxu0 0.0
      %1200 = vmatmul.mubr.f32.gmra.mrb[0].mxu0 %v1128
      %v1201 = vpop.f32.mrb[0].mxu0
      %v1202 = vadd.f32 0.0, %v1201
      %v1203 = vpop.f32.mrb[0].mxu0
      %1204 = vmatprep.mubr.f32.mxu0 0.0
      %1205 = vmatmul.mubr.f32.gmra.mrb[0].mxu0 %v1130
      %v1206 = vpop.f32.mrb[0].mxu0
      %v1207 = vadd.f32 0.0, %v1206
      %v1208 = vpop.f32.mrb[0].mxu0
      %1209 = vdwg.mxu0
      %v1210 = vadd.f32 %v1117, %v1202
      %v1211 = vadd.f32 %v1118, %v1207
      %v1212 = vld [vmem:[%s3] sm:$0x1]
      %v1214 = vlaneseq
      %v1215 = vshrl.u32 %v1214, 7
      %v1216 = vsub.s32 0, %v1215
      %v1217 = vrot.slane %v1212, %v1216
      %v1219 = vadd.f32 %v1210, %v1217
      %v1220 = vadd.f32 %v1211, %v1217
      %v1221 = vmax.f32 %v1219, 0.0
      %v1222 = vmax.f32 %v1220, 0.0
      %vm1223 = vcmask 654336
      %1224 = vst.msk [vmem:[#allocation2] sm:$0xff] %vm1223, %v1221
      %vm1225 = vcmask 648192
      %1226 = vst.msk [vmem:[#allocation2 + $0x8] sm:$0x3] %vm1225, %v1222
      %v1227 = vld [vmem:[#allocation2] sm:$0xff]
      %v1228 = vld [vmem:[%s4] sm:$0xff]
      %v1229 = vld [vmem:[%s4 + $0x8] sm:$0xff]
      %v1230 = vld [vmem:[%s4 + $0x10] sm:$0xff]
      %v1231 = vld [vmem:[%s4 + $0x18] sm:$0xff]
      %v1232 = vld [vmem:[%s4 + $0x20] sm:$0xff]
      %v1233 = vld [vmem:[%s4 + $0x28] sm:$0xff]
      %v1234 = vld [vmem:[%s4 + $0x30] sm:$0xff]
      %v1235 = vld [vmem:[%s4 + $0x38] sm:$0xff]
      %s1236 = scalar_lea.vmem %s4, 64
      %v1237 = vld [vmem:[%s1236] sm:$0xff]
      %v1238 = vld [vmem:[%s1236 + $0x8] sm:$0xff]
      %v1239 = vld [vmem:[%s1236 + $0x10] sm:$0xff]
      %v1240 = vld [vmem:[%s1236 + $0x18] sm:$0xff]
      %v1241 = vld [vmem:[%s1236 + $0x20] sm:$0xff]
      %v1242 = vld [vmem:[%s1236 + $0x28] sm:$0xff]
      %v1243 = vld [vmem:[%s1236 + $0x30] sm:$0xff]
      %v1244 = vld [vmem:[%s1236 + $0x38] sm:$0xff]
      %1246 = vrot.lane.b32.xlu0 %v1227, 120
      %v1247 = vpop.permute.xlu0 %1246
      %vm1248 = vcmask 523264
      %v1249 = vsel %vm1248, %v1247, 0
      %1251 = vmatprep.subr.mxu0 0.0
      %1252 = vmatpush1.msra.mxu0 %v1237
      %1253 = vmatprep.subr.mxu0 0.0
      %1254 = vmatpush1.msra.mxu0 %v1238
      %1255 = vmatprep.subr.mxu0 0.0
      %1256 = vmatpush1.msra.mxu0 %v1239
      %1257 = vmatprep.subr.mxu0 0.0
      %1258 = vmatpush1.msra.mxu0 %v1240
      %1259 = vmatprep.subr.mxu0 0.0
      %1260 = vmatpush1.msra.mxu0 %v1241
      %1261 = vmatprep.subr.mxu0 0.0
      %1262 = vmatpush1.msra.mxu0 %v1242
      %1263 = vmatprep.subr.mxu0 0.0
      %1264 = vmatpush1.msra.mxu0 %v1243
      %1265 = vmatprep.subr.mxu0 0.0
      %1266 = vmatpush1.msra.mxu0 %v1244
      %1267 = vmatprep.subr.mxu0 0.0
      %1268 = vmatpush1.msra.mxu0 0.0
      %1269 = vmatprep.subr.mxu0 0.0
      %1270 = vmatpush1.msra.mxu0 0.0
      %1271 = vmatprep.subr.mxu0 0.0
      %1272 = vmatpush1.msra.mxu0 0.0
      %1273 = vmatprep.subr.mxu0 0.0
      %1274 = vmatpush1.msra.mxu0 0.0
      %1275 = vmatprep.subr.mxu0 0.0
      %1276 = vmatpush1.msra.mxu0 0.0
      %1277 = vmatprep.subr.mxu0 0.0
      %1278 = vmatpush1.msra.mxu0 0.0
      %1279 = vmatprep.subr.mxu0 0.0
      %1280 = vmatpush1.msra.mxu0 0.0
      %1281 = vmatprep.subr.mxu0 0.0
      %1282 = vmatpush1.msra.mxu0 0.0
      %1283 = vmatprep.subr.mxu0 0.0
      %1284 = vmatpush1.msra.mxu0 0.0
      %1285 = vmatprep.subr.mxu0 0.0
      %1286 = vmatpush1.msra.mxu0 0.0
      %1287 = vmatprep.subr.mxu0 0.0
      %1288 = vmatpush1.msra.mxu0 0.0
      %1289 = vmatprep.subr.mxu0 0.0
      %1290 = vmatpush1.msra.mxu0 0.0
      %1291 = vmatprep.subr.mxu0 0.0
      %1292 = vmatpush1.msra.mxu0 0.0
      %1293 = vmatprep.subr.mxu0 0.0
      %1294 = vmatpush1.msra.mxu0 0.0
      %1295 = vmatprep.subr.mxu0 0.0
      %1296 = vmatpush1.msra.mxu0 0.0
      %1297 = vmatprep.subr.mxu0 0.0
      %1298 = vmatpush1.msra.mxu0 0.0
      %1299 = vmatprep.subr.mxu0 0.0
      %1300 = vmatpush1.msra.mxu0 0.0
      %1301 = vmatprep.subr.mxu0 0.0
      %1302 = vmatpush1.msra.mxu0 0.0
      %1303 = vmatprep.subr.mxu0 0.0
      %1304 = vmatpush1.msra.mxu0 0.0
      %1305 = vmatprep.subr.mxu0 0.0
      %1306 = vmatpush1.msra.mxu0 0.0
      %1307 = vmatprep.subr.mxu0 0.0
      %1308 = vmatpush1.msra.mxu0 0.0
      %1309 = vmatprep.subr.mxu0 0.0
      %1310 = vmatpush1.msra.mxu0 0.0
      %1311 = vmatprep.subr.mxu0 0.0
      %1312 = vmatpush1.msra.mxu0 0.0
      %1313 = vmatprep.subr.mxu0 0.0
      %1314 = vmatpush1.msra.mxu0 0.0
      %1315 = vmatprep.mubr.f32.mxu0 0.0
      %1316 = vmatmul.mubr.f32.gmra.mrb[0].mxu0 %v1249
      %v1317 = vpop.f32.mrb[0].mxu0
      %v1318 = vadd.f32 0.0, %v1317
      %v1319 = vpop.f32.mrb[0].mxu0
      %1320 = vdwg.mxu0
      %v1321 = vsel %vm1248, %v1227, 0
      %1323 = vmatprep.subr.mxu0 0.0
      %1324 = vmatpush1.msra.mxu0 %v1228
      %1325 = vmatprep.subr.mxu0 0.0
      %1326 = vmatpush1.msra.mxu0 %v1229
      %1327 = vmatprep.subr.mxu0 0.0
      %1328 = vmatpush1.msra.mxu0 %v1230
      %1329 = vmatprep.subr.mxu0 0.0
      %1330 = vmatpush1.msra.mxu0 %v1231
      %1331 = vmatprep.subr.mxu0 0.0
      %1332 = vmatpush1.msra.mxu0 %v1232
      %1333 = vmatprep.subr.mxu0 0.0
      %1334 = vmatpush1.msra.mxu0 %v1233
      %1335 = vmatprep.subr.mxu0 0.0
      %1336 = vmatpush1.msra.mxu0 %v1234
      %1337 = vmatprep.subr.mxu0 0.0
      %1338 = vmatpush1.msra.mxu0 %v1235
      %1339 = vmatprep.subr.mxu0 0.0
      %1340 = vmatpush1.msra.mxu0 0.0
      %1341 = vmatprep.subr.mxu0 0.0
      %1342 = vmatpush1.msra.mxu0 0.0
      %1343 = vmatprep.subr.mxu0 0.0
      %1344 = vmatpush1.msra.mxu0 0.0
      %1345 = vmatprep.subr.mxu0 0.0
      %1346 = vmatpush1.msra.mxu0 0.0
      %1347 = vmatprep.subr.mxu0 0.0
      %1348 = vmatpush1.msra.mxu0 0.0
      %1349 = vmatprep.subr.mxu0 0.0
      %1350 = vmatpush1.msra.mxu0 0.0
      %1351 = vmatprep.subr.mxu0 0.0
      %1352 = vmatpush1.msra.mxu0 0.0
      %1353 = vmatprep.subr.mxu0 0.0
      %1354 = vmatpush1.msra.mxu0 0.0
      %1355 = vmatprep.subr.mxu0 0.0
      %1356 = vmatpush1.msra.mxu0 0.0
      %1357 = vmatprep.subr.mxu0 0.0
      %1358 = vmatpush1.msra.mxu0 0.0
      %1359 = vmatprep.subr.mxu0 0.0
      %1360 = vmatpush1.msra.mxu0 0.0
      %1361 = vmatprep.subr.mxu0 0.0
      %1362 = vmatpush1.msra.mxu0 0.0
      %1363 = vmatprep.subr.mxu0 0.0
      %1364 = vmatpush1.msra.mxu0 0.0
      %1365 = vmatprep.subr.mxu0 0.0
      %1366 = vmatpush1.msra.mxu0 0.0
      %1367 = vmatprep.subr.mxu0 0.0
      %1368 = vmatpush1.msra.mxu0 0.0
      %1369 = vmatprep.subr.mxu0 0.0
      %1370 = vmatpush1.msra.mxu0 0.0
      %1371 = vmatprep.subr.mxu0 0.0
      %1372 = vmatpush1.msra.mxu0 0.0
      %1373 = vmatprep.subr.mxu0 0.0
      %1374 = vmatpush1.msra.mxu0 0.0
      %1375 = vmatprep.subr.mxu0 0.0
      %1376 = vmatpush1.msra.mxu0 0.0
      %1377 = vmatprep.subr.mxu0 0.0
      %1378 = vmatpush1.msra.mxu0 0.0
      %1379 = vmatprep.subr.mxu0 0.0
      %1380 = vmatpush1.msra.mxu0 0.0
      %1381 = vmatprep.subr.mxu0 0.0
      %1382 = vmatpush1.msra.mxu0 0.0
      %1383 = vmatprep.subr.mxu0 0.0
      %1384 = vmatpush1.msra.mxu0 0.0
      %1385 = vmatprep.subr.mxu0 0.0
      %1386 = vmatpush1.msra.mxu0 0.0
      %1387 = vmatprep.mubr.f32.mxu0 0.0
      %1388 = vmatmul.mubr.f32.gmra.mrb[0].mxu0 %v1321
      %v1389 = vpop.f32.mrb[0].mxu0
      %v1390 = vadd.f32 %v1318, %v1389
      %v1391 = vpop.f32.mrb[0].mxu0
      %1392 = vdwg.mxu0
      %s1393 = scalar_lea.vmem %s4, 128
      %v1394 = vld [vmem:[%s1393] sm:$0xff]
      %v1395 = vld [vmem:[%s1393 + $0x8] sm:$0xff]
      %v1396 = vld [vmem:[%s1393 + $0x10] sm:$0xff]
      %v1397 = vld [vmem:[%s1393 + $0x18] sm:$0xff]
      %v1398 = vld [vmem:[%s1393 + $0x20] sm:$0xff]
      %v1399 = vld [vmem:[%s1393 + $0x28] sm:$0xff]
      %v1400 = vld [vmem:[%s1393 + $0x30] sm:$0xff]
      %v1401 = vld [vmem:[%s1393 + $0x38] sm:$0xff]
      %1402 = vrot.lane.b32.xlu0 %v1227, 112
      %v1403 = vpop.permute.xlu0 %1402
      %v1404 = vsel %vm1248, %v1403, 0
      %1406 = vmatprep.subr.mxu0 0.0
      %1407 = vmatpush1.msra.mxu0 %v1394
      %1408 = vmatprep.subr.mxu0 0.0
      %1409 = vmatpush1.msra.mxu0 %v1395
      %1410 = vmatprep.subr.mxu0 0.0
      %1411 = vmatpush1.msra.mxu0 %v1396
      %1412 = vmatprep.subr.mxu0 0.0
      %1413 = vmatpush1.msra.mxu0 %v1397
      %1414 = vmatprep.subr.mxu0 0.0
      %1415 = vmatpush1.msra.mxu0 %v1398
      %1416 = vmatprep.subr.mxu0 0.0
      %1417 = vmatpush1.msra.mxu0 %v1399
      %1418 = vmatprep.subr.mxu0 0.0
      %1419 = vmatpush1.msra.mxu0 %v1400
      %1420 = vmatprep.subr.mxu0 0.0
      %1421 = vmatpush1.msra.mxu0 %v1401
      %1422 = vmatprep.subr.mxu0 0.0
      %1423 = vmatpush1.msra.mxu0 0.0
      %1424 = vmatprep.subr.mxu0 0.0
      %1425 = vmatpush1.msra.mxu0 0.0
      %1426 = vmatprep.subr.mxu0 0.0
      %1427 = vmatpush1.msra.mxu0 0.0
      %1428 = vmatprep.subr.mxu0 0.0
      %1429 = vmatpush1.msra.mxu0 0.0
      %1430 = vmatprep.subr.mxu0 0.0
      %1431 = vmatpush1.msra.mxu0 0.0
      %1432 = vmatprep.subr.mxu0 0.0
      %1433 = vmatpush1.msra.mxu0 0.0
      %1434 = vmatprep.subr.mxu0 0.0
      %1435 = vmatpush1.msra.mxu0 0.0
      %1436 = vmatprep.subr.mxu0 0.0
      %1437 = vmatpush1.msra.mxu0 0.0
      %1438 = vmatprep.subr.mxu0 0.0
      %1439 = vmatpush1.msra.mxu0 0.0
      %1440 = vmatprep.subr.mxu0 0.0
      %1441 = vmatpush1.msra.mxu0 0.0
      %1442 = vmatprep.subr.mxu0 0.0
      %1443 = vmatpush1.msra.mxu0 0.0
      %1444 = vmatprep.subr.mxu0 0.0
      %1445 = vmatpush1.msra.mxu0 0.0
      %1446 = vmatprep.subr.mxu0 0.0
      %1447 = vmatpush1.msra.mxu0 0.0
      %1448 = vmatprep.subr.mxu0 0.0
      %1449 = vmatpush1.msra.mxu0 0.0
      %1450 = vmatprep.subr.mxu0 0.0
      %1451 = vmatpush1.msra.mxu0 0.0
      %1452 = vmatprep.subr.mxu0 0.0
      %1453 = vmatpush1.msra.mxu0 0.0
      %1454 = vmatprep.subr.mxu0 0.0
      %1455 = vmatpush1.msra.mxu0 0.0
      %1456 = vmatprep.subr.mxu0 0.0
      %1457 = vmatpush1.msra.mxu0 0.0
      %1458 = vmatprep.subr.mxu0 0.0
      %1459 = vmatpush1.msra.mxu0 0.0
      %1460 = vmatprep.subr.mxu0 0.0
      %1461 = vmatpush1.msra.mxu0 0.0
      %1462 = vmatprep.subr.mxu0 0.0
      %1463 = vmatpush1.msra.mxu0 0.0
      %1464 = vmatprep.subr.mxu0 0.0
      %1465 = vmatpush1.msra.mxu0 0.0
      %1466 = vmatprep.subr.mxu0 0.0
      %1467 = vmatpush1.msra.mxu0 0.0
      %1468 = vmatprep.subr.mxu0 0.0
      %1469 = vmatpush1.msra.mxu0 0.0
      %1470 = vmatprep.mubr.f32.mxu0 0.0
      %1471 = vmatmul.mubr.f32.gmra.mrb[0].mxu0 %v1404
      %v1472 = vpop.f32.mrb[0].mxu0
      %v1473 = vadd.f32 0.0, %v1472
      %v1474 = vpop.f32.mrb[0].mxu0
      %1475 = vdwg.mxu0
      %v1476 = vadd.f32 %v1390, %v1473
      %v1477 = vld [vmem:[#allocation2 + $0x1] sm:$0xff]
      %s1478 = scalar_lea.vmem %s4, 192
      %v1479 = vld [vmem:[%s1478] sm:$0xff]
      %v1480 = vld [vmem:[%s1478 + $0x8] sm:$0xff]
      %v1481 = vld [vmem:[%s1478 + $0x10] sm:$0xff]
      %v1482 = vld [vmem:[%s1478 + $0x18] sm:$0xff]
      %v1483 = vld [vmem:[%s1478 + $0x20] sm:$0xff]
      %v1484 = vld [vmem:[%s1478 + $0x28] sm:$0xff]
      %v1485 = vld [vmem:[%s1478 + $0x30] sm:$0xff]
      %v1486 = vld [vmem:[%s1478 + $0x38] sm:$0xff]
      %v1488 = vsel %vm1248, %v1477, 0
      %1490 = vmatprep.subr.mxu0 0.0
      %1491 = vmatpush1.msra.mxu0 %v1479
      %1492 = vmatprep.subr.mxu0 0.0
      %1493 = vmatpush1.msra.mxu0 %v1480
      %1494 = vmatprep.subr.mxu0 0.0
      %1495 = vmatpush1.msra.mxu0 %v1481
      %1496 = vmatprep.subr.mxu0 0.0
      %1497 = vmatpush1.msra.mxu0 %v1482
      %1498 = vmatprep.subr.mxu0 0.0
      %1499 = vmatpush1.msra.mxu0 %v1483
      %1500 = vmatprep.subr.mxu0 0.0
      %1501 = vmatpush1.msra.mxu0 %v1484
      %1502 = vmatprep.subr.mxu0 0.0
      %1503 = vmatpush1.msra.mxu0 %v1485
      %1504 = vmatprep.subr.mxu0 0.0
      %1505 = vmatpush1.msra.mxu0 %v1486
      %1506 = vmatprep.subr.mxu0 0.0
      %1507 = vmatpush1.msra.mxu0 0.0
      %1508 = vmatprep.subr.mxu0 0.0
      %1509 = vmatpush1.msra.mxu0 0.0
      %1510 = vmatprep.subr.mxu0 0.0
      %1511 = vmatpush1.msra.mxu0 0.0
      %1512 = vmatprep.subr.mxu0 0.0
      %1513 = vmatpush1.msra.mxu0 0.0
      %1514 = vmatprep.subr.mxu0 0.0
      %1515 = vmatpush1.msra.mxu0 0.0
      %1516 = vmatprep.subr.mxu0 0.0
      %1517 = vmatpush1.msra.mxu0 0.0
      %1518 = vmatprep.subr.mxu0 0.0
      %1519 = vmatpush1.msra.mxu0 0.0
      %1520 = vmatprep.subr.mxu0 0.0
      %1521 = vmatpush1.msra.mxu0 0.0
      %1522 = vmatprep.subr.mxu0 0.0
      %1523 = vmatpush1.msra.mxu0 0.0
      %1524 = vmatprep.subr.mxu0 0.0
      %1525 = vmatpush1.msra.mxu0 0.0
      %1526 = vmatprep.subr.mxu0 0.0
      %1527 = vmatpush1.msra.mxu0 0.0
      %1528 = vmatprep.subr.mxu0 0.0
      %1529 = vmatpush1.msra.mxu0 0.0
      %1530 = vmatprep.subr.mxu0 0.0
      %1531 = vmatpush1.msra.mxu0 0.0
      %1532 = vmatprep.subr.mxu0 0.0
      %1533 = vmatpush1.msra.mxu0 0.0
      %1534 = vmatprep.subr.mxu0 0.0
      %1535 = vmatpush1.msra.mxu0 0.0
      %1536 = vmatprep.subr.mxu0 0.0
      %1537 = vmatpush1.msra.mxu0 0.0
      %1538 = vmatprep.subr.mxu0 0.0
      %1539 = vmatpush1.msra.mxu0 0.0
      %1540 = vmatprep.subr.mxu0 0.0
      %1541 = vmatpush1.msra.mxu0 0.0
      %1542 = vmatprep.subr.mxu0 0.0
      %1543 = vmatpush1.msra.mxu0 0.0
      %1544 = vmatprep.subr.mxu0 0.0
      %1545 = vmatpush1.msra.mxu0 0.0
      %1546 = vmatprep.subr.mxu0 0.0
      %1547 = vmatpush1.msra.mxu0 0.0
      %1548 = vmatprep.subr.mxu0 0.0
      %1549 = vmatpush1.msra.mxu0 0.0
      %1550 = vmatprep.subr.mxu0 0.0
      %1551 = vmatpush1.msra.mxu0 0.0
      %1552 = vmatprep.subr.mxu0 0.0
      %1553 = vmatpush1.msra.mxu0 0.0
      %1554 = vmatprep.mubr.f32.mxu0 0.0
      %1555 = vmatmul.mubr.f32.gmra.mrb[0].mxu0 %v1488
      %v1556 = vpop.f32.mrb[0].mxu0
      %v1557 = vadd.f32 0.0, %v1556
      %v1558 = vpop.f32.mrb[0].mxu0
      %1559 = vdwg.mxu0
      %v1560 = vadd.f32 %v1476, %v1557
      %s1561 = scalar_lea.vmem %s4, 256
      %v1562 = vld [vmem:[%s1561] sm:$0xff]
      %v1563 = vld [vmem:[%s1561 + $0x8] sm:$0xff]
      %v1564 = vld [vmem:[%s1561 + $0x10] sm:$0xff]
      %v1565 = vld [vmem:[%s1561 + $0x18] sm:$0xff]
      %v1566 = vld [vmem:[%s1561 + $0x20] sm:$0xff]
      %v1567 = vld [vmem:[%s1561 + $0x28] sm:$0xff]
      %v1568 = vld [vmem:[%s1561 + $0x30] sm:$0xff]
      %v1569 = vld [vmem:[%s1561 + $0x38] sm:$0xff]
      %1570 = vrot.lane.b32.xlu0 %v1477, 120
      %v1571 = vpop.permute.xlu0 %1570
      %v1572 = vsel %vm1248, %v1571, 0
      %1574 = vmatprep.subr.mxu0 0.0
      %1575 = vmatpush1.msra.mxu0 %v1562
      %1576 = vmatprep.subr.mxu0 0.0
      %1577 = vmatpush1.msra.mxu0 %v1563
      %1578 = vmatprep.subr.mxu0 0.0
      %1579 = vmatpush1.msra.mxu0 %v1564
      %1580 = vmatprep.subr.mxu0 0.0
      %1581 = vmatpush1.msra.mxu0 %v1565
      %1582 = vmatprep.subr.mxu0 0.0
      %1583 = vmatpush1.msra.mxu0 %v1566
      %1584 = vmatprep.subr.mxu0 0.0
      %1585 = vmatpush1.msra.mxu0 %v1567
      %1586 = vmatprep.subr.mxu0 0.0
      %1587 = vmatpush1.msra.mxu0 %v1568
      %1588 = vmatprep.subr.mxu0 0.0
      %1589 = vmatpush1.msra.mxu0 %v1569
      %1590 = vmatprep.subr.mxu0 0.0
      %1591 = vmatpush1.msra.mxu0 0.0
      %1592 = vmatprep.subr.mxu0 0.0
      %1593 = vmatpush1.msra.mxu0 0.0
      %1594 = vmatprep.subr.mxu0 0.0
      %1595 = vmatpush1.msra.mxu0 0.0
      %1596 = vmatprep.subr.mxu0 0.0
      %1597 = vmatpush1.msra.mxu0 0.0
      %1598 = vmatprep.subr.mxu0 0.0
      %1599 = vmatpush1.msra.mxu0 0.0
      %1600 = vmatprep.subr.mxu0 0.0
      %1601 = vmatpush1.msra.mxu0 0.0
      %1602 = vmatprep.subr.mxu0 0.0
      %1603 = vmatpush1.msra.mxu0 0.0
      %1604 = vmatprep.subr.mxu0 0.0
      %1605 = vmatpush1.msra.mxu0 0.0
      %1606 = vmatprep.subr.mxu0 0.0
      %1607 = vmatpush1.msra.mxu0 0.0
      %1608 = vmatprep.subr.mxu0 0.0
      %1609 = vmatpush1.msra.mxu0 0.0
      %1610 = vmatprep.subr.mxu0 0.0
      %1611 = vmatpush1.msra.mxu0 0.0
      %1612 = vmatprep.subr.mxu0 0.0
      %1613 = vmatpush1.msra.mxu0 0.0
      %1614 = vmatprep.subr.mxu0 0.0
      %1615 = vmatpush1.msra.mxu0 0.0
      %1616 = vmatprep.subr.mxu0 0.0
      %1617 = vmatpush1.msra.mxu0 0.0
      %1618 = vmatprep.subr.mxu0 0.0
      %1619 = vmatpush1.msra.mxu0 0.0
      %1620 = vmatprep.subr.mxu0 0.0
      %1621 = vmatpush1.msra.mxu0 0.0
      %1622 = vmatprep.subr.mxu0 0.0
      %1623 = vmatpush1.msra.mxu0 0.0
      %1624 = vmatprep.subr.mxu0 0.0
      %1625 = vmatpush1.msra.mxu0 0.0
      %1626 = vmatprep.subr.mxu0 0.0
      %1627 = vmatpush1.msra.mxu0 0.0
      %1628 = vmatprep.subr.mxu0 0.0
      %1629 = vmatpush1.msra.mxu0 0.0
      %1630 = vmatprep.subr.mxu0 0.0
      %1631 = vmatpush1.msra.mxu0 0.0
      %1632 = vmatprep.subr.mxu0 0.0
      %1633 = vmatpush1.msra.mxu0 0.0
      %1634 = vmatprep.subr.mxu0 0.0
      %1635 = vmatpush1.msra.mxu0 0.0
      %1636 = vmatprep.subr.mxu0 0.0
      %1637 = vmatpush1.msra.mxu0 0.0
      %1638 = vmatprep.mubr.f32.mxu0 0.0
      %1639 = vmatmul.mubr.f32.gmra.mrb[0].mxu0 %v1572
      %v1640 = vpop.f32.mrb[0].mxu0
      %v1641 = vadd.f32 0.0, %v1640
      %v1642 = vpop.f32.mrb[0].mxu0
      %1643 = vdwg.mxu0
      %v1644 = vadd.f32 %v1560, %v1641
      %s1645 = scalar_lea.vmem %s4, 320
      %v1646 = vld [vmem:[%s1645] sm:$0xff]
      %v1647 = vld [vmem:[%s1645 + $0x8] sm:$0xff]
      %v1648 = vld [vmem:[%s1645 + $0x10] sm:$0xff]
      %v1649 = vld [vmem:[%s1645 + $0x18] sm:$0xff]
      %v1650 = vld [vmem:[%s1645 + $0x20] sm:$0xff]
      %v1651 = vld [vmem:[%s1645 + $0x28] sm:$0xff]
      %v1652 = vld [vmem:[%s1645 + $0x30] sm:$0xff]
      %v1653 = vld [vmem:[%s1645 + $0x38] sm:$0xff]
      %1654 = vrot.lane.b32.xlu0 %v1477, 112
      %v1655 = vpop.permute.xlu0 %1654
      %v1656 = vsel %vm1248, %v1655, 0
      %1658 = vmatprep.subr.mxu0 0.0
      %1659 = vmatpush1.msra.mxu0 %v1646
      %1660 = vmatprep.subr.mxu0 0.0
      %1661 = vmatpush1.msra.mxu0 %v1647
      %1662 = vmatprep.subr.mxu0 0.0
      %1663 = vmatpush1.msra.mxu0 %v1648
      %1664 = vmatprep.subr.mxu0 0.0
      %1665 = vmatpush1.msra.mxu0 %v1649
      %1666 = vmatprep.subr.mxu0 0.0
      %1667 = vmatpush1.msra.mxu0 %v1650
      %1668 = vmatprep.subr.mxu0 0.0
      %1669 = vmatpush1.msra.mxu0 %v1651
      %1670 = vmatprep.subr.mxu0 0.0
      %1671 = vmatpush1.msra.mxu0 %v1652
      %1672 = vmatprep.subr.mxu0 0.0
      %1673 = vmatpush1.msra.mxu0 %v1653
      %1674 = vmatprep.subr.mxu0 0.0
      %1675 = vmatpush1.msra.mxu0 0.0
      %1676 = vmatprep.subr.mxu0 0.0
      %1677 = vmatpush1.msra.mxu0 0.0
      %1678 = vmatprep.subr.mxu0 0.0
      %1679 = vmatpush1.msra.mxu0 0.0
      %1680 = vmatprep.subr.mxu0 0.0
      %1681 = vmatpush1.msra.mxu0 0.0
      %1682 = vmatprep.subr.mxu0 0.0
      %1683 = vmatpush1.msra.mxu0 0.0
      %1684 = vmatprep.subr.mxu0 0.0
      %1685 = vmatpush1.msra.mxu0 0.0
      %1686 = vmatprep.subr.mxu0 0.0
      %1687 = vmatpush1.msra.mxu0 0.0
      %1688 = vmatprep.subr.mxu0 0.0
      %1689 = vmatpush1.msra.mxu0 0.0
      %1690 = vmatprep.subr.mxu0 0.0
      %1691 = vmatpush1.msra.mxu0 0.0
      %1692 = vmatprep.subr.mxu0 0.0
      %1693 = vmatpush1.msra.mxu0 0.0
      %1694 = vmatprep.subr.mxu0 0.0
      %1695 = vmatpush1.msra.mxu0 0.0
      %1696 = vmatprep.subr.mxu0 0.0
      %1697 = vmatpush1.msra.mxu0 0.0
      %1698 = vmatprep.subr.mxu0 0.0
      %1699 = vmatpush1.msra.mxu0 0.0
      %1700 = vmatprep.subr.mxu0 0.0
      %1701 = vmatpush1.msra.mxu0 0.0
      %1702 = vmatprep.subr.mxu0 0.0
      %1703 = vmatpush1.msra.mxu0 0.0
      %1704 = vmatprep.subr.mxu0 0.0
      %1705 = vmatpush1.msra.mxu0 0.0
      %1706 = vmatprep.subr.mxu0 0.0
      %1707 = vmatpush1.msra.mxu0 0.0
      %1708 = vmatprep.subr.mxu0 0.0
      %1709 = vmatpush1.msra.mxu0 0.0
      %1710 = vmatprep.subr.mxu0 0.0
      %1711 = vmatpush1.msra.mxu0 0.0
      %1712 = vmatprep.subr.mxu0 0.0
      %1713 = vmatpush1.msra.mxu0 0.0
      %1714 = vmatprep.subr.mxu0 0.0
      %1715 = vmatpush1.msra.mxu0 0.0
      %1716 = vmatprep.subr.mxu0 0.0
      %1717 = vmatpush1.msra.mxu0 0.0
      %1718 = vmatprep.subr.mxu0 0.0
      %1719 = vmatpush1.msra.mxu0 0.0
      %1720 = vmatprep.subr.mxu0 0.0
      %1721 = vmatpush1.msra.mxu0 0.0
      %1722 = vmatprep.mubr.f32.mxu0 0.0
      %1723 = vmatmul.mubr.f32.gmra.mrb[0].mxu0 %v1656
      %v1724 = vpop.f32.mrb[0].mxu0
      %v1725 = vadd.f32 0.0, %v1724
      %v1726 = vpop.f32.mrb[0].mxu0
      %1727 = vdwg.mxu0
      %v1728 = vadd.f32 %v1644, %v1725
      %v1729 = vld [vmem:[#allocation2 + $0x2] sm:$0xff]
      %s1730 = scalar_lea.vmem %s4, 384
      %v1731 = vld [vmem:[%s1730] sm:$0xff]
      %v1732 = vld [vmem:[%s1730 + $0x8] sm:$0xff]
      %v1733 = vld [vmem:[%s1730 + $0x10] sm:$0xff]
      %v1734 = vld [vmem:[%s1730 + $0x18] sm:$0xff]
      %v1735 = vld [vmem:[%s1730 + $0x20] sm:$0xff]
      %v1736 = vld [vmem:[%s1730 + $0x28] sm:$0xff]
      %v1737 = vld [vmem:[%s1730 + $0x30] sm:$0xff]
      %v1738 = vld [vmem:[%s1730 + $0x38] sm:$0xff]
      %v1740 = vsel %vm1248, %v1729, 0
      %1742 = vmatprep.subr.mxu0 0.0
      %1743 = vmatpush1.msra.mxu0 %v1731
      %1744 = vmatprep.subr.mxu0 0.0
      %1745 = vmatpush1.msra.mxu0 %v1732
      %1746 = vmatprep.subr.mxu0 0.0
      %1747 = vmatpush1.msra.mxu0 %v1733
      %1748 = vmatprep.subr.mxu0 0.0
      %1749 = vmatpush1.msra.mxu0 %v1734
      %1750 = vmatprep.subr.mxu0 0.0
      %1751 = vmatpush1.msra.mxu0 %v1735
      %1752 = vmatprep.subr.mxu0 0.0
      %1753 = vmatpush1.msra.mxu0 %v1736
      %1754 = vmatprep.subr.mxu0 0.0
      %1755 = vmatpush1.msra.mxu0 %v1737
      %1756 = vmatprep.subr.mxu0 0.0
      %1757 = vmatpush1.msra.mxu0 %v1738
      %1758 = vmatprep.subr.mxu0 0.0
      %1759 = vmatpush1.msra.mxu0 0.0
      %1760 = vmatprep.subr.mxu0 0.0
      %1761 = vmatpush1.msra.mxu0 0.0
      %1762 = vmatprep.subr.mxu0 0.0
      %1763 = vmatpush1.msra.mxu0 0.0
      %1764 = vmatprep.subr.mxu0 0.0
      %1765 = vmatpush1.msra.mxu0 0.0
      %1766 = vmatprep.subr.mxu0 0.0
      %1767 = vmatpush1.msra.mxu0 0.0
      %1768 = vmatprep.subr.mxu0 0.0
      %1769 = vmatpush1.msra.mxu0 0.0
      %1770 = vmatprep.subr.mxu0 0.0
      %1771 = vmatpush1.msra.mxu0 0.0
      %1772 = vmatprep.subr.mxu0 0.0
      %1773 = vmatpush1.msra.mxu0 0.0
      %1774 = vmatprep.subr.mxu0 0.0
      %1775 = vmatpush1.msra.mxu0 0.0
      %1776 = vmatprep.subr.mxu0 0.0
      %1777 = vmatpush1.msra.mxu0 0.0
      %1778 = vmatprep.subr.mxu0 0.0
      %1779 = vmatpush1.msra.mxu0 0.0
      %1780 = vmatprep.subr.mxu0 0.0
      %1781 = vmatpush1.msra.mxu0 0.0
      %1782 = vmatprep.subr.mxu0 0.0
      %1783 = vmatpush1.msra.mxu0 0.0
      %1784 = vmatprep.subr.mxu0 0.0
      %1785 = vmatpush1.msra.mxu0 0.0
      %1786 = vmatprep.subr.mxu0 0.0
      %1787 = vmatpush1.msra.mxu0 0.0
      %1788 = vmatprep.subr.mxu0 0.0
      %1789 = vmatpush1.msra.mxu0 0.0
      %1790 = vmatprep.subr.mxu0 0.0
      %1791 = vmatpush1.msra.mxu0 0.0
      %1792 = vmatprep.subr.mxu0 0.0
      %1793 = vmatpush1.msra.mxu0 0.0
      %1794 = vmatprep.subr.mxu0 0.0
      %1795 = vmatpush1.msra.mxu0 0.0
      %1796 = vmatprep.subr.mxu0 0.0
      %1797 = vmatpush1.msra.mxu0 0.0
      %1798 = vmatprep.subr.mxu0 0.0
      %1799 = vmatpush1.msra.mxu0 0.0
      %1800 = vmatprep.subr.mxu0 0.0
      %1801 = vmatpush1.msra.mxu0 0.0
      %1802 = vmatprep.subr.mxu0 0.0
      %1803 = vmatpush1.msra.mxu0 0.0
      %1804 = vmatprep.subr.mxu0 0.0
      %1805 = vmatpush1.msra.mxu0 0.0
      %1806 = vmatprep.mubr.f32.mxu0 0.0
      %1807 = vmatmul.mubr.f32.gmra.mrb[0].mxu0 %v1740
      %v1808 = vpop.f32.mrb[0].mxu0
      %v1809 = vadd.f32 0.0, %v1808
      %v1810 = vpop.f32.mrb[0].mxu0
      %1811 = vdwg.mxu0
      %v1812 = vadd.f32 %v1728, %v1809
      %s1813 = scalar_lea.vmem %s4, 448
      %v1814 = vld [vmem:[%s1813] sm:$0xff]
      %v1815 = vld [vmem:[%s1813 + $0x8] sm:$0xff]
      %v1816 = vld [vmem:[%s1813 + $0x10] sm:$0xff]
      %v1817 = vld [vmem:[%s1813 + $0x18] sm:$0xff]
      %v1818 = vld [vmem:[%s1813 + $0x20] sm:$0xff]
      %v1819 = vld [vmem:[%s1813 + $0x28] sm:$0xff]
      %v1820 = vld [vmem:[%s1813 + $0x30] sm:$0xff]
      %v1821 = vld [vmem:[%s1813 + $0x38] sm:$0xff]
      %1822 = vrot.lane.b32.xlu0 %v1729, 120
      %v1823 = vpop.permute.xlu0 %1822
      %v1824 = vsel %vm1248, %v1823, 0
      %1826 = vmatprep.subr.mxu0 0.0
      %1827 = vmatpush1.msra.mxu0 %v1814
      %1828 = vmatprep.subr.mxu0 0.0
      %1829 = vmatpush1.msra.mxu0 %v1815
      %1830 = vmatprep.subr.mxu0 0.0
      %1831 = vmatpush1.msra.mxu0 %v1816
      %1832 = vmatprep.subr.mxu0 0.0
      %1833 = vmatpush1.msra.mxu0 %v1817
      %1834 = vmatprep.subr.mxu0 0.0
      %1835 = vmatpush1.msra.mxu0 %v1818
      %1836 = vmatprep.subr.mxu0 0.0
      %1837 = vmatpush1.msra.mxu0 %v1819
      %1838 = vmatprep.subr.mxu0 0.0
      %1839 = vmatpush1.msra.mxu0 %v1820
      %1840 = vmatprep.subr.mxu0 0.0
      %1841 = vmatpush1.msra.mxu0 %v1821
      %1842 = vmatprep.subr.mxu0 0.0
      %1843 = vmatpush1.msra.mxu0 0.0
      %1844 = vmatprep.subr.mxu0 0.0
      %1845 = vmatpush1.msra.mxu0 0.0
      %1846 = vmatprep.subr.mxu0 0.0
      %1847 = vmatpush1.msra.mxu0 0.0
      %1848 = vmatprep.subr.mxu0 0.0
      %1849 = vmatpush1.msra.mxu0 0.0
      %1850 = vmatprep.subr.mxu0 0.0
      %1851 = vmatpush1.msra.mxu0 0.0
      %1852 = vmatprep.subr.mxu0 0.0
      %1853 = vmatpush1.msra.mxu0 0.0
      %1854 = vmatprep.subr.mxu0 0.0
      %1855 = vmatpush1.msra.mxu0 0.0
      %1856 = vmatprep.subr.mxu0 0.0
      %1857 = vmatpush1.msra.mxu0 0.0
      %1858 = vmatprep.subr.mxu0 0.0
      %1859 = vmatpush1.msra.mxu0 0.0
      %1860 = vmatprep.subr.mxu0 0.0
      %1861 = vmatpush1.msra.mxu0 0.0
      %1862 = vmatprep.subr.mxu0 0.0
      %1863 = vmatpush1.msra.mxu0 0.0
      %1864 = vmatprep.subr.mxu0 0.0
      %1865 = vmatpush1.msra.mxu0 0.0
      %1866 = vmatprep.subr.mxu0 0.0
      %1867 = vmatpush1.msra.mxu0 0.0
      %1868 = vmatprep.subr.mxu0 0.0
      %1869 = vmatpush1.msra.mxu0 0.0
      %1870 = vmatprep.subr.mxu0 0.0
      %1871 = vmatpush1.msra.mxu0 0.0
      %1872 = vmatprep.subr.mxu0 0.0
      %1873 = vmatpush1.msra.mxu0 0.0
      %1874 = vmatprep.subr.mxu0 0.0
      %1875 = vmatpush1.msra.mxu0 0.0
      %1876 = vmatprep.subr.mxu0 0.0
      %1877 = vmatpush1.msra.mxu0 0.0
      %1878 = vmatprep.subr.mxu0 0.0
      %1879 = vmatpush1.msra.mxu0 0.0
      %1880 = vmatprep.subr.mxu0 0.0
      %1881 = vmatpush1.msra.mxu0 0.0
      %1882 = vmatprep.subr.mxu0 0.0
      %1883 = vmatpush1.msra.mxu0 0.0
      %1884 = vmatprep.subr.mxu0 0.0
      %1885 = vmatpush1.msra.mxu0 0.0
      %1886 = vmatprep.subr.mxu0 0.0
      %1887 = vmatpush1.msra.mxu0 0.0
      %1888 = vmatprep.subr.mxu0 0.0
      %1889 = vmatpush1.msra.mxu0 0.0
      %1890 = vmatprep.mubr.f32.mxu0 0.0
      %1891 = vmatmul.mubr.f32.gmra.mrb[0].mxu0 %v1824
      %v1892 = vpop.f32.mrb[0].mxu0
      %v1893 = vadd.f32 0.0, %v1892
      %v1894 = vpop.f32.mrb[0].mxu0
      %1895 = vdwg.mxu0
      %v1896 = vadd.f32 %v1812, %v1893
      %s1897 = scalar_lea.vmem %s4, 512
      %v1898 = vld [vmem:[%s1897] sm:$0xff]
      %v1899 = vld [vmem:[%s1897 + $0x8] sm:$0xff]
      %v1900 = vld [vmem:[%s1897 + $0x10] sm:$0xff]
      %v1901 = vld [vmem:[%s1897 + $0x18] sm:$0xff]
      %v1902 = vld [vmem:[%s1897 + $0x20] sm:$0xff]
      %v1903 = vld [vmem:[%s1897 + $0x28] sm:$0xff]
      %v1904 = vld [vmem:[%s1897 + $0x30] sm:$0xff]
      %v1905 = vld [vmem:[%s1897 + $0x38] sm:$0xff]
      %1906 = vrot.lane.b32.xlu0 %v1729, 112
      %v1907 = vpop.permute.xlu0 %1906
      %v1908 = vsel %vm1248, %v1907, 0
      %1910 = vmatprep.subr.mxu0 0.0
      %1911 = vmatpush1.msra.mxu0 %v1898
      %1912 = vmatprep.subr.mxu0 0.0
      %1913 = vmatpush1.msra.mxu0 %v1899
      %1914 = vmatprep.subr.mxu0 0.0
      %1915 = vmatpush1.msra.mxu0 %v1900
      %1916 = vmatprep.subr.mxu0 0.0
      %1917 = vmatpush1.msra.mxu0 %v1901
      %1918 = vmatprep.subr.mxu0 0.0
      %1919 = vmatpush1.msra.mxu0 %v1902
      %1920 = vmatprep.subr.mxu0 0.0
      %1921 = vmatpush1.msra.mxu0 %v1903
      %1922 = vmatprep.subr.mxu0 0.0
      %1923 = vmatpush1.msra.mxu0 %v1904
      %1924 = vmatprep.subr.mxu0 0.0
      %1925 = vmatpush1.msra.mxu0 %v1905
      %1926 = vmatprep.subr.mxu0 0.0
      %1927 = vmatpush1.msra.mxu0 0.0
      %1928 = vmatprep.subr.mxu0 0.0
      %1929 = vmatpush1.msra.mxu0 0.0
      %1930 = vmatprep.subr.mxu0 0.0
      %1931 = vmatpush1.msra.mxu0 0.0
      %1932 = vmatprep.subr.mxu0 0.0
      %1933 = vmatpush1.msra.mxu0 0.0
      %1934 = vmatprep.subr.mxu0 0.0
      %1935 = vmatpush1.msra.mxu0 0.0
      %1936 = vmatprep.subr.mxu0 0.0
      %1937 = vmatpush1.msra.mxu0 0.0
      %1938 = vmatprep.subr.mxu0 0.0
      %1939 = vmatpush1.msra.mxu0 0.0
      %1940 = vmatprep.subr.mxu0 0.0
      %1941 = vmatpush1.msra.mxu0 0.0
      %1942 = vmatprep.subr.mxu0 0.0
      %1943 = vmatpush1.msra.mxu0 0.0
      %1944 = vmatprep.subr.mxu0 0.0
      %1945 = vmatpush1.msra.mxu0 0.0
      %1946 = vmatprep.subr.mxu0 0.0
      %1947 = vmatpush1.msra.mxu0 0.0
      %1948 = vmatprep.subr.mxu0 0.0
      %1949 = vmatpush1.msra.mxu0 0.0
      %1950 = vmatprep.subr.mxu0 0.0
      %1951 = vmatpush1.msra.mxu0 0.0
      %1952 = vmatprep.subr.mxu0 0.0
      %1953 = vmatpush1.msra.mxu0 0.0
      %1954 = vmatprep.subr.mxu0 0.0
      %1955 = vmatpush1.msra.mxu0 0.0
      %1956 = vmatprep.subr.mxu0 0.0
      %1957 = vmatpush1.msra.mxu0 0.0
      %1958 = vmatprep.subr.mxu0 0.0
      %1959 = vmatpush1.msra.mxu0 0.0
      %1960 = vmatprep.subr.mxu0 0.0
      %1961 = vmatpush1.msra.mxu0 0.0
      %1962 = vmatprep.subr.mxu0 0.0
      %1963 = vmatpush1.msra.mxu0 0.0
      %1964 = vmatprep.subr.mxu0 0.0
      %1965 = vmatpush1.msra.mxu0 0.0
      %1966 = vmatprep.subr.mxu0 0.0
      %1967 = vmatpush1.msra.mxu0 0.0
      %1968 = vmatprep.subr.mxu0 0.0
      %1969 = vmatpush1.msra.mxu0 0.0
      %1970 = vmatprep.subr.mxu0 0.0
      %1971 = vmatpush1.msra.mxu0 0.0
      %1972 = vmatprep.subr.mxu0 0.0
      %1973 = vmatpush1.msra.mxu0 0.0
      %1974 = vmatprep.mubr.f32.mxu0 0.0
      %1975 = vmatmul.mubr.f32.gmra.mrb[0].mxu0 %v1908
      %v1976 = vpop.f32.mrb[0].mxu0
      %v1977 = vadd.f32 0.0, %v1976
      %v1978 = vpop.f32.mrb[0].mxu0
      %1979 = vdwg.mxu0
      %v1980 = vadd.f32 %v1896, %v1977
      %v1981 = vld [vmem:[%s5] sm:$0x1]
      %v1983 = vlaneseq
      %v1984 = vshrl.u32 %v1983, 7
      %v1985 = vsub.s32 0, %v1984
      %v1986 = vrot.slane %v1981, %v1985
      %v1988 = vadd.f32 %v1980, %v1986
      %1989 = vst [vmem:[#allocation3] sm:$0xff] %v1988
      %v1990 = vld [vmem:[%s373] sm:$0xff]
      %v1991 = vld [vmem:[%s373 + $0x8] sm:$0x3f]
      %v1992 = vld [vmem:[%s6] sm:$0xff]
      %v1993 = vld [vmem:[%s6 + $0x8] sm:$0xff]
      %v1994 = vld [vmem:[%s6 + $0x10] sm:$0xff]
      %v1995 = vld [vmem:[%s6 + $0x18] sm:$0xff]
      %v1996 = vld [vmem:[%s6 + $0x20] sm:$0xff]
      %v1997 = vld [vmem:[%s6 + $0x28] sm:$0x3]
      %s1998 = scalar_lea.vmem %s6, 48
      %v1999 = vld [vmem:[%s1998] sm:$0xff]
      %v2000 = vld [vmem:[%s1998 + $0x8] sm:$0xff]
      %v2001 = vld [vmem:[%s1998 + $0x10] sm:$0xff]
      %v2002 = vld [vmem:[%s1998 + $0x18] sm:$0xff]
      %v2003 = vld [vmem:[%s1998 + $0x20] sm:$0xff]
      %v2004 = vld [vmem:[%s1998 + $0x28] sm:$0x3]
      %2007 = vrot.lane.b32.xlu0 %v1990, 125
      %v2008 = vpop.permute.xlu0 %2007
      %2009 = vrot.lane.b32.xlu0 %v1991, 125
      %v2010 = vpop.permute.xlu0 %2009
      %vm2011 = vcmask 343040
      %v2012 = vsel %vm2011, %v2008, 0
      %v2014 = vsel %vm2011, %v2010, 0
      %vm2016 = vcmask 1041408
      %v2018 = vsel %vm2016, %v2004, 0
      %2020 = vmatprep.subr.mxu0 0.0
      %2021 = vmatpush1.msra.mxu0 %v1999
      %2022 = vmatprep.subr.mxu0 0.0
      %2023 = vmatpush1.msra.mxu0 %v2000
      %2024 = vmatprep.subr.mxu0 0.0
      %2025 = vmatpush1.msra.mxu0 %v2001
      %2026 = vmatprep.subr.mxu0 0.0
      %2027 = vmatpush1.msra.mxu0 %v2002
      %2028 = vmatprep.subr.mxu0 0.0
      %2029 = vmatpush1.msra.mxu0 %v2003
      %2030 = vmatprep.subr.mxu0 0.0
      %2031 = vmatpush1.msra.mxu0 %v2018
      %2032 = vmatprep.subr.mxu0 0.0
      %2033 = vmatpush1.msra.mxu0 0.0
      %2034 = vmatprep.subr.mxu0 0.0
      %2035 = vmatpush1.msra.mxu0 0.0
      %2036 = vmatprep.subr.mxu0 0.0
      %2037 = vmatpush1.msra.mxu0 0.0
      %2038 = vmatprep.subr.mxu0 0.0
      %2039 = vmatpush1.msra.mxu0 0.0
      %2040 = vmatprep.subr.mxu0 0.0
      %2041 = vmatpush1.msra.mxu0 0.0
      %2042 = vmatprep.subr.mxu0 0.0
      %2043 = vmatpush1.msra.mxu0 0.0
      %2044 = vmatprep.subr.mxu0 0.0
      %2045 = vmatpush1.msra.mxu0 0.0
      %2046 = vmatprep.subr.mxu0 0.0
      %2047 = vmatpush1.msra.mxu0 0.0
      %2048 = vmatprep.subr.mxu0 0.0
      %2049 = vmatpush1.msra.mxu0 0.0
      %2050 = vmatprep.subr.mxu0 0.0
      %2051 = vmatpush1.msra.mxu0 0.0
      %2052 = vmatprep.subr.mxu0 0.0
      %2053 = vmatpush1.msra.mxu0 0.0
      %2054 = vmatprep.subr.mxu0 0.0
      %2055 = vmatpush1.msra.mxu0 0.0
      %2056 = vmatprep.subr.mxu0 0.0
      %2057 = vmatpush1.msra.mxu0 0.0
      %2058 = vmatprep.subr.mxu0 0.0
      %2059 = vmatpush1.msra.mxu0 0.0
      %2060 = vmatprep.subr.mxu0 0.0
      %2061 = vmatpush1.msra.mxu0 0.0
      %2062 = vmatprep.subr.mxu0 0.0
      %2063 = vmatpush1.msra.mxu0 0.0
      %2064 = vmatprep.subr.mxu0 0.0
      %2065 = vmatpush1.msra.mxu0 0.0
      %2066 = vmatprep.subr.mxu0 0.0
      %2067 = vmatpush1.msra.mxu0 0.0
      %2068 = vmatprep.subr.mxu0 0.0
      %2069 = vmatpush1.msra.mxu0 0.0
      %2070 = vmatprep.subr.mxu0 0.0
      %2071 = vmatpush1.msra.mxu0 0.0
      %2072 = vmatprep.subr.mxu0 0.0
      %2073 = vmatpush1.msra.mxu0 0.0
      %2074 = vmatprep.subr.mxu0 0.0
      %2075 = vmatpush1.msra.mxu0 0.0
      %2076 = vmatprep.subr.mxu0 0.0
      %2077 = vmatpush1.msra.mxu0 0.0
      %2078 = vmatprep.subr.mxu0 0.0
      %2079 = vmatpush1.msra.mxu0 0.0
      %2080 = vmatprep.subr.mxu0 0.0
      %2081 = vmatpush1.msra.mxu0 0.0
      %2082 = vmatprep.subr.mxu0 0.0
      %2083 = vmatpush1.msra.mxu0 0.0
      %2084 = vmatprep.mubr.f32.mxu0 0.0
      %2085 = vmatmul.mubr.f32.gmra.mrb[0].mxu0 %v2012
      %v2086 = vpop.f32.mrb[0].mxu0
      %v2087 = vadd.f32 0.0, %v2086
      %v2088 = vpop.f32.mrb[0].mxu0
      %2089 = vmatprep.mubr.f32.mxu0 0.0
      %2090 = vmatmul.mubr.f32.gmra.mrb[0].mxu0 %v2014
      %v2091 = vpop.f32.mrb[0].mxu0
      %v2092 = vadd.f32 0.0, %v2091
      %v2093 = vpop.f32.mrb[0].mxu0
      %2094 = vdwg.mxu0
      %v2095 = vsel %vm2011, %v1990, 0
      %v2097 = vsel %vm2011, %v1991, 0
      %v2100 = vsel %vm2016, %v1997, 0
      %2102 = vmatprep.subr.mxu0 0.0
      %2103 = vmatpush1.msra.mxu0 %v1992
      %2104 = vmatprep.subr.mxu0 0.0
      %2105 = vmatpush1.msra.mxu0 %v1993
      %2106 = vmatprep.subr.mxu0 0.0
      %2107 = vmatpush1.msra.mxu0 %v1994
      %2108 = vmatprep.subr.mxu0 0.0
      %2109 = vmatpush1.msra.mxu0 %v1995
      %2110 = vmatprep.subr.mxu0 0.0
      %2111 = vmatpush1.msra.mxu0 %v1996
      %2112 = vmatprep.subr.mxu0 0.0
      %2113 = vmatpush1.msra.mxu0 %v2100
      %2114 = vmatprep.subr.mxu0 0.0
      %2115 = vmatpush1.msra.mxu0 0.0
      %2116 = vmatprep.subr.mxu0 0.0
      %2117 = vmatpush1.msra.mxu0 0.0
      %2118 = vmatprep.subr.mxu0 0.0
      %2119 = vmatpush1.msra.mxu0 0.0
      %2120 = vmatprep.subr.mxu0 0.0
      %2121 = vmatpush1.msra.mxu0 0.0
      %2122 = vmatprep.subr.mxu0 0.0
      %2123 = vmatpush1.msra.mxu0 0.0
      %2124 = vmatprep.subr.mxu0 0.0
      %2125 = vmatpush1.msra.mxu0 0.0
      %2126 = vmatprep.subr.mxu0 0.0
      %2127 = vmatpush1.msra.mxu0 0.0
      %2128 = vmatprep.subr.mxu0 0.0
      %2129 = vmatpush1.msra.mxu0 0.0
      %2130 = vmatprep.subr.mxu0 0.0
      %2131 = vmatpush1.msra.mxu0 0.0
      %2132 = vmatprep.subr.mxu0 0.0
      %2133 = vmatpush1.msra.mxu0 0.0
      %2134 = vmatprep.subr.mxu0 0.0
      %2135 = vmatpush1.msra.mxu0 0.0
      %2136 = vmatprep.subr.mxu0 0.0
      %2137 = vmatpush1.msra.mxu0 0.0
      %2138 = vmatprep.subr.mxu0 0.0
      %2139 = vmatpush1.msra.mxu0 0.0
      %2140 = vmatprep.subr.mxu0 0.0
      %2141 = vmatpush1.msra.mxu0 0.0
      %2142 = vmatprep.subr.mxu0 0.0
      %2143 = vmatpush1.msra.mxu0 0.0
      %2144 = vmatprep.subr.mxu0 0.0
      %2145 = vmatpush1.msra.mxu0 0.0
      %2146 = vmatprep.subr.mxu0 0.0
      %2147 = vmatpush1.msra.mxu0 0.0
      %2148 = vmatprep.subr.mxu0 0.0
      %2149 = vmatpush1.msra.mxu0 0.0
      %2150 = vmatprep.subr.mxu0 0.0
      %2151 = vmatpush1.msra.mxu0 0.0
      %2152 = vmatprep.subr.mxu0 0.0
      %2153 = vmatpush1.msra.mxu0 0.0
      %2154 = vmatprep.subr.mxu0 0.0
      %2155 = vmatpush1.msra.mxu0 0.0
      %2156 = vmatprep.subr.mxu0 0.0
      %2157 = vmatpush1.msra.mxu0 0.0
      %2158 = vmatprep.subr.mxu0 0.0
      %2159 = vmatpush1.msra.mxu0 0.0
      %2160 = vmatprep.subr.mxu0 0.0
      %2161 = vmatpush1.msra.mxu0 0.0
      %2162 = vmatprep.subr.mxu0 0.0
      %2163 = vmatpush1.msra.mxu0 0.0
      %2164 = vmatprep.subr.mxu0 0.0
      %2165 = vmatpush1.msra.mxu0 0.0
      %2166 = vmatprep.mubr.f32.mxu0 0.0
      %2167 = vmatmul.mubr.f32.gmra.mrb[0].mxu0 %v2095
      %v2168 = vpop.f32.mrb[0].mxu0
      %v2169 = vadd.f32 %v2087, %v2168
      %v2170 = vpop.f32.mrb[0].mxu0
      %2171 = vmatprep.mubr.f32.mxu0 0.0
      %2172 = vmatmul.mubr.f32.gmra.mrb[0].mxu0 %v2097
      %v2173 = vpop.f32.mrb[0].mxu0
      %v2174 = vadd.f32 %v2092, %v2173
      %v2175 = vpop.f32.mrb[0].mxu0
      %2176 = vdwg.mxu0
      %s2177 = scalar_lea.vmem %s6, 96
      %v2178 = vld [vmem:[%s2177] sm:$0xff]
      %v2179 = vld [vmem:[%s2177 + $0x8] sm:$0xff]
      %v2180 = vld [vmem:[%s2177 + $0x10] sm:$0xff]
      %v2181 = vld [vmem:[%s2177 + $0x18] sm:$0xff]
      %v2182 = vld [vmem:[%s2177 + $0x20] sm:$0xff]
      %v2183 = vld [vmem:[%s2177 + $0x28] sm:$0x3]
      %2184 = vrot.lane.b32.xlu0 %v1990, 122
      %v2185 = vpop.permute.xlu0 %2184
      %2186 = vrot.lane.b32.xlu0 %v1991, 122
      %v2187 = vpop.permute.xlu0 %2186
      %v2188 = vsel %vm2011, %v2185, 0
      %v2190 = vsel %vm2011, %v2187, 0
      %v2193 = vsel %vm2016, %v2183, 0
      %2195 = vmatprep.subr.mxu0 0.0
      %2196 = vmatpush1.msra.mxu0 %v2178
      %2197 = vmatprep.subr.mxu0 0.0
      %2198 = vmatpush1.msra.mxu0 %v2179
      %2199 = vmatprep.subr.mxu0 0.0
      %2200 = vmatpush1.msra.mxu0 %v2180
      %2201 = vmatprep.subr.mxu0 0.0
      %2202 = vmatpush1.msra.mxu0 %v2181
      %2203 = vmatprep.subr.mxu0 0.0
      %2204 = vmatpush1.msra.mxu0 %v2182
      %2205 = vmatprep.subr.mxu0 0.0
      %2206 = vmatpush1.msra.mxu0 %v2193
      %2207 = vmatprep.subr.mxu0 0.0
      %2208 = vmatpush1.msra.mxu0 0.0
      %2209 = vmatprep.subr.mxu0 0.0
      %2210 = vmatpush1.msra.mxu0 0.0
      %2211 = vmatprep.subr.mxu0 0.0
      %2212 = vmatpush1.msra.mxu0 0.0
      %2213 = vmatprep.subr.mxu0 0.0
      %2214 = vmatpush1.msra.mxu0 0.0
      %2215 = vmatprep.subr.mxu0 0.0
      %2216 = vmatpush1.msra.mxu0 0.0
      %2217 = vmatprep.subr.mxu0 0.0
      %2218 = vmatpush1.msra.mxu0 0.0
      %2219 = vmatprep.subr.mxu0 0.0
      %2220 = vmatpush1.msra.mxu0 0.0
      %2221 = vmatprep.subr.mxu0 0.0
      %2222 = vmatpush1.msra.mxu0 0.0
      %2223 = vmatprep.subr.mxu0 0.0
      %2224 = vmatpush1.msra.mxu0 0.0
      %2225 = vmatprep.subr.mxu0 0.0
      %2226 = vmatpush1.msra.mxu0 0.0
      %2227 = vmatprep.subr.mxu0 0.0
      %2228 = vmatpush1.msra.mxu0 0.0
      %2229 = vmatprep.subr.mxu0 0.0
      %2230 = vmatpush1.msra.mxu0 0.0
      %2231 = vmatprep.subr.mxu0 0.0
      %2232 = vmatpush1.msra.mxu0 0.0
      %2233 = vmatprep.subr.mxu0 0.0
      %2234 = vmatpush1.msra.mxu0 0.0
      %2235 = vmatprep.subr.mxu0 0.0
      %2236 = vmatpush1.msra.mxu0 0.0
      %2237 = vmatprep.subr.mxu0 0.0
      %2238 = vmatpush1.msra.mxu0 0.0
      %2239 = vmatprep.subr.mxu0 0.0
      %2240 = vmatpush1.msra.mxu0 0.0
      %2241 = vmatprep.subr.mxu0 0.0
      %2242 = vmatpush1.msra.mxu0 0.0
      %2243 = vmatprep.subr.mxu0 0.0
      %2244 = vmatpush1.msra.mxu0 0.0
      %2245 = vmatprep.subr.mxu0 0.0
      %2246 = vmatpush1.msra.mxu0 0.0
      %2247 = vmatprep.subr.mxu0 0.0
      %2248 = vmatpush1.msra.mxu0 0.0
      %2249 = vmatprep.subr.mxu0 0.0
      %2250 = vmatpush1.msra.mxu0 0.0
      %2251 = vmatprep.subr.mxu0 0.0
      %2252 = vmatpush1.msra.mxu0 0.0
      %2253 = vmatprep.subr.mxu0 0.0
      %2254 = vmatpush1.msra.mxu0 0.0
      %2255 = vmatprep.subr.mxu0 0.0
      %2256 = vmatpush1.msra.mxu0 0.0
      %2257 = vmatprep.subr.mxu0 0.0
      %2258 = vmatpush1.msra.mxu0 0.0
      %2259 = vmatprep.mubr.f32.mxu0 0.0
      %2260 = vmatmul.mubr.f32.gmra.mrb[0].mxu0 %v2188
      %v2261 = vpop.f32.mrb[0].mxu0
      %v2262 = vadd.f32 0.0, %v2261
      %v2263 = vpop.f32.mrb[0].mxu0
      %2264 = vmatprep.mubr.f32.mxu0 0.0
      %2265 = vmatmul.mubr.f32.gmra.mrb[0].mxu0 %v2190
      %v2266 = vpop.f32.mrb[0].mxu0
      %v2267 = vadd.f32 0.0, %v2266
      %v2268 = vpop.f32.mrb[0].mxu0
      %2269 = vdwg.mxu0
      %v2270 = vadd.f32 %v2169, %v2262
      %v2271 = vadd.f32 %v2174, %v2267
      %v2272 = vld [vmem:[%s373 + $0x1] sm:$0xff]
      %v2273 = vld [vmem:[%s373 + $0x9] sm:$0x3f]
      %s2274 = scalar_lea.vmem %s6, 144
      %v2275 = vld [vmem:[%s2274] sm:$0xff]
      %v2276 = vld [vmem:[%s2274 + $0x8] sm:$0xff]
      %v2277 = vld [vmem:[%s2274 + $0x10] sm:$0xff]
      %v2278 = vld [vmem:[%s2274 + $0x18] sm:$0xff]
      %v2279 = vld [vmem:[%s2274 + $0x20] sm:$0xff]
      %v2280 = vld [vmem:[%s2274 + $0x28] sm:$0x3]
      %v2282 = vsel %vm2011, %v2272, 0
      %v2285 = vsel %vm2011, %v2273, 0
      %v2288 = vsel %vm2016, %v2280, 0
      %2290 = vmatprep.subr.mxu0 0.0
      %2291 = vmatpush1.msra.mxu0 %v2275
      %2292 = vmatprep.subr.mxu0 0.0
      %2293 = vmatpush1.msra.mxu0 %v2276
      %2294 = vmatprep.subr.mxu0 0.0
      %2295 = vmatpush1.msra.mxu0 %v2277
      %2296 = vmatprep.subr.mxu0 0.0
      %2297 = vmatpush1.msra.mxu0 %v2278
      %2298 = vmatprep.subr.mxu0 0.0
      %2299 = vmatpush1.msra.mxu0 %v2279
      %2300 = vmatprep.subr.mxu0 0.0
      %2301 = vmatpush1.msra.mxu0 %v2288
      %2302 = vmatprep.subr.mxu0 0.0
      %2303 = vmatpush1.msra.mxu0 0.0
      %2304 = vmatprep.subr.mxu0 0.0
      %2305 = vmatpush1.msra.mxu0 0.0
      %2306 = vmatprep.subr.mxu0 0.0
      %2307 = vmatpush1.msra.mxu0 0.0
      %2308 = vmatprep.subr.mxu0 0.0
      %2309 = vmatpush1.msra.mxu0 0.0
      %2310 = vmatprep.subr.mxu0 0.0
      %2311 = vmatpush1.msra.mxu0 0.0
      %2312 = vmatprep.subr.mxu0 0.0
      %2313 = vmatpush1.msra.mxu0 0.0
      %2314 = vmatprep.subr.mxu0 0.0
      %2315 = vmatpush1.msra.mxu0 0.0
      %2316 = vmatprep.subr.mxu0 0.0
      %2317 = vmatpush1.msra.mxu0 0.0
      %2318 = vmatprep.subr.mxu0 0.0
      %2319 = vmatpush1.msra.mxu0 0.0
      %2320 = vmatprep.subr.mxu0 0.0
      %2321 = vmatpush1.msra.mxu0 0.0
      %2322 = vmatprep.subr.mxu0 0.0
      %2323 = vmatpush1.msra.mxu0 0.0
      %2324 = vmatprep.subr.mxu0 0.0
      %2325 = vmatpush1.msra.mxu0 0.0
      %2326 = vmatprep.subr.mxu0 0.0
      %2327 = vmatpush1.msra.mxu0 0.0
      %2328 = vmatprep.subr.mxu0 0.0
      %2329 = vmatpush1.msra.mxu0 0.0
      %2330 = vmatprep.subr.mxu0 0.0
      %2331 = vmatpush1.msra.mxu0 0.0
      %2332 = vmatprep.subr.mxu0 0.0
      %2333 = vmatpush1.msra.mxu0 0.0
      %2334 = vmatprep.subr.mxu0 0.0
      %2335 = vmatpush1.msra.mxu0 0.0
      %2336 = vmatprep.subr.mxu0 0.0
      %2337 = vmatpush1.msra.mxu0 0.0
      %2338 = vmatprep.subr.mxu0 0.0
      %2339 = vmatpush1.msra.mxu0 0.0
      %2340 = vmatprep.subr.mxu0 0.0
      %2341 = vmatpush1.msra.mxu0 0.0
      %2342 = vmatprep.subr.mxu0 0.0
      %2343 = vmatpush1.msra.mxu0 0.0
      %2344 = vmatprep.subr.mxu0 0.0
      %2345 = vmatpush1.msra.mxu0 0.0
      %2346 = vmatprep.subr.mxu0 0.0
      %2347 = vmatpush1.msra.mxu0 0.0
      %2348 = vmatprep.subr.mxu0 0.0
      %2349 = vmatpush1.msra.mxu0 0.0
      %2350 = vmatprep.subr.mxu0 0.0
      %2351 = vmatpush1.msra.mxu0 0.0
      %2352 = vmatprep.subr.mxu0 0.0
      %2353 = vmatpush1.msra.mxu0 0.0
      %2354 = vmatprep.mubr.f32.mxu0 0.0
      %2355 = vmatmul.mubr.f32.gmra.mrb[0].mxu0 %v2282
      %v2356 = vpop.f32.mrb[0].mxu0
      %v2357 = vadd.f32 0.0, %v2356
      %v2358 = vpop.f32.mrb[0].mxu0
      %2359 = vmatprep.mubr.f32.mxu0 0.0
      %2360 = vmatmul.mubr.f32.gmra.mrb[0].mxu0 %v2285
      %v2361 = vpop.f32.mrb[0].mxu0
      %v2362 = vadd.f32 0.0, %v2361
      %v2363 = vpop.f32.mrb[0].mxu0
      %2364 = vdwg.mxu0
      %v2365 = vadd.f32 %v2270, %v2357
      %v2366 = vadd.f32 %v2271, %v2362
      %s2367 = scalar_lea.vmem %s6, 192
      %v2368 = vld [vmem:[%s2367] sm:$0xff]
      %v2369 = vld [vmem:[%s2367 + $0x8] sm:$0xff]
      %v2370 = vld [vmem:[%s2367 + $0x10] sm:$0xff]
      %v2371 = vld [vmem:[%s2367 + $0x18] sm:$0xff]
      %v2372 = vld [vmem:[%s2367 + $0x20] sm:$0xff]
      %v2373 = vld [vmem:[%s2367 + $0x28] sm:$0x3]
      %2374 = vrot.lane.b32.xlu0 %v2272, 125
      %v2375 = vpop.permute.xlu0 %2374
      %2376 = vrot.lane.b32.xlu0 %v2273, 125
      %v2377 = vpop.permute.xlu0 %2376
      %v2378 = vsel %vm2011, %v2375, 0
      %v2380 = vsel %vm2011, %v2377, 0
      %v2383 = vsel %vm2016, %v2373, 0
      %2385 = vmatprep.subr.mxu0 0.0
      %2386 = vmatpush1.msra.mxu0 %v2368
      %2387 = vmatprep.subr.mxu0 0.0
      %2388 = vmatpush1.msra.mxu0 %v2369
      %2389 = vmatprep.subr.mxu0 0.0
      %2390 = vmatpush1.msra.mxu0 %v2370
      %2391 = vmatprep.subr.mxu0 0.0
      %2392 = vmatpush1.msra.mxu0 %v2371
      %2393 = vmatprep.subr.mxu0 0.0
      %2394 = vmatpush1.msra.mxu0 %v2372
      %2395 = vmatprep.subr.mxu0 0.0
      %2396 = vmatpush1.msra.mxu0 %v2383
      %2397 = vmatprep.subr.mxu0 0.0
      %2398 = vmatpush1.msra.mxu0 0.0
      %2399 = vmatprep.subr.mxu0 0.0
      %2400 = vmatpush1.msra.mxu0 0.0
      %2401 = vmatprep.subr.mxu0 0.0
      %2402 = vmatpush1.msra.mxu0 0.0
      %2403 = vmatprep.subr.mxu0 0.0
      %2404 = vmatpush1.msra.mxu0 0.0
      %2405 = vmatprep.subr.mxu0 0.0
      %2406 = vmatpush1.msra.mxu0 0.0
      %2407 = vmatprep.subr.mxu0 0.0
      %2408 = vmatpush1.msra.mxu0 0.0
      %2409 = vmatprep.subr.mxu0 0.0
      %2410 = vmatpush1.msra.mxu0 0.0
      %2411 = vmatprep.subr.mxu0 0.0
      %2412 = vmatpush1.msra.mxu0 0.0
      %2413 = vmatprep.subr.mxu0 0.0
      %2414 = vmatpush1.msra.mxu0 0.0
      %2415 = vmatprep.subr.mxu0 0.0
      %2416 = vmatpush1.msra.mxu0 0.0
      %2417 = vmatprep.subr.mxu0 0.0
      %2418 = vmatpush1.msra.mxu0 0.0
      %2419 = vmatprep.subr.mxu0 0.0
      %2420 = vmatpush1.msra.mxu0 0.0
      %2421 = vmatprep.subr.mxu0 0.0
      %2422 = vmatpush1.msra.mxu0 0.0
      %2423 = vmatprep.subr.mxu0 0.0
      %2424 = vmatpush1.msra.mxu0 0.0
      %2425 = vmatprep.subr.mxu0 0.0
      %2426 = vmatpush1.msra.mxu0 0.0
      %2427 = vmatprep.subr.mxu0 0.0
      %2428 = vmatpush1.msra.mxu0 0.0
      %2429 = vmatprep.subr.mxu0 0.0
      %2430 = vmatpush1.msra.mxu0 0.0
      %2431 = vmatprep.subr.mxu0 0.0
      %2432 = vmatpush1.msra.mxu0 0.0
      %2433 = vmatprep.subr.mxu0 0.0
      %2434 = vmatpush1.msra.mxu0 0.0
      %2435 = vmatprep.subr.mxu0 0.0
      %2436 = vmatpush1.msra.mxu0 0.0
      %2437 = vmatprep.subr.mxu0 0.0
      %2438 = vmatpush1.msra.mxu0 0.0
      %2439 = vmatprep.subr.mxu0 0.0
      %2440 = vmatpush1.msra.mxu0 0.0
      %2441 = vmatprep.subr.mxu0 0.0
      %2442 = vmatpush1.msra.mxu0 0.0
      %2443 = vmatprep.subr.mxu0 0.0
      %2444 = vmatpush1.msra.mxu0 0.0
      %2445 = vmatprep.subr.mxu0 0.0
      %2446 = vmatpush1.msra.mxu0 0.0
      %2447 = vmatprep.subr.mxu0 0.0
      %2448 = vmatpush1.msra.mxu0 0.0
      %2449 = vmatprep.mubr.f32.mxu0 0.0
      %2450 = vmatmul.mubr.f32.gmra.mrb[0].mxu0 %v2378
      %v2451 = vpop.f32.mrb[0].mxu0
      %v2452 = vadd.f32 0.0, %v2451
      %v2453 = vpop.f32.mrb[0].mxu0
      %2454 = vmatprep.mubr.f32.mxu0 0.0
      %2455 = vmatmul.mubr.f32.gmra.mrb[0].mxu0 %v2380
      %v2456 = vpop.f32.mrb[0].mxu0
      %v2457 = vadd.f32 0.0, %v2456
      %v2458 = vpop.f32.mrb[0].mxu0
      %2459 = vdwg.mxu0
      %v2460 = vadd.f32 %v2365, %v2452
      %v2461 = vadd.f32 %v2366, %v2457
      %s2462 = scalar_lea.vmem %s6, 240
      %v2463 = vld [vmem:[%s2462] sm:$0xff]
      %v2464 = vld [vmem:[%s2462 + $0x8] sm:$0xff]
      %v2465 = vld [vmem:[%s2462 + $0x10] sm:$0xff]
      %v2466 = vld [vmem:[%s2462 + $0x18] sm:$0xff]
      %v2467 = vld [vmem:[%s2462 + $0x20] sm:$0xff]
      %v2468 = vld [vmem:[%s2462 + $0x28] sm:$0x3]
      %2469 = vrot.lane.b32.xlu0 %v2272, 122
      %v2470 = vpop.permute.xlu0 %2469
      %2471 = vrot.lane.b32.xlu0 %v2273, 122
      %v2472 = vpop.permute.xlu0 %2471
      %v2473 = vsel %vm2011, %v2470, 0
      %v2475 = vsel %vm2011, %v2472, 0
      %v2478 = vsel %vm2016, %v2468, 0
      %2480 = vmatprep.subr.mxu0 0.0
      %2481 = vmatpush1.msra.mxu0 %v2463
      %2482 = vmatprep.subr.mxu0 0.0
      %2483 = vmatpush1.msra.mxu0 %v2464
      %2484 = vmatprep.subr.mxu0 0.0
      %2485 = vmatpush1.msra.mxu0 %v2465
      %2486 = vmatprep.subr.mxu0 0.0
      %2487 = vmatpush1.msra.mxu0 %v2466
      %2488 = vmatprep.subr.mxu0 0.0
      %2489 = vmatpush1.msra.mxu0 %v2467
      %2490 = vmatprep.subr.mxu0 0.0
      %2491 = vmatpush1.msra.mxu0 %v2478
      %2492 = vmatprep.subr.mxu0 0.0
      %2493 = vmatpush1.msra.mxu0 0.0
      %2494 = vmatprep.subr.mxu0 0.0
      %2495 = vmatpush1.msra.mxu0 0.0
      %2496 = vmatprep.subr.mxu0 0.0
      %2497 = vmatpush1.msra.mxu0 0.0
      %2498 = vmatprep.subr.mxu0 0.0
      %2499 = vmatpush1.msra.mxu0 0.0
      %2500 = vmatprep.subr.mxu0 0.0
      %2501 = vmatpush1.msra.mxu0 0.0
      %2502 = vmatprep.subr.mxu0 0.0
      %2503 = vmatpush1.msra.mxu0 0.0
      %2504 = vmatprep.subr.mxu0 0.0
      %2505 = vmatpush1.msra.mxu0 0.0
      %2506 = vmatprep.subr.mxu0 0.0
      %2507 = vmatpush1.msra.mxu0 0.0
      %2508 = vmatprep.subr.mxu0 0.0
      %2509 = vmatpush1.msra.mxu0 0.0
      %2510 = vmatprep.subr.mxu0 0.0
      %2511 = vmatpush1.msra.mxu0 0.0
      %2512 = vmatprep.subr.mxu0 0.0
      %2513 = vmatpush1.msra.mxu0 0.0
      %2514 = vmatprep.subr.mxu0 0.0
      %2515 = vmatpush1.msra.mxu0 0.0
      %2516 = vmatprep.subr.mxu0 0.0
      %2517 = vmatpush1.msra.mxu0 0.0
      %2518 = vmatprep.subr.mxu0 0.0
      %2519 = vmatpush1.msra.mxu0 0.0
      %2520 = vmatprep.subr.mxu0 0.0
      %2521 = vmatpush1.msra.mxu0 0.0
      %2522 = vmatprep.subr.mxu0 0.0
      %2523 = vmatpush1.msra.mxu0 0.0
      %2524 = vmatprep.subr.mxu0 0.0
      %2525 = vmatpush1.msra.mxu0 0.0
      %2526 = vmatprep.subr.mxu0 0.0
      %2527 = vmatpush1.msra.mxu0 0.0
      %2528 = vmatprep.subr.mxu0 0.0
      %2529 = vmatpush1.msra.mxu0 0.0
      %2530 = vmatprep.subr.mxu0 0.0
      %2531 = vmatpush1.msra.mxu0 0.0
      %2532 = vmatprep.subr.mxu0 0.0
      %2533 = vmatpush1.msra.mxu0 0.0
      %2534 = vmatprep.subr.mxu0 0.0
      %2535 = vmatpush1.msra.mxu0 0.0
      %2536 = vmatprep.subr.mxu0 0.0
      %2537 = vmatpush1.msra.mxu0 0.0
      %2538 = vmatprep.subr.mxu0 0.0
      %2539 = vmatpush1.msra.mxu0 0.0
      %2540 = vmatprep.subr.mxu0 0.0
      %2541 = vmatpush1.msra.mxu0 0.0
      %2542 = vmatprep.subr.mxu0 0.0
      %2543 = vmatpush1.msra.mxu0 0.0
      %2544 = vmatprep.mubr.f32.mxu0 0.0
      %2545 = vmatmul.mubr.f32.gmra.mrb[0].mxu0 %v2473
      %v2546 = vpop.f32.mrb[0].mxu0
      %v2547 = vadd.f32 0.0, %v2546
      %v2548 = vpop.f32.mrb[0].mxu0
      %2549 = vmatprep.mubr.f32.mxu0 0.0
      %2550 = vmatmul.mubr.f32.gmra.mrb[0].mxu0 %v2475
      %v2551 = vpop.f32.mrb[0].mxu0
      %v2552 = vadd.f32 0.0, %v2551
      %v2553 = vpop.f32.mrb[0].mxu0
      %2554 = vdwg.mxu0
      %v2555 = vadd.f32 %v2460, %v2547
      %v2556 = vadd.f32 %v2461, %v2552
      %v2557 = vld [vmem:[%s373 + $0x2] sm:$0xff]
      %v2558 = vld [vmem:[%s373 + $0xa] sm:$0x3f]
      %s2559 = scalar_lea.vmem %s6, 288
      %v2560 = vld [vmem:[%s2559] sm:$0xff]
      %v2561 = vld [vmem:[%s2559 + $0x8] sm:$0xff]
      %v2562 = vld [vmem:[%s2559 + $0x10] sm:$0xff]
      %v2563 = vld [vmem:[%s2559 + $0x18] sm:$0xff]
      %v2564 = vld [vmem:[%s2559 + $0x20] sm:$0xff]
      %v2565 = vld [vmem:[%s2559 + $0x28] sm:$0x3]
      %v2567 = vsel %vm2011, %v2557, 0
      %v2570 = vsel %vm2011, %v2558, 0
      %v2573 = vsel %vm2016, %v2565, 0
      %2575 = vmatprep.subr.mxu0 0.0
      %2576 = vmatpush1.msra.mxu0 %v2560
      %2577 = vmatprep.subr.mxu0 0.0
      %2578 = vmatpush1.msra.mxu0 %v2561
      %2579 = vmatprep.subr.mxu0 0.0
      %2580 = vmatpush1.msra.mxu0 %v2562
      %2581 = vmatprep.subr.mxu0 0.0
      %2582 = vmatpush1.msra.mxu0 %v2563
      %2583 = vmatprep.subr.mxu0 0.0
      %2584 = vmatpush1.msra.mxu0 %v2564
      %2585 = vmatprep.subr.mxu0 0.0
      %2586 = vmatpush1.msra.mxu0 %v2573
      %2587 = vmatprep.subr.mxu0 0.0
      %2588 = vmatpush1.msra.mxu0 0.0
      %2589 = vmatprep.subr.mxu0 0.0
      %2590 = vmatpush1.msra.mxu0 0.0
      %2591 = vmatprep.subr.mxu0 0.0
      %2592 = vmatpush1.msra.mxu0 0.0
      %2593 = vmatprep.subr.mxu0 0.0
      %2594 = vmatpush1.msra.mxu0 0.0
      %2595 = vmatprep.subr.mxu0 0.0
      %2596 = vmatpush1.msra.mxu0 0.0
      %2597 = vmatprep.subr.mxu0 0.0
      %2598 = vmatpush1.msra.mxu0 0.0
      %2599 = vmatprep.subr.mxu0 0.0
      %2600 = vmatpush1.msra.mxu0 0.0
      %2601 = vmatprep.subr.mxu0 0.0
      %2602 = vmatpush1.msra.mxu0 0.0
      %2603 = vmatprep.subr.mxu0 0.0
      %2604 = vmatpush1.msra.mxu0 0.0
      %2605 = vmatprep.subr.mxu0 0.0
      %2606 = vmatpush1.msra.mxu0 0.0
      %2607 = vmatprep.subr.mxu0 0.0
      %2608 = vmatpush1.msra.mxu0 0.0
      %2609 = vmatprep.subr.mxu0 0.0
      %2610 = vmatpush1.msra.mxu0 0.0
      %2611 = vmatprep.subr.mxu0 0.0
      %2612 = vmatpush1.msra.mxu0 0.0
      %2613 = vmatprep.subr.mxu0 0.0
      %2614 = vmatpush1.msra.mxu0 0.0
      %2615 = vmatprep.subr.mxu0 0.0
      %2616 = vmatpush1.msra.mxu0 0.0
      %2617 = vmatprep.subr.mxu0 0.0
      %2618 = vmatpush1.msra.mxu0 0.0
      %2619 = vmatprep.subr.mxu0 0.0
      %2620 = vmatpush1.msra.mxu0 0.0
      %2621 = vmatprep.subr.mxu0 0.0
      %2622 = vmatpush1.msra.mxu0 0.0
      %2623 = vmatprep.subr.mxu0 0.0
      %2624 = vmatpush1.msra.mxu0 0.0
      %2625 = vmatprep.subr.mxu0 0.0
      %2626 = vmatpush1.msra.mxu0 0.0
      %2627 = vmatprep.subr.mxu0 0.0
      %2628 = vmatpush1.msra.mxu0 0.0
      %2629 = vmatprep.subr.mxu0 0.0
      %2630 = vmatpush1.msra.mxu0 0.0
      %2631 = vmatprep.subr.mxu0 0.0
      %2632 = vmatpush1.msra.mxu0 0.0
      %2633 = vmatprep.subr.mxu0 0.0
      %2634 = vmatpush1.msra.mxu0 0.0
      %2635 = vmatprep.subr.mxu0 0.0
      %2636 = vmatpush1.msra.mxu0 0.0
      %2637 = vmatprep.subr.mxu0 0.0
      %2638 = vmatpush1.msra.mxu0 0.0
      %2639 = vmatprep.mubr.f32.mxu0 0.0
      %2640 = vmatmul.mubr.f32.gmra.mrb[0].mxu0 %v2567
      %v2641 = vpop.f32.mrb[0].mxu0
      %v2642 = vadd.f32 0.0, %v2641
      %v2643 = vpop.f32.mrb[0].mxu0
      %2644 = vmatprep.mubr.f32.mxu0 0.0
      %2645 = vmatmul.mubr.f32.gmra.mrb[0].mxu0 %v2570
      %v2646 = vpop.f32.mrb[0].mxu0
      %v2647 = vadd.f32 0.0, %v2646
      %v2648 = vpop.f32.mrb[0].mxu0
      %2649 = vdwg.mxu0
      %v2650 = vadd.f32 %v2555, %v2642
      %v2651 = vadd.f32 %v2556, %v2647
      %s2652 = scalar_lea.vmem %s6, 336
      %v2653 = vld [vmem:[%s2652] sm:$0xff]
      %v2654 = vld [vmem:[%s2652 + $0x8] sm:$0xff]
      %v2655 = vld [vmem:[%s2652 + $0x10] sm:$0xff]
      %v2656 = vld [vmem:[%s2652 + $0x18] sm:$0xff]
      %v2657 = vld [vmem:[%s2652 + $0x20] sm:$0xff]
      %v2658 = vld [vmem:[%s2652 + $0x28] sm:$0x3]
      %2659 = vrot.lane.b32.xlu0 %v2557, 125
      %v2660 = vpop.permute.xlu0 %2659
      %2661 = vrot.lane.b32.xlu0 %v2558, 125
      %v2662 = vpop.permute.xlu0 %2661
      %v2663 = vsel %vm2011, %v2660, 0
      %v2665 = vsel %vm2011, %v2662, 0
      %v2668 = vsel %vm2016, %v2658, 0
      %2670 = vmatprep.subr.mxu0 0.0
      %2671 = vmatpush1.msra.mxu0 %v2653
      %2672 = vmatprep.subr.mxu0 0.0
      %2673 = vmatpush1.msra.mxu0 %v2654
      %2674 = vmatprep.subr.mxu0 0.0
      %2675 = vmatpush1.msra.mxu0 %v2655
      %2676 = vmatprep.subr.mxu0 0.0
      %2677 = vmatpush1.msra.mxu0 %v2656
      %2678 = vmatprep.subr.mxu0 0.0
      %2679 = vmatpush1.msra.mxu0 %v2657
      %2680 = vmatprep.subr.mxu0 0.0
      %2681 = vmatpush1.msra.mxu0 %v2668
      %2682 = vmatprep.subr.mxu0 0.0
      %2683 = vmatpush1.msra.mxu0 0.0
      %2684 = vmatprep.subr.mxu0 0.0
      %2685 = vmatpush1.msra.mxu0 0.0
      %2686 = vmatprep.subr.mxu0 0.0
      %2687 = vmatpush1.msra.mxu0 0.0
      %2688 = vmatprep.subr.mxu0 0.0
      %2689 = vmatpush1.msra.mxu0 0.0
      %2690 = vmatprep.subr.mxu0 0.0
      %2691 = vmatpush1.msra.mxu0 0.0
      %2692 = vmatprep.subr.mxu0 0.0
      %2693 = vmatpush1.msra.mxu0 0.0
      %2694 = vmatprep.subr.mxu0 0.0
      %2695 = vmatpush1.msra.mxu0 0.0
      %2696 = vmatprep.subr.mxu0 0.0
      %2697 = vmatpush1.msra.mxu0 0.0
      %2698 = vmatprep.subr.mxu0 0.0
      %2699 = vmatpush1.msra.mxu0 0.0
      %2700 = vmatprep.subr.mxu0 0.0
      %2701 = vmatpush1.msra.mxu0 0.0
      %2702 = vmatprep.subr.mxu0 0.0
      %2703 = vmatpush1.msra.mxu0 0.0
      %2704 = vmatprep.subr.mxu0 0.0
      %2705 = vmatpush1.msra.mxu0 0.0
      %2706 = vmatprep.subr.mxu0 0.0
      %2707 = vmatpush1.msra.mxu0 0.0
      %2708 = vmatprep.subr.mxu0 0.0
      %2709 = vmatpush1.msra.mxu0 0.0
      %2710 = vmatprep.subr.mxu0 0.0
      %2711 = vmatpush1.msra.mxu0 0.0
      %2712 = vmatprep.subr.mxu0 0.0
      %2713 = vmatpush1.msra.mxu0 0.0
      %2714 = vmatprep.subr.mxu0 0.0
      %2715 = vmatpush1.msra.mxu0 0.0
      %2716 = vmatprep.subr.mxu0 0.0
      %2717 = vmatpush1.msra.mxu0 0.0
      %2718 = vmatprep.subr.mxu0 0.0
      %2719 = vmatpush1.msra.mxu0 0.0
      %2720 = vmatprep.subr.mxu0 0.0
      %2721 = vmatpush1.msra.mxu0 0.0
      %2722 = vmatprep.subr.mxu0 0.0
      %2723 = vmatpush1.msra.mxu0 0.0
      %2724 = vmatprep.subr.mxu0 0.0
      %2725 = vmatpush1.msra.mxu0 0.0
      %2726 = vmatprep.subr.mxu0 0.0
      %2727 = vmatpush1.msra.mxu0 0.0
      %2728 = vmatprep.subr.mxu0 0.0
      %2729 = vmatpush1.msra.mxu0 0.0
      %2730 = vmatprep.subr.mxu0 0.0
      %2731 = vmatpush1.msra.mxu0 0.0
      %2732 = vmatprep.subr.mxu0 0.0
      %2733 = vmatpush1.msra.mxu0 0.0
      %2734 = vmatprep.mubr.f32.mxu0 0.0
      %2735 = vmatmul.mubr.f32.gmra.mrb[0].mxu0 %v2663
      %v2736 = vpop.f32.mrb[0].mxu0
      %v2737 = vadd.f32 0.0, %v2736
      %v2738 = vpop.f32.mrb[0].mxu0
      %2739 = vmatprep.mubr.f32.mxu0 0.0
      %2740 = vmatmul.mubr.f32.gmra.mrb[0].mxu0 %v2665
      %v2741 = vpop.f32.mrb[0].mxu0
      %v2742 = vadd.f32 0.0, %v2741
      %v2743 = vpop.f32.mrb[0].mxu0
      %2744 = vdwg.mxu0
      %v2745 = vadd.f32 %v2650, %v2737
      %v2746 = vadd.f32 %v2651, %v2742
      %s2747 = scalar_lea.vmem %s6, 384
      %v2748 = vld [vmem:[%s2747] sm:$0xff]
      %v2749 = vld [vmem:[%s2747 + $0x8] sm:$0xff]
      %v2750 = vld [vmem:[%s2747 + $0x10] sm:$0xff]
      %v2751 = vld [vmem:[%s2747 + $0x18] sm:$0xff]
      %v2752 = vld [vmem:[%s2747 + $0x20] sm:$0xff]
      %v2753 = vld [vmem:[%s2747 + $0x28] sm:$0x3]
      %2754 = vrot.lane.b32.xlu0 %v2557, 122
      %v2755 = vpop.permute.xlu0 %2754
      %2756 = vrot.lane.b32.xlu0 %v2558, 122
      %v2757 = vpop.permute.xlu0 %2756
      %v2758 = vsel %vm2011, %v2755, 0
      %v2760 = vsel %vm2011, %v2757, 0
      %v2763 = vsel %vm2016, %v2753, 0
      %2765 = vmatprep.subr.mxu0 0.0
      %2766 = vmatpush1.msra.mxu0 %v2748
      %2767 = vmatprep.subr.mxu0 0.0
      %2768 = vmatpush1.msra.mxu0 %v2749
      %2769 = vmatprep.subr.mxu0 0.0
      %2770 = vmatpush1.msra.mxu0 %v2750
      %2771 = vmatprep.subr.mxu0 0.0
      %2772 = vmatpush1.msra.mxu0 %v2751
      %2773 = vmatprep.subr.mxu0 0.0
      %2774 = vmatpush1.msra.mxu0 %v2752
      %2775 = vmatprep.subr.mxu0 0.0
      %2776 = vmatpush1.msra.mxu0 %v2763
      %2777 = vmatprep.subr.mxu0 0.0
      %2778 = vmatpush1.msra.mxu0 0.0
      %2779 = vmatprep.subr.mxu0 0.0
      %2780 = vmatpush1.msra.mxu0 0.0
      %2781 = vmatprep.subr.mxu0 0.0
      %2782 = vmatpush1.msra.mxu0 0.0
      %2783 = vmatprep.subr.mxu0 0.0
      %2784 = vmatpush1.msra.mxu0 0.0
      %2785 = vmatprep.subr.mxu0 0.0
      %2786 = vmatpush1.msra.mxu0 0.0
      %2787 = vmatprep.subr.mxu0 0.0
      %2788 = vmatpush1.msra.mxu0 0.0
      %2789 = vmatprep.subr.mxu0 0.0
      %2790 = vmatpush1.msra.mxu0 0.0
      %2791 = vmatprep.subr.mxu0 0.0
      %2792 = vmatpush1.msra.mxu0 0.0
      %2793 = vmatprep.subr.mxu0 0.0
      %2794 = vmatpush1.msra.mxu0 0.0
      %2795 = vmatprep.subr.mxu0 0.0
      %2796 = vmatpush1.msra.mxu0 0.0
      %2797 = vmatprep.subr.mxu0 0.0
      %2798 = vmatpush1.msra.mxu0 0.0
      %2799 = vmatprep.subr.mxu0 0.0
      %2800 = vmatpush1.msra.mxu0 0.0
      %2801 = vmatprep.subr.mxu0 0.0
      %2802 = vmatpush1.msra.mxu0 0.0
      %2803 = vmatprep.subr.mxu0 0.0
      %2804 = vmatpush1.msra.mxu0 0.0
      %2805 = vmatprep.subr.mxu0 0.0
      %2806 = vmatpush1.msra.mxu0 0.0
      %2807 = vmatprep.subr.mxu0 0.0
      %2808 = vmatpush1.msra.mxu0 0.0
      %2809 = vmatprep.subr.mxu0 0.0
      %2810 = vmatpush1.msra.mxu0 0.0
      %2811 = vmatprep.subr.mxu0 0.0
      %2812 = vmatpush1.msra.mxu0 0.0
      %2813 = vmatprep.subr.mxu0 0.0
      %2814 = vmatpush1.msra.mxu0 0.0
      %2815 = vmatprep.subr.mxu0 0.0
      %2816 = vmatpush1.msra.mxu0 0.0
      %2817 = vmatprep.subr.mxu0 0.0
      %2818 = vmatpush1.msra.mxu0 0.0
      %2819 = vmatprep.subr.mxu0 0.0
      %2820 = vmatpush1.msra.mxu0 0.0
      %2821 = vmatprep.subr.mxu0 0.0
      %2822 = vmatpush1.msra.mxu0 0.0
      %2823 = vmatprep.subr.mxu0 0.0
      %2824 = vmatpush1.msra.mxu0 0.0
      %2825 = vmatprep.subr.mxu0 0.0
      %2826 = vmatpush1.msra.mxu0 0.0
      %2827 = vmatprep.subr.mxu0 0.0
      %2828 = vmatpush1.msra.mxu0 0.0
      %2829 = vmatprep.mubr.f32.mxu0 0.0
      %2830 = vmatmul.mubr.f32.gmra.mrb[0].mxu0 %v2758
      %v2831 = vpop.f32.mrb[0].mxu0
      %v2832 = vadd.f32 0.0, %v2831
      %v2833 = vpop.f32.mrb[0].mxu0
      %2834 = vmatprep.mubr.f32.mxu0 0.0
      %2835 = vmatmul.mubr.f32.gmra.mrb[0].mxu0 %v2760
      %v2836 = vpop.f32.mrb[0].mxu0
      %v2837 = vadd.f32 0.0, %v2836
      %v2838 = vpop.f32.mrb[0].mxu0
      %2839 = vdwg.mxu0
      %v2840 = vadd.f32 %v2745, %v2832
      %v2841 = vadd.f32 %v2746, %v2837
      %v2842 = vld [vmem:[%s7] sm:$0x1]
      %v2844 = vlaneseq
      %v2845 = vshrl.u32 %v2844, 7
      %v2846 = vsub.s32 0, %v2845
      %v2847 = vrot.slane %v2842, %v2846
      %v2849 = vadd.f32 %v2840, %v2847
      %v2850 = vadd.f32 %v2841, %v2847
      %v2851 = vmax.f32 %v2849, 0.0
      %v2852 = vmax.f32 %v2850, 0.0
      %vm2853 = vcmask 916480
      %2854 = vst.msk [vmem:[#allocation4] sm:$0xff] %vm2853, %v2851
      %vm2855 = vcmask 914432
      %2856 = vst.msk [vmem:[#allocation4 + $0x8] sm:$0x3f] %vm2855, %v2852
      %v2857 = vld [vmem:[#allocation4] sm:$0xff]
      %v2858 = vld [vmem:[#allocation4 + $0x8] sm:$0xf]
      %v2859 = vld [vmem:[%s8] sm:$0xff]
      %v2860 = vld [vmem:[%s8 + $0x8] sm:$0xff]
      %v2861 = vld [vmem:[%s8 + $0x10] sm:$0xff]
      %v2862 = vld [vmem:[%s8 + $0x18] sm:$0xff]
      %v2863 = vld [vmem:[%s8 + $0x20] sm:$0xff]
      %v2864 = vld [vmem:[%s8 + $0x28] sm:$0xff]
      %v2865 = vld [vmem:[%s8 + $0x30] sm:$0xff]
      %v2866 = vld [vmem:[%s8 + $0x38] sm:$0xff]
      %v2867 = vld [vmem:[%s8 + $0x40] sm:$0xff]
      %v2868 = vld [vmem:[%s8 + $0x48] sm:$0xff]
      %v2869 = vld [vmem:[%s8 + $0x50] sm:$0xff]
      %v2870 = vld [vmem:[%s8 + $0x58] sm:$0xff]
      %v2871 = vld [vmem:[%s8 + $0x60] sm:$0xff]
      %v2872 = vld [vmem:[%s8 + $0x68] sm:$0xff]
      %v2873 = vld [vmem:[%s8 + $0x70] sm:$0xff]
      %v2874 = vld [vmem:[%s8 + $0x78] sm:$0xff]
      %v2875 = vld [vmem:[%s8 + $0x80] sm:$0xff]
      %v2876 = vld [vmem:[%s8 + $0x88] sm:$0xff]
      %v2877 = vld [vmem:[%s8 + $0x90] sm:$0xff]
      %v2878 = vld [vmem:[%s8 + $0x98] sm:$0xff]
      %v2879 = vld [vmem:[%s8 + $0xa0] sm:$0xff]
      %v2880 = vld [vmem:[%s8 + $0xa8] sm:$0xff]
      %v2881 = vld [vmem:[%s8 + $0xb0] sm:$0xff]
      %v2882 = vld [vmem:[%s8 + $0xb8] sm:$0xff]
      %s2883 = scalar_lea.vmem %s8, 192
      %v2884 = vld [vmem:[%s2883] sm:$0xff]
      %v2885 = vld [vmem:[%s2883 + $0x8] sm:$0xff]
      %v2886 = vld [vmem:[%s2883 + $0x10] sm:$0xff]
      %v2887 = vld [vmem:[%s2883 + $0x18] sm:$0xff]
      %v2888 = vld [vmem:[%s2883 + $0x20] sm:$0xff]
      %v2889 = vld [vmem:[%s2883 + $0x28] sm:$0xff]
      %v2890 = vld [vmem:[%s2883 + $0x30] sm:$0xff]
      %v2891 = vld [vmem:[%s2883 + $0x38] sm:$0xff]
      %v2892 = vld [vmem:[%s2883 + $0x40] sm:$0xff]
      %v2893 = vld [vmem:[%s2883 + $0x48] sm:$0xff]
      %v2894 = vld [vmem:[%s2883 + $0x50] sm:$0xff]
      %v2895 = vld [vmem:[%s2883 + $0x58] sm:$0xff]
      %v2896 = vld [vmem:[%s2883 + $0x60] sm:$0xff]
      %v2897 = vld [vmem:[%s2883 + $0x68] sm:$0xff]
      %v2898 = vld [vmem:[%s2883 + $0x70] sm:$0xff]
      %v2899 = vld [vmem:[%s2883 + $0x78] sm:$0xff]
      %v2900 = vld [vmem:[%s2883 + $0x80] sm:$0xff]
      %v2901 = vld [vmem:[%s2883 + $0x88] sm:$0xff]
      %v2902 = vld [vmem:[%s2883 + $0x90] sm:$0xff]
      %v2903 = vld [vmem:[%s2883 + $0x98] sm:$0xff]
      %v2904 = vld [vmem:[%s2883 + $0xa0] sm:$0xff]
      %v2905 = vld [vmem:[%s2883 + $0xa8] sm:$0xff]
      %v2906 = vld [vmem:[%s2883 + $0xb0] sm:$0xff]
      %v2907 = vld [vmem:[%s2883 + $0xb8] sm:$0xff]
      %2910 = vrot.lane.b32.xlu0 %v2857, 120
      %v2911 = vpop.permute.xlu0 %2910
      %2912 = vrot.lane.b32.xlu0 %v2858, 120
      %v2913 = vpop.permute.xlu0 %2912
      %vm2914 = vcmask 785408
      %v2915 = vsel %vm2914, %v2911, 0
      %v2917 = vsel %vm2914, %v2913, 0
      %2919 = vmatprep.subr.mxu0 %v2885
      %2920 = vmatpush1.msra.mxu0 %v2884
      %2921 = vmatprep.subr.mxu0 %v2887
      %2922 = vmatpush1.msra.mxu0 %v2886
      %2923 = vmatprep.subr.mxu0 %v2889
      %2924 = vmatpush1.msra.mxu0 %v2888
      %2925 = vmatprep.subr.mxu0 %v2891
      %2926 = vmatpush1.msra.mxu0 %v2890
      %2927 = vmatprep.subr.mxu0 %v2893
      %2928 = vmatpush1.msra.mxu0 %v2892
      %2929 = vmatprep.subr.mxu0 %v2895
      %2930 = vmatpush1.msra.mxu0 %v2894
      %2931 = vmatprep.subr.mxu0 %v2897
      %2932 = vmatpush1.msra.mxu0 %v2896
      %2933 = vmatprep.subr.mxu0 %v2899
      %2934 = vmatpush1.msra.mxu0 %v2898
      %2935 = vmatprep.subr.mxu0 %v2901
      %2936 = vmatpush1.msra.mxu0 %v2900
      %2937 = vmatprep.subr.mxu0 %v2903
      %2938 = vmatpush1.msra.mxu0 %v2902
      %2939 = vmatprep.subr.mxu0 %v2905
      %2940 = vmatpush1.msra.mxu0 %v2904
      %2941 = vmatprep.subr.mxu0 %v2907
      %2942 = vmatpush1.msra.mxu0 %v2906
      %2943 = vmatprep.subr.mxu0 0.0
      %2944 = vmatpush1.msra.mxu0 0.0
      %2945 = vmatprep.subr.mxu0 0.0
      %2946 = vmatpush1.msra.mxu0 0.0
      %2947 = vmatprep.subr.mxu0 0.0
      %2948 = vmatpush1.msra.mxu0 0.0
      %2949 = vmatprep.subr.mxu0 0.0
      %2950 = vmatpush1.msra.mxu0 0.0
      %2951 = vmatprep.subr.mxu0 0.0
      %2952 = vmatpush1.msra.mxu0 0.0
      %2953 = vmatprep.subr.mxu0 0.0
      %2954 = vmatpush1.msra.mxu0 0.0
      %2955 = vmatprep.subr.mxu0 0.0
      %2956 = vmatpush1.msra.mxu0 0.0
      %2957 = vmatprep.subr.mxu0 0.0
      %2958 = vmatpush1.msra.mxu0 0.0
      %2959 = vmatprep.subr.mxu0 0.0
      %2960 = vmatpush1.msra.mxu0 0.0
      %2961 = vmatprep.subr.mxu0 0.0
      %2962 = vmatpush1.msra.mxu0 0.0
      %2963 = vmatprep.subr.mxu0 0.0
      %2964 = vmatpush1.msra.mxu0 0.0
      %2965 = vmatprep.subr.mxu0 0.0
      %2966 = vmatpush1.msra.mxu0 0.0
      %2967 = vmatprep.subr.mxu0 0.0
      %2968 = vmatpush1.msra.mxu0 0.0
      %2969 = vmatprep.subr.mxu0 0.0
      %2970 = vmatpush1.msra.mxu0 0.0
      %2971 = vmatprep.subr.mxu0 0.0
      %2972 = vmatpush1.msra.mxu0 0.0
      %2973 = vmatprep.subr.mxu0 0.0
      %2974 = vmatpush1.msra.mxu0 0.0
      %2975 = vmatprep.subr.mxu0 0.0
      %2976 = vmatpush1.msra.mxu0 0.0
      %2977 = vmatprep.subr.mxu0 0.0
      %2978 = vmatpush1.msra.mxu0 0.0
      %2979 = vmatprep.subr.mxu0 0.0
      %2980 = vmatpush1.msra.mxu0 0.0
      %2981 = vmatprep.subr.mxu0 0.0
      %2982 = vmatpush1.msra.mxu0 0.0
      %2983 = vmatprep.mubr.f32.mxu0 0.0
      %2984 = vmatmul.mubr.f32.gmra.mrb[0].mxu0 %v2915
      %v2985 = vpop.f32.mrb[0].mxu0
      %v2986 = vadd.f32 0.0, %v2985
      %v2987 = vpop.f32.mrb[0].mxu0
      %v2988 = vadd.f32 0.0, %v2987
      %2989 = vmatprep.mubr.f32.mxu0 0.0
      %2990 = vmatmul.mubr.f32.gmra.mrb[0].mxu0 %v2917
      %v2991 = vpop.f32.mrb[0].mxu0
      %v2992 = vadd.f32 0.0, %v2991
      %v2993 = vpop.f32.mrb[0].mxu0
      %v2994 = vadd.f32 0.0, %v2993
      %2995 = vdwg.mxu0
      %v2996 = vsel %vm2914, %v2857, 0
      %v2998 = vsel %vm2914, %v2858, 0
      %3000 = vmatprep.subr.mxu0 %v2860
      %3001 = vmatpush1.msra.mxu0 %v2859
      %3002 = vmatprep.subr.mxu0 %v2862
      %3003 = vmatpush1.msra.mxu0 %v2861
      %3004 = vmatprep.subr.mxu0 %v2864
      %3005 = vmatpush1.msra.mxu0 %v2863
      %3006 = vmatprep.subr.mxu0 %v2866
      %3007 = vmatpush1.msra.mxu0 %v2865
      %3008 = vmatprep.subr.mxu0 %v2868
      %3009 = vmatpush1.msra.mxu0 %v2867
      %3010 = vmatprep.subr.mxu0 %v2870
      %3011 = vmatpush1.msra.mxu0 %v2869
      %3012 = vmatprep.subr.mxu0 %v2872
      %3013 = vmatpush1.msra.mxu0 %v2871
      %3014 = vmatprep.subr.mxu0 %v2874
      %3015 = vmatpush1.msra.mxu0 %v2873
      %3016 = vmatprep.subr.mxu0 %v2876
      %3017 = vmatpush1.msra.mxu0 %v2875
      %3018 = vmatprep.subr.mxu0 %v2878
      %3019 = vmatpush1.msra.mxu0 %v2877
      %3020 = vmatprep.subr.mxu0 %v2880
      %3021 = vmatpush1.msra.mxu0 %v2879
      %3022 = vmatprep.subr.mxu0 %v2882
      %3023 = vmatpush1.msra.mxu0 %v2881
      %3024 = vmatprep.subr.mxu0 0.0
      %3025 = vmatpush1.msra.mxu0 0.0
      %3026 = vmatprep.subr.mxu0 0.0
      %3027 = vmatpush1.msra.mxu0 0.0
      %3028 = vmatprep.subr.mxu0 0.0
      %3029 = vmatpush1.msra.mxu0 0.0
      %3030 = vmatprep.subr.mxu0 0.0
      %3031 = vmatpush1.msra.mxu0 0.0
      %3032 = vmatprep.subr.mxu0 0.0
      %3033 = vmatpush1.msra.mxu0 0.0
      %3034 = vmatprep.subr.mxu0 0.0
      %3035 = vmatpush1.msra.mxu0 0.0
      %3036 = vmatprep.subr.mxu0 0.0
      %3037 = vmatpush1.msra.mxu0 0.0
      %3038 = vmatprep.subr.mxu0 0.0
      %3039 = vmatpush1.msra.mxu0 0.0
      %3040 = vmatprep.subr.mxu0 0.0
      %3041 = vmatpush1.msra.mxu0 0.0
      %3042 = vmatprep.subr.mxu0 0.0
      %3043 = vmatpush1.msra.mxu0 0.0
      %3044 = vmatprep.subr.mxu0 0.0
      %3045 = vmatpush1.msra.mxu0 0.0
      %3046 = vmatprep.subr.mxu0 0.0
      %3047 = vmatpush1.msra.mxu0 0.0
      %3048 = vmatprep.subr.mxu0 0.0
      %3049 = vmatpush1.msra.mxu0 0.0
      %3050 = vmatprep.subr.mxu0 0.0
      %3051 = vmatpush1.msra.mxu0 0.0
      %3052 = vmatprep.subr.mxu0 0.0
      %3053 = vmatpush1.msra.mxu0 0.0
      %3054 = vmatprep.subr.mxu0 0.0
      %3055 = vmatpush1.msra.mxu0 0.0
      %3056 = vmatprep.subr.mxu0 0.0
      %3057 = vmatpush1.msra.mxu0 0.0
      %3058 = vmatprep.subr.mxu0 0.0
      %3059 = vmatpush1.msra.mxu0 0.0
      %3060 = vmatprep.subr.mxu0 0.0
      %3061 = vmatpush1.msra.mxu0 0.0
      %3062 = vmatprep.subr.mxu0 0.0
      %3063 = vmatpush1.msra.mxu0 0.0
      %3064 = vmatprep.mubr.f32.mxu0 0.0
      %3065 = vmatmul.mubr.f32.gmra.mrb[0].mxu0 %v2996
      %v3066 = vpop.f32.mrb[0].mxu0
      %v3067 = vadd.f32 %v2986, %v3066
      %v3068 = vpop.f32.mrb[0].mxu0
      %v3069 = vadd.f32 %v2988, %v3068
      %3070 = vmatprep.mubr.f32.mxu0 0.0
      %3071 = vmatmul.mubr.f32.gmra.mrb[0].mxu0 %v2998
      %v3072 = vpop.f32.mrb[0].mxu0
      %v3073 = vadd.f32 %v2992, %v3072
      %v3074 = vpop.f32.mrb[0].mxu0
      %v3075 = vadd.f32 %v2994, %v3074
      %3076 = vdwg.mxu0
      %s3077 = scalar_lea.vmem %s8, 384
      %v3078 = vld [vmem:[%s3077] sm:$0xff]
      %v3079 = vld [vmem:[%s3077 + $0x8] sm:$0xff]
      %v3080 = vld [vmem:[%s3077 + $0x10] sm:$0xff]
      %v3081 = vld [vmem:[%s3077 + $0x18] sm:$0xff]
      %v3082 = vld [vmem:[%s3077 + $0x20] sm:$0xff]
      %v3083 = vld [vmem:[%s3077 + $0x28] sm:$0xff]
      %v3084 = vld [vmem:[%s3077 + $0x30] sm:$0xff]
      %v3085 = vld [vmem:[%s3077 + $0x38] sm:$0xff]
      %v3086 = vld [vmem:[%s3077 + $0x40] sm:$0xff]
      %v3087 = vld [vmem:[%s3077 + $0x48] sm:$0xff]
      %v3088 = vld [vmem:[%s3077 + $0x50] sm:$0xff]
      %v3089 = vld [vmem:[%s3077 + $0x58] sm:$0xff]
      %v3090 = vld [vmem:[%s3077 + $0x60] sm:$0xff]
      %v3091 = vld [vmem:[%s3077 + $0x68] sm:$0xff]
      %v3092 = vld [vmem:[%s3077 + $0x70] sm:$0xff]
      %v3093 = vld [vmem:[%s3077 + $0x78] sm:$0xff]
      %v3094 = vld [vmem:[%s3077 + $0x80] sm:$0xff]
      %v3095 = vld [vmem:[%s3077 + $0x88] sm:$0xff]
      %v3096 = vld [vmem:[%s3077 + $0x90] sm:$0xff]
      %v3097 = vld [vmem:[%s3077 + $0x98] sm:$0xff]
      %v3098 = vld [vmem:[%s3077 + $0xa0] sm:$0xff]
      %v3099 = vld [vmem:[%s3077 + $0xa8] sm:$0xff]
      %v3100 = vld [vmem:[%s3077 + $0xb0] sm:$0xff]
      %v3101 = vld [vmem:[%s3077 + $0xb8] sm:$0xff]
      %3102 = vrot.lane.b32.xlu0 %v2857, 112
      %v3103 = vpop.permute.xlu0 %3102
      %3104 = vrot.lane.b32.xlu0 %v2858, 112
      %v3105 = vpop.permute.xlu0 %3104
      %v3106 = vsel %vm2914, %v3103, 0
      %v3108 = vsel %vm2914, %v3105, 0
      %3110 = vmatprep.subr.mxu0 %v3079
      %3111 = vmatpush1.msra.mxu0 %v3078
      %3112 = vmatprep.subr.mxu0 %v3081
      %3113 = vmatpush1.msra.mxu0 %v3080
      %3114 = vmatprep.subr.mxu0 %v3083
      %3115 = vmatpush1.msra.mxu0 %v3082
      %3116 = vmatprep.subr.mxu0 %v3085
      %3117 = vmatpush1.msra.mxu0 %v3084
      %3118 = vmatprep.subr.mxu0 %v3087
      %3119 = vmatpush1.msra.mxu0 %v3086
      %3120 = vmatprep.subr.mxu0 %v3089
      %3121 = vmatpush1.msra.mxu0 %v3088
      %3122 = vmatprep.subr.mxu0 %v3091
      %3123 = vmatpush1.msra.mxu0 %v3090
      %3124 = vmatprep.subr.mxu0 %v3093
      %3125 = vmatpush1.msra.mxu0 %v3092
      %3126 = vmatprep.subr.mxu0 %v3095
      %3127 = vmatpush1.msra.mxu0 %v3094
      %3128 = vmatprep.subr.mxu0 %v3097
      %3129 = vmatpush1.msra.mxu0 %v3096
      %3130 = vmatprep.subr.mxu0 %v3099
      %3131 = vmatpush1.msra.mxu0 %v3098
      %3132 = vmatprep.subr.mxu0 %v3101
      %3133 = vmatpush1.msra.mxu0 %v3100
      %3134 = vmatprep.subr.mxu0 0.0
      %3135 = vmatpush1.msra.mxu0 0.0
      %3136 = vmatprep.subr.mxu0 0.0
      %3137 = vmatpush1.msra.mxu0 0.0
      %3138 = vmatprep.subr.mxu0 0.0
      %3139 = vmatpush1.msra.mxu0 0.0
      %3140 = vmatprep.subr.mxu0 0.0
      %3141 = vmatpush1.msra.mxu0 0.0
      %3142 = vmatprep.subr.mxu0 0.0
      %3143 = vmatpush1.msra.mxu0 0.0
      %3144 = vmatprep.subr.mxu0 0.0
      %3145 = vmatpush1.msra.mxu0 0.0
      %3146 = vmatprep.subr.mxu0 0.0
      %3147 = vmatpush1.msra.mxu0 0.0
      %3148 = vmatprep.subr.mxu0 0.0
      %3149 = vmatpush1.msra.mxu0 0.0
      %3150 = vmatprep.subr.mxu0 0.0
      %3151 = vmatpush1.msra.mxu0 0.0
      %3152 = vmatprep.subr.mxu0 0.0
      %3153 = vmatpush1.msra.mxu0 0.0
      %3154 = vmatprep.subr.mxu0 0.0
      %3155 = vmatpush1.msra.mxu0 0.0
      %3156 = vmatprep.subr.mxu0 0.0
      %3157 = vmatpush1.msra.mxu0 0.0
      %3158 = vmatprep.subr.mxu0 0.0
      %3159 = vmatpush1.msra.mxu0 0.0
      %3160 = vmatprep.subr.mxu0 0.0
      %3161 = vmatpush1.msra.mxu0 0.0
      %3162 = vmatprep.subr.mxu0 0.0
      %3163 = vmatpush1.msra.mxu0 0.0
      %3164 = vmatprep.subr.mxu0 0.0
      %3165 = vmatpush1.msra.mxu0 0.0
      %3166 = vmatprep.subr.mxu0 0.0
      %3167 = vmatpush1.msra.mxu0 0.0
      %3168 = vmatprep.subr.mxu0 0.0
      %3169 = vmatpush1.msra.mxu0 0.0
      %3170 = vmatprep.subr.mxu0 0.0
      %3171 = vmatpush1.msra.mxu0 0.0
      %3172 = vmatprep.subr.mxu0 0.0
      %3173 = vmatpush1.msra.mxu0 0.0
      %3174 = vmatprep.mubr.f32.mxu0 0.0
      %3175 = vmatmul.mubr.f32.gmra.mrb[0].mxu0 %v3106
      %v3176 = vpop.f32.mrb[0].mxu0
      %v3177 = vadd.f32 0.0, %v3176
      %v3178 = vpop.f32.mrb[0].mxu0
      %v3179 = vadd.f32 0.0, %v3178
      %3180 = vmatprep.mubr.f32.mxu0 0.0
      %3181 = vmatmul.mubr.f32.gmra.mrb[0].mxu0 %v3108
      %v3182 = vpop.f32.mrb[0].mxu0
      %v3183 = vadd.f32 0.0, %v3182
      %v3184 = vpop.f32.mrb[0].mxu0
      %v3185 = vadd.f32 0.0, %v3184
      %3186 = vdwg.mxu0
      %v3187 = vadd.f32 %v3067, %v3177
      %v3188 = vadd.f32 %v3069, %v3179
      %v3189 = vadd.f32 %v3073, %v3183
      %v3190 = vadd.f32 %v3075, %v3185
      %v3191 = vld [vmem:[#allocation4 + $0x1] sm:$0xff]
      %v3192 = vld [vmem:[#allocation4 + $0x9] sm:$0xf]
      %s3193 = scalar_lea.vmem %s8, 576
      %v3194 = vld [vmem:[%s3193] sm:$0xff]
      %v3195 = vld [vmem:[%s3193 + $0x8] sm:$0xff]
      %v3196 = vld [vmem:[%s3193 + $0x10] sm:$0xff]
      %v3197 = vld [vmem:[%s3193 + $0x18] sm:$0xff]
      %v3198 = vld [vmem:[%s3193 + $0x20] sm:$0xff]
      %v3199 = vld [vmem:[%s3193 + $0x28] sm:$0xff]
      %v3200 = vld [vmem:[%s3193 + $0x30] sm:$0xff]
      %v3201 = vld [vmem:[%s3193 + $0x38] sm:$0xff]
      %v3202 = vld [vmem:[%s3193 + $0x40] sm:$0xff]
      %v3203 = vld [vmem:[%s3193 + $0x48] sm:$0xff]
      %v3204 = vld [vmem:[%s3193 + $0x50] sm:$0xff]
      %v3205 = vld [vmem:[%s3193 + $0x58] sm:$0xff]
      %v3206 = vld [vmem:[%s3193 + $0x60] sm:$0xff]
      %v3207 = vld [vmem:[%s3193 + $0x68] sm:$0xff]
      %v3208 = vld [vmem:[%s3193 + $0x70] sm:$0xff]
      %v3209 = vld [vmem:[%s3193 + $0x78] sm:$0xff]
      %v3210 = vld [vmem:[%s3193 + $0x80] sm:$0xff]
      %v3211 = vld [vmem:[%s3193 + $0x88] sm:$0xff]
      %v3212 = vld [vmem:[%s3193 + $0x90] sm:$0xff]
      %v3213 = vld [vmem:[%s3193 + $0x98] sm:$0xff]
      %v3214 = vld [vmem:[%s3193 + $0xa0] sm:$0xff]
      %v3215 = vld [vmem:[%s3193 + $0xa8] sm:$0xff]
      %v3216 = vld [vmem:[%s3193 + $0xb0] sm:$0xff]
      %v3217 = vld [vmem:[%s3193 + $0xb8] sm:$0xff]
      %v3219 = vsel %vm2914, %v3191, 0
      %v3222 = vsel %vm2914, %v3192, 0
      %3224 = vmatprep.subr.mxu0 %v3195
      %3225 = vmatpush1.msra.mxu0 %v3194
      %3226 = vmatprep.subr.mxu0 %v3197
      %3227 = vmatpush1.msra.mxu0 %v3196
      %3228 = vmatprep.subr.mxu0 %v3199
      %3229 = vmatpush1.msra.mxu0 %v3198
      %3230 = vmatprep.subr.mxu0 %v3201
      %3231 = vmatpush1.msra.mxu0 %v3200
      %3232 = vmatprep.subr.mxu0 %v3203
      %3233 = vmatpush1.msra.mxu0 %v3202
      %3234 = vmatprep.subr.mxu0 %v3205
      %3235 = vmatpush1.msra.mxu0 %v3204
      %3236 = vmatprep.subr.mxu0 %v3207
      %3237 = vmatpush1.msra.mxu0 %v3206
      %3238 = vmatprep.subr.mxu0 %v3209
      %3239 = vmatpush1.msra.mxu0 %v3208
      %3240 = vmatprep.subr.mxu0 %v3211
      %3241 = vmatpush1.msra.mxu0 %v3210
      %3242 = vmatprep.subr.mxu0 %v3213
      %3243 = vmatpush1.msra.mxu0 %v3212
      %3244 = vmatprep.subr.mxu0 %v3215
      %3245 = vmatpush1.msra.mxu0 %v3214
      %3246 = vmatprep.subr.mxu0 %v3217
      %3247 = vmatpush1.msra.mxu0 %v3216
      %3248 = vmatprep.subr.mxu0 0.0
      %3249 = vmatpush1.msra.mxu0 0.0
      %3250 = vmatprep.subr.mxu0 0.0
      %3251 = vmatpush1.msra.mxu0 0.0
      %3252 = vmatprep.subr.mxu0 0.0
      %3253 = vmatpush1.msra.mxu0 0.0
      %3254 = vmatprep.subr.mxu0 0.0
      %3255 = vmatpush1.msra.mxu0 0.0
      %3256 = vmatprep.subr.mxu0 0.0
      %3257 = vmatpush1.msra.mxu0 0.0
      %3258 = vmatprep.subr.mxu0 0.0
      %3259 = vmatpush1.msra.mxu0 0.0
      %3260 = vmatprep.subr.mxu0 0.0
      %3261 = vmatpush1.msra.mxu0 0.0
      %3262 = vmatprep.subr.mxu0 0.0
      %3263 = vmatpush1.msra.mxu0 0.0
      %3264 = vmatprep.subr.mxu0 0.0
      %3265 = vmatpush1.msra.mxu0 0.0
      %3266 = vmatprep.subr.mxu0 0.0
      %3267 = vmatpush1.msra.mxu0 0.0
      %3268 = vmatprep.subr.mxu0 0.0
      %3269 = vmatpush1.msra.mxu0 0.0
      %3270 = vmatprep.subr.mxu0 0.0
      %3271 = vmatpush1.msra.mxu0 0.0
      %3272 = vmatprep.subr.mxu0 0.0
      %3273 = vmatpush1.msra.mxu0 0.0
      %3274 = vmatprep.subr.mxu0 0.0
      %3275 = vmatpush1.msra.mxu0 0.0
      %3276 = vmatprep.subr.mxu0 0.0
      %3277 = vmatpush1.msra.mxu0 0.0
      %3278 = vmatprep.subr.mxu0 0.0
      %3279 = vmatpush1.msra.mxu0 0.0
      %3280 = vmatprep.subr.mxu0 0.0
      %3281 = vmatpush1.msra.mxu0 0.0
      %3282 = vmatprep.subr.mxu0 0.0
      %3283 = vmatpush1.msra.mxu0 0.0
      %3284 = vmatprep.subr.mxu0 0.0
      %3285 = vmatpush1.msra.mxu0 0.0
      %3286 = vmatprep.subr.mxu0 0.0
      %3287 = vmatpush1.msra.mxu0 0.0
      %3288 = vmatprep.mubr.f32.mxu0 0.0
      %3289 = vmatmul.mubr.f32.gmra.mrb[0].mxu0 %v3219
      %v3290 = vpop.f32.mrb[0].mxu0
      %v3291 = vadd.f32 0.0, %v3290
      %v3292 = vpop.f32.mrb[0].mxu0
      %v3293 = vadd.f32 0.0, %v3292
      %3294 = vmatprep.mubr.f32.mxu0 0.0
      %3295 = vmatmul.mubr.f32.gmra.mrb[0].mxu0 %v3222
      %v3296 = vpop.f32.mrb[0].mxu0
      %v3297 = vadd.f32 0.0, %v3296
      %v3298 = vpop.f32.mrb[0].mxu0
      %v3299 = vadd.f32 0.0, %v3298
      %3300 = vdwg.mxu0
      %v3301 = vadd.f32 %v3187, %v3291
      %v3302 = vadd.f32 %v3188, %v3293
      %v3303 = vadd.f32 %v3189, %v3297
      %v3304 = vadd.f32 %v3190, %v3299
      %s3305 = scalar_lea.vmem %s8, 768
      %v3306 = vld [vmem:[%s3305] sm:$0xff]
      %v3307 = vld [vmem:[%s3305 + $0x8] sm:$0xff]
      %v3308 = vld [vmem:[%s3305 + $0x10] sm:$0xff]
      %v3309 = vld [vmem:[%s3305 + $0x18] sm:$0xff]
      %v3310 = vld [vmem:[%s3305 + $0x20] sm:$0xff]
      %v3311 = vld [vmem:[%s3305 + $0x28] sm:$0xff]
      %v3312 = vld [vmem:[%s3305 + $0x30] sm:$0xff]
      %v3313 = vld [vmem:[%s3305 + $0x38] sm:$0xff]
      %v3314 = vld [vmem:[%s3305 + $0x40] sm:$0xff]
      %v3315 = vld [vmem:[%s3305 + $0x48] sm:$0xff]
      %v3316 = vld [vmem:[%s3305 + $0x50] sm:$0xff]
      %v3317 = vld [vmem:[%s3305 + $0x58] sm:$0xff]
      %v3318 = vld [vmem:[%s3305 + $0x60] sm:$0xff]
      %v3319 = vld [vmem:[%s3305 + $0x68] sm:$0xff]
      %v3320 = vld [vmem:[%s3305 + $0x70] sm:$0xff]
      %v3321 = vld [vmem:[%s3305 + $0x78] sm:$0xff]
      %v3322 = vld [vmem:[%s3305 + $0x80] sm:$0xff]
      %v3323 = vld [vmem:[%s3305 + $0x88] sm:$0xff]
      %v3324 = vld [vmem:[%s3305 + $0x90] sm:$0xff]
      %v3325 = vld [vmem:[%s3305 + $0x98] sm:$0xff]
      %v3326 = vld [vmem:[%s3305 + $0xa0] sm:$0xff]
      %v3327 = vld [vmem:[%s3305 + $0xa8] sm:$0xff]
      %v3328 = vld [vmem:[%s3305 + $0xb0] sm:$0xff]
      %v3329 = vld [vmem:[%s3305 + $0xb8] sm:$0xff]
      %3330 = vrot.lane.b32.xlu0 %v3191, 120
      %v3331 = vpop.permute.xlu0 %3330
      %3332 = vrot.lane.b32.xlu0 %v3192, 120
      %v3333 = vpop.permute.xlu0 %3332
      %v3334 = vsel %vm2914, %v3331, 0
      %v3336 = vsel %vm2914, %v3333, 0
      %3338 = vmatprep.subr.mxu0 %v3307
      %3339 = vmatpush1.msra.mxu0 %v3306
      %3340 = vmatprep.subr.mxu0 %v3309
      %3341 = vmatpush1.msra.mxu0 %v3308
      %3342 = vmatprep.subr.mxu0 %v3311
      %3343 = vmatpush1.msra.mxu0 %v3310
      %3344 = vmatprep.subr.mxu0 %v3313
      %3345 = vmatpush1.msra.mxu0 %v3312
      %3346 = vmatprep.subr.mxu0 %v3315
      %3347 = vmatpush1.msra.mxu0 %v3314
      %3348 = vmatprep.subr.mxu0 %v3317
      %3349 = vmatpush1.msra.mxu0 %v3316
      %3350 = vmatprep.subr.mxu0 %v3319
      %3351 = vmatpush1.msra.mxu0 %v3318
      %3352 = vmatprep.subr.mxu0 %v3321
      %3353 = vmatpush1.msra.mxu0 %v3320
      %3354 = vmatprep.subr.mxu0 %v3323
      %3355 = vmatpush1.msra.mxu0 %v3322
      %3356 = vmatprep.subr.mxu0 %v3325
      %3357 = vmatpush1.msra.mxu0 %v3324
      %3358 = vmatprep.subr.mxu0 %v3327
      %3359 = vmatpush1.msra.mxu0 %v3326
      %3360 = vmatprep.subr.mxu0 %v3329
      %3361 = vmatpush1.msra.mxu0 %v3328
      %3362 = vmatprep.subr.mxu0 0.0
      %3363 = vmatpush1.msra.mxu0 0.0
      %3364 = vmatprep.subr.mxu0 0.0
      %3365 = vmatpush1.msra.mxu0 0.0
      %3366 = vmatprep.subr.mxu0 0.0
      %3367 = vmatpush1.msra.mxu0 0.0
      %3368 = vmatprep.subr.mxu0 0.0
      %3369 = vmatpush1.msra.mxu0 0.0
      %3370 = vmatprep.subr.mxu0 0.0
      %3371 = vmatpush1.msra.mxu0 0.0
      %3372 = vmatprep.subr.mxu0 0.0
      %3373 = vmatpush1.msra.mxu0 0.0
      %3374 = vmatprep.subr.mxu0 0.0
      %3375 = vmatpush1.msra.mxu0 0.0
      %3376 = vmatprep.subr.mxu0 0.0
      %3377 = vmatpush1.msra.mxu0 0.0
      %3378 = vmatprep.subr.mxu0 0.0
      %3379 = vmatpush1.msra.mxu0 0.0
      %3380 = vmatprep.subr.mxu0 0.0
      %3381 = vmatpush1.msra.mxu0 0.0
      %3382 = vmatprep.subr.mxu0 0.0
      %3383 = vmatpush1.msra.mxu0 0.0
      %3384 = vmatprep.subr.mxu0 0.0
      %3385 = vmatpush1.msra.mxu0 0.0
      %3386 = vmatprep.subr.mxu0 0.0
      %3387 = vmatpush1.msra.mxu0 0.0
      %3388 = vmatprep.subr.mxu0 0.0
      %3389 = vmatpush1.msra.mxu0 0.0
      %3390 = vmatprep.subr.mxu0 0.0
      %3391 = vmatpush1.msra.mxu0 0.0
      %3392 = vmatprep.subr.mxu0 0.0
      %3393 = vmatpush1.msra.mxu0 0.0
      %3394 = vmatprep.subr.mxu0 0.0
      %3395 = vmatpush1.msra.mxu0 0.0
      %3396 = vmatprep.subr.mxu0 0.0
      %3397 = vmatpush1.msra.mxu0 0.0
      %3398 = vmatprep.subr.mxu0 0.0
      %3399 = vmatpush1.msra.mxu0 0.0
      %3400 = vmatprep.subr.mxu0 0.0
      %3401 = vmatpush1.msra.mxu0 0.0
      %3402 = vmatprep.mubr.f32.mxu0 0.0
      %3403 = vmatmul.mubr.f32.gmra.mrb[0].mxu0 %v3334
      %v3404 = vpop.f32.mrb[0].mxu0
      %v3405 = vadd.f32 0.0, %v3404
      %v3406 = vpop.f32.mrb[0].mxu0
      %v3407 = vadd.f32 0.0, %v3406
      %3408 = vmatprep.mubr.f32.mxu0 0.0
      %3409 = vmatmul.mubr.f32.gmra.mrb[0].mxu0 %v3336
      %v3410 = vpop.f32.mrb[0].mxu0
      %v3411 = vadd.f32 0.0, %v3410
      %v3412 = vpop.f32.mrb[0].mxu0
      %v3413 = vadd.f32 0.0, %v3412
      %3414 = vdwg.mxu0
      %v3415 = vadd.f32 %v3301, %v3405
      %v3416 = vadd.f32 %v3302, %v3407
      %v3417 = vadd.f32 %v3303, %v3411
      %v3418 = vadd.f32 %v3304, %v3413
      %s3419 = scalar_lea.vmem %s8, 960
      %v3420 = vld [vmem:[%s3419] sm:$0xff]
      %v3421 = vld [vmem:[%s3419 + $0x8] sm:$0xff]
      %v3422 = vld [vmem:[%s3419 + $0x10] sm:$0xff]
      %v3423 = vld [vmem:[%s3419 + $0x18] sm:$0xff]
      %v3424 = vld [vmem:[%s3419 + $0x20] sm:$0xff]
      %v3425 = vld [vmem:[%s3419 + $0x28] sm:$0xff]
      %v3426 = vld [vmem:[%s3419 + $0x30] sm:$0xff]
      %v3427 = vld [vmem:[%s3419 + $0x38] sm:$0xff]
      %v3428 = vld [vmem:[%s3419 + $0x40] sm:$0xff]
      %v3429 = vld [vmem:[%s3419 + $0x48] sm:$0xff]
      %v3430 = vld [vmem:[%s3419 + $0x50] sm:$0xff]
      %v3431 = vld [vmem:[%s3419 + $0x58] sm:$0xff]
      %v3432 = vld [vmem:[%s3419 + $0x60] sm:$0xff]
      %v3433 = vld [vmem:[%s3419 + $0x68] sm:$0xff]
      %v3434 = vld [vmem:[%s3419 + $0x70] sm:$0xff]
      %v3435 = vld [vmem:[%s3419 + $0x78] sm:$0xff]
      %v3436 = vld [vmem:[%s3419 + $0x80] sm:$0xff]
      %v3437 = vld [vmem:[%s3419 + $0x88] sm:$0xff]
      %v3438 = vld [vmem:[%s3419 + $0x90] sm:$0xff]
      %v3439 = vld [vmem:[%s3419 + $0x98] sm:$0xff]
      %v3440 = vld [vmem:[%s3419 + $0xa0] sm:$0xff]
      %v3441 = vld [vmem:[%s3419 + $0xa8] sm:$0xff]
      %v3442 = vld [vmem:[%s3419 + $0xb0] sm:$0xff]
      %v3443 = vld [vmem:[%s3419 + $0xb8] sm:$0xff]
      %3444 = vrot.lane.b32.xlu0 %v3191, 112
      %v3445 = vpop.permute.xlu0 %3444
      %3446 = vrot.lane.b32.xlu0 %v3192, 112
      %v3447 = vpop.permute.xlu0 %3446
      %v3448 = vsel %vm2914, %v3445, 0
      %v3450 = vsel %vm2914, %v3447, 0
      %3452 = vmatprep.subr.mxu0 %v3421
      %3453 = vmatpush1.msra.mxu0 %v3420
      %3454 = vmatprep.subr.mxu0 %v3423
      %3455 = vmatpush1.msra.mxu0 %v3422
      %3456 = vmatprep.subr.mxu0 %v3425
      %3457 = vmatpush1.msra.mxu0 %v3424
      %3458 = vmatprep.subr.mxu0 %v3427
      %3459 = vmatpush1.msra.mxu0 %v3426
      %3460 = vmatprep.subr.mxu0 %v3429
      %3461 = vmatpush1.msra.mxu0 %v3428
      %3462 = vmatprep.subr.mxu0 %v3431
      %3463 = vmatpush1.msra.mxu0 %v3430
      %3464 = vmatprep.subr.mxu0 %v3433
      %3465 = vmatpush1.msra.mxu0 %v3432
      %3466 = vmatprep.subr.mxu0 %v3435
      %3467 = vmatpush1.msra.mxu0 %v3434
      %3468 = vmatprep.subr.mxu0 %v3437
      %3469 = vmatpush1.msra.mxu0 %v3436
      %3470 = vmatprep.subr.mxu0 %v3439
      %3471 = vmatpush1.msra.mxu0 %v3438
      %3472 = vmatprep.subr.mxu0 %v3441
      %3473 = vmatpush1.msra.mxu0 %v3440
      %3474 = vmatprep.subr.mxu0 %v3443
      %3475 = vmatpush1.msra.mxu0 %v3442
      %3476 = vmatprep.subr.mxu0 0.0
      %3477 = vmatpush1.msra.mxu0 0.0
      %3478 = vmatprep.subr.mxu0 0.0
      %3479 = vmatpush1.msra.mxu0 0.0
      %3480 = vmatprep.subr.mxu0 0.0
      %3481 = vmatpush1.msra.mxu0 0.0
      %3482 = vmatprep.subr.mxu0 0.0
      %3483 = vmatpush1.msra.mxu0 0.0
      %3484 = vmatprep.subr.mxu0 0.0
      %3485 = vmatpush1.msra.mxu0 0.0
      %3486 = vmatprep.subr.mxu0 0.0
      %3487 = vmatpush1.msra.mxu0 0.0
      %3488 = vmatprep.subr.mxu0 0.0
      %3489 = vmatpush1.msra.mxu0 0.0
      %3490 = vmatprep.subr.mxu0 0.0
      %3491 = vmatpush1.msra.mxu0 0.0
      %3492 = vmatprep.subr.mxu0 0.0
      %3493 = vmatpush1.msra.mxu0 0.0
      %3494 = vmatprep.subr.mxu0 0.0
      %3495 = vmatpush1.msra.mxu0 0.0
      %3496 = vmatprep.subr.mxu0 0.0
      %3497 = vmatpush1.msra.mxu0 0.0
      %3498 = vmatprep.subr.mxu0 0.0
      %3499 = vmatpush1.msra.mxu0 0.0
      %3500 = vmatprep.subr.mxu0 0.0
      %3501 = vmatpush1.msra.mxu0 0.0
      %3502 = vmatprep.subr.mxu0 0.0
      %3503 = vmatpush1.msra.mxu0 0.0
      %3504 = vmatprep.subr.mxu0 0.0
      %3505 = vmatpush1.msra.mxu0 0.0
      %3506 = vmatprep.subr.mxu0 0.0
      %3507 = vmatpush1.msra.mxu0 0.0
      %3508 = vmatprep.subr.mxu0 0.0
      %3509 = vmatpush1.msra.mxu0 0.0
      %3510 = vmatprep.subr.mxu0 0.0
      %3511 = vmatpush1.msra.mxu0 0.0
      %3512 = vmatprep.subr.mxu0 0.0
      %3513 = vmatpush1.msra.mxu0 0.0
      %3514 = vmatprep.subr.mxu0 0.0
      %3515 = vmatpush1.msra.mxu0 0.0
      %3516 = vmatprep.mubr.f32.mxu0 0.0
      %3517 = vmatmul.mubr.f32.gmra.mrb[0].mxu0 %v3448
      %v3518 = vpop.f32.mrb[0].mxu0
      %v3519 = vadd.f32 0.0, %v3518
      %v3520 = vpop.f32.mrb[0].mxu0
      %v3521 = vadd.f32 0.0, %v3520
      %3522 = vmatprep.mubr.f32.mxu0 0.0
      %3523 = vmatmul.mubr.f32.gmra.mrb[0].mxu0 %v3450
      %v3524 = vpop.f32.mrb[0].mxu0
      %v3525 = vadd.f32 0.0, %v3524
      %v3526 = vpop.f32.mrb[0].mxu0
      %v3527 = vadd.f32 0.0, %v3526
      %3528 = vdwg.mxu0
      %v3529 = vadd.f32 %v3415, %v3519
      %v3530 = vadd.f32 %v3416, %v3521
      %v3531 = vadd.f32 %v3417, %v3525
      %v3532 = vadd.f32 %v3418, %v3527
      %v3533 = vld [vmem:[#allocation4 + $0x2] sm:$0xff]
      %v3534 = vld [vmem:[#allocation4 + $0xa] sm:$0xf]
      %s3535 = scalar_lea.vmem %s8, 1152
      %v3536 = vld [vmem:[%s3535] sm:$0xff]
      %v3537 = vld [vmem:[%s3535 + $0x8] sm:$0xff]
      %v3538 = vld [vmem:[%s3535 + $0x10] sm:$0xff]
      %v3539 = vld [vmem:[%s3535 + $0x18] sm:$0xff]
      %v3540 = vld [vmem:[%s3535 + $0x20] sm:$0xff]
      %v3541 = vld [vmem:[%s3535 + $0x28] sm:$0xff]
      %v3542 = vld [vmem:[%s3535 + $0x30] sm:$0xff]
      %v3543 = vld [vmem:[%s3535 + $0x38] sm:$0xff]
      %v3544 = vld [vmem:[%s3535 + $0x40] sm:$0xff]
      %v3545 = vld [vmem:[%s3535 + $0x48] sm:$0xff]
      %v3546 = vld [vmem:[%s3535 + $0x50] sm:$0xff]
      %v3547 = vld [vmem:[%s3535 + $0x58] sm:$0xff]
      %v3548 = vld [vmem:[%s3535 + $0x60] sm:$0xff]
      %v3549 = vld [vmem:[%s3535 + $0x68] sm:$0xff]
      %v3550 = vld [vmem:[%s3535 + $0x70] sm:$0xff]
      %v3551 = vld [vmem:[%s3535 + $0x78] sm:$0xff]
      %v3552 = vld [vmem:[%s3535 + $0x80] sm:$0xff]
      %v3553 = vld [vmem:[%s3535 + $0x88] sm:$0xff]
      %v3554 = vld [vmem:[%s3535 + $0x90] sm:$0xff]
      %v3555 = vld [vmem:[%s3535 + $0x98] sm:$0xff]
      %v3556 = vld [vmem:[%s3535 + $0xa0] sm:$0xff]
      %v3557 = vld [vmem:[%s3535 + $0xa8] sm:$0xff]
      %v3558 = vld [vmem:[%s3535 + $0xb0] sm:$0xff]
      %v3559 = vld [vmem:[%s3535 + $0xb8] sm:$0xff]
      %v3561 = vsel %vm2914, %v3533, 0
      %v3564 = vsel %vm2914, %v3534, 0
      %3566 = vmatprep.subr.mxu0 %v3537
      %3567 = vmatpush1.msra.mxu0 %v3536
      %3568 = vmatprep.subr.mxu0 %v3539
      %3569 = vmatpush1.msra.mxu0 %v3538
      %3570 = vmatprep.subr.mxu0 %v3541
      %3571 = vmatpush1.msra.mxu0 %v3540
      %3572 = vmatprep.subr.mxu0 %v3543
      %3573 = vmatpush1.msra.mxu0 %v3542
      %3574 = vmatprep.subr.mxu0 %v3545
      %3575 = vmatpush1.msra.mxu0 %v3544
      %3576 = vmatprep.subr.mxu0 %v3547
      %3577 = vmatpush1.msra.mxu0 %v3546
      %3578 = vmatprep.subr.mxu0 %v3549
      %3579 = vmatpush1.msra.mxu0 %v3548
      %3580 = vmatprep.subr.mxu0 %v3551
      %3581 = vmatpush1.msra.mxu0 %v3550
      %3582 = vmatprep.subr.mxu0 %v3553
      %3583 = vmatpush1.msra.mxu0 %v3552
      %3584 = vmatprep.subr.mxu0 %v3555
      %3585 = vmatpush1.msra.mxu0 %v3554
      %3586 = vmatprep.subr.mxu0 %v3557
      %3587 = vmatpush1.msra.mxu0 %v3556
      %3588 = vmatprep.subr.mxu0 %v3559
      %3589 = vmatpush1.msra.mxu0 %v3558
      %3590 = vmatprep.subr.mxu0 0.0
      %3591 = vmatpush1.msra.mxu0 0.0
      %3592 = vmatprep.subr.mxu0 0.0
      %3593 = vmatpush1.msra.mxu0 0.0
      %3594 = vmatprep.subr.mxu0 0.0
      %3595 = vmatpush1.msra.mxu0 0.0
      %3596 = vmatprep.subr.mxu0 0.0
      %3597 = vmatpush1.msra.mxu0 0.0
      %3598 = vmatprep.subr.mxu0 0.0
      %3599 = vmatpush1.msra.mxu0 0.0
      %3600 = vmatprep.subr.mxu0 0.0
      %3601 = vmatpush1.msra.mxu0 0.0
      %3602 = vmatprep.subr.mxu0 0.0
      %3603 = vmatpush1.msra.mxu0 0.0
      %3604 = vmatprep.subr.mxu0 0.0
      %3605 = vmatpush1.msra.mxu0 0.0
      %3606 = vmatprep.subr.mxu0 0.0
      %3607 = vmatpush1.msra.mxu0 0.0
      %3608 = vmatprep.subr.mxu0 0.0
      %3609 = vmatpush1.msra.mxu0 0.0
      %3610 = vmatprep.subr.mxu0 0.0
      %3611 = vmatpush1.msra.mxu0 0.0
      %3612 = vmatprep.subr.mxu0 0.0
      %3613 = vmatpush1.msra.mxu0 0.0
      %3614 = vmatprep.subr.mxu0 0.0
      %3615 = vmatpush1.msra.mxu0 0.0
      %3616 = vmatprep.subr.mxu0 0.0
      %3617 = vmatpush1.msra.mxu0 0.0
      %3618 = vmatprep.subr.mxu0 0.0
      %3619 = vmatpush1.msra.mxu0 0.0
      %3620 = vmatprep.subr.mxu0 0.0
      %3621 = vmatpush1.msra.mxu0 0.0
      %3622 = vmatprep.subr.mxu0 0.0
      %3623 = vmatpush1.msra.mxu0 0.0
      %3624 = vmatprep.subr.mxu0 0.0
      %3625 = vmatpush1.msra.mxu0 0.0
      %3626 = vmatprep.subr.mxu0 0.0
      %3627 = vmatpush1.msra.mxu0 0.0
      %3628 = vmatprep.subr.mxu0 0.0
      %3629 = vmatpush1.msra.mxu0 0.0
      %3630 = vmatprep.mubr.f32.mxu0 0.0
      %3631 = vmatmul.mubr.f32.gmra.mrb[0].mxu0 %v3561
      %v3632 = vpop.f32.mrb[0].mxu0
      %v3633 = vadd.f32 0.0, %v3632
      %v3634 = vpop.f32.mrb[0].mxu0
      %v3635 = vadd.f32 0.0, %v3634
      %3636 = vmatprep.mubr.f32.mxu0 0.0
      %3637 = vmatmul.mubr.f32.gmra.mrb[0].mxu0 %v3564
      %v3638 = vpop.f32.mrb[0].mxu0
      %v3639 = vadd.f32 0.0, %v3638
      %v3640 = vpop.f32.mrb[0].mxu0
      %v3641 = vadd.f32 0.0, %v3640
      %3642 = vdwg.mxu0
      %v3643 = vadd.f32 %v3529, %v3633
      %v3644 = vadd.f32 %v3530, %v3635
      %v3645 = vadd.f32 %v3531, %v3639
      %v3646 = vadd.f32 %v3532, %v3641
      %s3647 = scalar_lea.vmem %s8, 1344
      %v3648 = vld [vmem:[%s3647] sm:$0xff]
      %v3649 = vld [vmem:[%s3647 + $0x8] sm:$0xff]
      %v3650 = vld [vmem:[%s3647 + $0x10] sm:$0xff]
      %v3651 = vld [vmem:[%s3647 + $0x18] sm:$0xff]
      %v3652 = vld [vmem:[%s3647 + $0x20] sm:$0xff]
      %v3653 = vld [vmem:[%s3647 + $0x28] sm:$0xff]
      %v3654 = vld [vmem:[%s3647 + $0x30] sm:$0xff]
      %v3655 = vld [vmem:[%s3647 + $0x38] sm:$0xff]
      %v3656 = vld [vmem:[%s3647 + $0x40] sm:$0xff]
      %v3657 = vld [vmem:[%s3647 + $0x48] sm:$0xff]
      %v3658 = vld [vmem:[%s3647 + $0x50] sm:$0xff]
      %v3659 = vld [vmem:[%s3647 + $0x58] sm:$0xff]
      %v3660 = vld [vmem:[%s3647 + $0x60] sm:$0xff]
      %v3661 = vld [vmem:[%s3647 + $0x68] sm:$0xff]
      %v3662 = vld [vmem:[%s3647 + $0x70] sm:$0xff]
      %v3663 = vld [vmem:[%s3647 + $0x78] sm:$0xff]
      %v3664 = vld [vmem:[%s3647 + $0x80] sm:$0xff]
      %v3665 = vld [vmem:[%s3647 + $0x88] sm:$0xff]
      %v3666 = vld [vmem:[%s3647 + $0x90] sm:$0xff]
      %v3667 = vld [vmem:[%s3647 + $0x98] sm:$0xff]
      %v3668 = vld [vmem:[%s3647 + $0xa0] sm:$0xff]
      %v3669 = vld [vmem:[%s3647 + $0xa8] sm:$0xff]
      %v3670 = vld [vmem:[%s3647 + $0xb0] sm:$0xff]
      %v3671 = vld [vmem:[%s3647 + $0xb8] sm:$0xff]
      %3672 = vrot.lane.b32.xlu0 %v3533, 120
      %v3673 = vpop.permute.xlu0 %3672
      %3674 = vrot.lane.b32.xlu0 %v3534, 120
      %v3675 = vpop.permute.xlu0 %3674
      %v3676 = vsel %vm2914, %v3673, 0
      %v3678 = vsel %vm2914, %v3675, 0
      %3680 = vmatprep.subr.mxu0 %v3649
      %3681 = vmatpush1.msra.mxu0 %v3648
      %3682 = vmatprep.subr.mxu0 %v3651
      %3683 = vmatpush1.msra.mxu0 %v3650
      %3684 = vmatprep.subr.mxu0 %v3653
      %3685 = vmatpush1.msra.mxu0 %v3652
      %3686 = vmatprep.subr.mxu0 %v3655
      %3687 = vmatpush1.msra.mxu0 %v3654
      %3688 = vmatprep.subr.mxu0 %v3657
      %3689 = vmatpush1.msra.mxu0 %v3656
      %3690 = vmatprep.subr.mxu0 %v3659
      %3691 = vmatpush1.msra.mxu0 %v3658
      %3692 = vmatprep.subr.mxu0 %v3661
      %3693 = vmatpush1.msra.mxu0 %v3660
      %3694 = vmatprep.subr.mxu0 %v3663
      %3695 = vmatpush1.msra.mxu0 %v3662
      %3696 = vmatprep.subr.mxu0 %v3665
      %3697 = vmatpush1.msra.mxu0 %v3664
      %3698 = vmatprep.subr.mxu0 %v3667
      %3699 = vmatpush1.msra.mxu0 %v3666
      %3700 = vmatprep.subr.mxu0 %v3669
      %3701 = vmatpush1.msra.mxu0 %v3668
      %3702 = vmatprep.subr.mxu0 %v3671
      %3703 = vmatpush1.msra.mxu0 %v3670
      %3704 = vmatprep.subr.mxu0 0.0
      %3705 = vmatpush1.msra.mxu0 0.0
      %3706 = vmatprep.subr.mxu0 0.0
      %3707 = vmatpush1.msra.mxu0 0.0
      %3708 = vmatprep.subr.mxu0 0.0
      %3709 = vmatpush1.msra.mxu0 0.0
      %3710 = vmatprep.subr.mxu0 0.0
      %3711 = vmatpush1.msra.mxu0 0.0
      %3712 = vmatprep.subr.mxu0 0.0
      %3713 = vmatpush1.msra.mxu0 0.0
      %3714 = vmatprep.subr.mxu0 0.0
      %3715 = vmatpush1.msra.mxu0 0.0
      %3716 = vmatprep.subr.mxu0 0.0
      %3717 = vmatpush1.msra.mxu0 0.0
      %3718 = vmatprep.subr.mxu0 0.0
      %3719 = vmatpush1.msra.mxu0 0.0
      %3720 = vmatprep.subr.mxu0 0.0
      %3721 = vmatpush1.msra.mxu0 0.0
      %3722 = vmatprep.subr.mxu0 0.0
      %3723 = vmatpush1.msra.mxu0 0.0
      %3724 = vmatprep.subr.mxu0 0.0
      %3725 = vmatpush1.msra.mxu0 0.0
      %3726 = vmatprep.subr.mxu0 0.0
      %3727 = vmatpush1.msra.mxu0 0.0
      %3728 = vmatprep.subr.mxu0 0.0
      %3729 = vmatpush1.msra.mxu0 0.0
      %3730 = vmatprep.subr.mxu0 0.0
      %3731 = vmatpush1.msra.mxu0 0.0
      %3732 = vmatprep.subr.mxu0 0.0
      %3733 = vmatpush1.msra.mxu0 0.0
      %3734 = vmatprep.subr.mxu0 0.0
      %3735 = vmatpush1.msra.mxu0 0.0
      %3736 = vmatprep.subr.mxu0 0.0
      %3737 = vmatpush1.msra.mxu0 0.0
      %3738 = vmatprep.subr.mxu0 0.0
      %3739 = vmatpush1.msra.mxu0 0.0
      %3740 = vmatprep.subr.mxu0 0.0
      %3741 = vmatpush1.msra.mxu0 0.0
      %3742 = vmatprep.subr.mxu0 0.0
      %3743 = vmatpush1.msra.mxu0 0.0
      %3744 = vmatprep.mubr.f32.mxu0 0.0
      %3745 = vmatmul.mubr.f32.gmra.mrb[0].mxu0 %v3676
      %v3746 = vpop.f32.mrb[0].mxu0
      %v3747 = vadd.f32 0.0, %v3746
      %v3748 = vpop.f32.mrb[0].mxu0
      %v3749 = vadd.f32 0.0, %v3748
      %3750 = vmatprep.mubr.f32.mxu0 0.0
      %3751 = vmatmul.mubr.f32.gmra.mrb[0].mxu0 %v3678
      %v3752 = vpop.f32.mrb[0].mxu0
      %v3753 = vadd.f32 0.0, %v3752
      %v3754 = vpop.f32.mrb[0].mxu0
      %v3755 = vadd.f32 0.0, %v3754
      %3756 = vdwg.mxu0
      %v3757 = vadd.f32 %v3643, %v3747
      %v3758 = vadd.f32 %v3644, %v3749
      %v3759 = vadd.f32 %v3645, %v3753
      %v3760 = vadd.f32 %v3646, %v3755
      %s3761 = scalar_lea.vmem %s8, 1536
      %v3762 = vld [vmem:[%s3761] sm:$0xff]
      %v3763 = vld [vmem:[%s3761 + $0x8] sm:$0xff]
      %v3764 = vld [vmem:[%s3761 + $0x10] sm:$0xff]
      %v3765 = vld [vmem:[%s3761 + $0x18] sm:$0xff]
      %v3766 = vld [vmem:[%s3761 + $0x20] sm:$0xff]
      %v3767 = vld [vmem:[%s3761 + $0x28] sm:$0xff]
      %v3768 = vld [vmem:[%s3761 + $0x30] sm:$0xff]
      %v3769 = vld [vmem:[%s3761 + $0x38] sm:$0xff]
      %v3770 = vld [vmem:[%s3761 + $0x40] sm:$0xff]
      %v3771 = vld [vmem:[%s3761 + $0x48] sm:$0xff]
      %v3772 = vld [vmem:[%s3761 + $0x50] sm:$0xff]
      %v3773 = vld [vmem:[%s3761 + $0x58] sm:$0xff]
      %v3774 = vld [vmem:[%s3761 + $0x60] sm:$0xff]
      %v3775 = vld [vmem:[%s3761 + $0x68] sm:$0xff]
      %v3776 = vld [vmem:[%s3761 + $0x70] sm:$0xff]
      %v3777 = vld [vmem:[%s3761 + $0x78] sm:$0xff]
      %v3778 = vld [vmem:[%s3761 + $0x80] sm:$0xff]
      %v3779 = vld [vmem:[%s3761 + $0x88] sm:$0xff]
      %v3780 = vld [vmem:[%s3761 + $0x90] sm:$0xff]
      %v3781 = vld [vmem:[%s3761 + $0x98] sm:$0xff]
      %v3782 = vld [vmem:[%s3761 + $0xa0] sm:$0xff]
      %v3783 = vld [vmem:[%s3761 + $0xa8] sm:$0xff]
      %v3784 = vld [vmem:[%s3761 + $0xb0] sm:$0xff]
      %v3785 = vld [vmem:[%s3761 + $0xb8] sm:$0xff]
      %3786 = vrot.lane.b32.xlu0 %v3533, 112
      %v3787 = vpop.permute.xlu0 %3786
      %3788 = vrot.lane.b32.xlu0 %v3534, 112
      %v3789 = vpop.permute.xlu0 %3788
      %v3790 = vsel %vm2914, %v3787, 0
      %v3792 = vsel %vm2914, %v3789, 0
      %3794 = vmatprep.subr.mxu0 %v3763
      %3795 = vmatpush1.msra.mxu0 %v3762
      %3796 = vmatprep.subr.mxu0 %v3765
      %3797 = vmatpush1.msra.mxu0 %v3764
      %3798 = vmatprep.subr.mxu0 %v3767
      %3799 = vmatpush1.msra.mxu0 %v3766
      %3800 = vmatprep.subr.mxu0 %v3769
      %3801 = vmatpush1.msra.mxu0 %v3768
      %3802 = vmatprep.subr.mxu0 %v3771
      %3803 = vmatpush1.msra.mxu0 %v3770
      %3804 = vmatprep.subr.mxu0 %v3773
      %3805 = vmatpush1.msra.mxu0 %v3772
      %3806 = vmatprep.subr.mxu0 %v3775
      %3807 = vmatpush1.msra.mxu0 %v3774
      %3808 = vmatprep.subr.mxu0 %v3777
      %3809 = vmatpush1.msra.mxu0 %v3776
      %3810 = vmatprep.subr.mxu0 %v3779
      %3811 = vmatpush1.msra.mxu0 %v3778
      %3812 = vmatprep.subr.mxu0 %v3781
      %3813 = vmatpush1.msra.mxu0 %v3780
      %3814 = vmatprep.subr.mxu0 %v3783
      %3815 = vmatpush1.msra.mxu0 %v3782
      %3816 = vmatprep.subr.mxu0 %v3785
      %3817 = vmatpush1.msra.mxu0 %v3784
      %3818 = vmatprep.subr.mxu0 0.0
      %3819 = vmatpush1.msra.mxu0 0.0
      %3820 = vmatprep.subr.mxu0 0.0
      %3821 = vmatpush1.msra.mxu0 0.0
      %3822 = vmatprep.subr.mxu0 0.0
      %3823 = vmatpush1.msra.mxu0 0.0
      %3824 = vmatprep.subr.mxu0 0.0
      %3825 = vmatpush1.msra.mxu0 0.0
      %3826 = vmatprep.subr.mxu0 0.0
      %3827 = vmatpush1.msra.mxu0 0.0
      %3828 = vmatprep.subr.mxu0 0.0
      %3829 = vmatpush1.msra.mxu0 0.0
      %3830 = vmatprep.subr.mxu0 0.0
      %3831 = vmatpush1.msra.mxu0 0.0
      %3832 = vmatprep.subr.mxu0 0.0
      %3833 = vmatpush1.msra.mxu0 0.0
      %3834 = vmatprep.subr.mxu0 0.0
      %3835 = vmatpush1.msra.mxu0 0.0
      %3836 = vmatprep.subr.mxu0 0.0
      %3837 = vmatpush1.msra.mxu0 0.0
      %3838 = vmatprep.subr.mxu0 0.0
      %3839 = vmatpush1.msra.mxu0 0.0
      %3840 = vmatprep.subr.mxu0 0.0
      %3841 = vmatpush1.msra.mxu0 0.0
      %3842 = vmatprep.subr.mxu0 0.0
      %3843 = vmatpush1.msra.mxu0 0.0
      %3844 = vmatprep.subr.mxu0 0.0
      %3845 = vmatpush1.msra.mxu0 0.0
      %3846 = vmatprep.subr.mxu0 0.0
      %3847 = vmatpush1.msra.mxu0 0.0
      %3848 = vmatprep.subr.mxu0 0.0
      %3849 = vmatpush1.msra.mxu0 0.0
      %3850 = vmatprep.subr.mxu0 0.0
      %3851 = vmatpush1.msra.mxu0 0.0
      %3852 = vmatprep.subr.mxu0 0.0
      %3853 = vmatpush1.msra.mxu0 0.0
      %3854 = vmatprep.subr.mxu0 0.0
      %3855 = vmatpush1.msra.mxu0 0.0
      %3856 = vmatprep.subr.mxu0 0.0
      %3857 = vmatpush1.msra.mxu0 0.0
      %3858 = vmatprep.mubr.f32.mxu0 0.0
      %3859 = vmatmul.mubr.f32.gmra.mrb[0].mxu0 %v3790
      %v3860 = vpop.f32.mrb[0].mxu0
      %v3861 = vadd.f32 0.0, %v3860
      %v3862 = vpop.f32.mrb[0].mxu0
      %v3863 = vadd.f32 0.0, %v3862
      %3864 = vmatprep.mubr.f32.mxu0 0.0
      %3865 = vmatmul.mubr.f32.gmra.mrb[0].mxu0 %v3792
      %v3866 = vpop.f32.mrb[0].mxu0
      %v3867 = vadd.f32 0.0, %v3866
      %v3868 = vpop.f32.mrb[0].mxu0
      %v3869 = vadd.f32 0.0, %v3868
      %3870 = vdwg.mxu0
      %v3871 = vadd.f32 %v3757, %v3861
      %v3872 = vadd.f32 %v3758, %v3863
      %v3873 = vadd.f32 %v3759, %v3867
      %v3874 = vadd.f32 %v3760, %v3869
      %v3875 = vld [vmem:[%s9] sm:$0x3]
      %v3877 = vlaneseq
      %v3878 = vshrl.u32 %v3877, 7
      %v3879 = vsub.s32 0, %v3878
      %v3880 = vrot.slane %v3875, %v3879
      %v3881 = vlaneseq
      %v3882 = vshrl.u32 %v3881, 7
      %v3883 = vsub.s32 1, %v3882
      %v3884 = vrot.slane %v3875, %v3883
      %v3887 = vadd.f32 %v3871, %v3880
      %v3888 = vadd.f32 %v3872, %v3884
      %v3889 = vadd.f32 %v3873, %v3880
      %v3890 = vadd.f32 %v3874, %v3884
      %3891 = vst [vmem:[#allocation5] sm:$0xff] %v3887
      %3892 = vst.msk [vmem:[#allocation5 + $0x8] sm:$0xff] %vm1248, %v3888
      %3893 = vst [vmem:[#allocation5 + $0x10] sm:$0xf] %v3889
      %vm3894 = vcmask 519168
      %3895 = vst.msk [vmem:[#allocation5 + $0x18] sm:$0xf] %vm3894, %v3890
      %v3896 = vld [vmem:[#allocation3] sm:$0xff]
      %v3897 = vlaneseq
      %v3898 = vshrl.u32 %v3897, 7
      %v3899 = vlaneseq
      %v3900 = vand.u32 %v3899, 127
      %v3901 = vld [vmem:[#allocation5] sm:$0xff]
      %v3902 = vmul.f32 %v3901, %v3896
      %3903 = vadd.xlane.f32.xlu0 %v3902
      %v3904 = vpop.xlane.xlu0 %3903
      %v3905 = vrot.slane %v3904, 4
      %v3906 = vadd.f32 %v3904, %v3905
      %v3907 = vrot.slane %v3906, 2
      %v3908 = vadd.f32 %v3906, %v3907
      %v3909 = vrot.slane %v3908, 1
      %v3910 = vadd.f32 %v3908, %v3909
      %s3911 = vtos %v3910
      %s3912 = smul.f32 %s3911, 0.001
      %vm3913 = vcmp.eq.s32.totalorder %v3898, 0
      %vm3914 = vcmp.eq.s32.totalorder %v3900, 0
      %vm3915 = vmand %vm3913, %vm3914
      %v3916 = vstv %s3912
      %v3917 = vsel %vm3915, %v3916, 0.0
      %v3918 = vld [vmem:[#allocation5 + $0x8] sm:$0xff]
      %3920 = vrot.lane.b32.xlu0 %v3896, 16
      %v3921 = vpop.permute.xlu0 %3920
      %v3923 = vmul.f32 %v3901, %v3921
      %v3924 = vmul.f32 %v3918, %v3921
      %3927 = vrot.lane.b32.xlu0 %v3923, 112
      %v3928 = vpop.permute.xlu0 %3927
      %3929 = vrot.lane.b32.xlu0 %v3924, 112
      %v3930 = vpop.permute.xlu0 %3929
      %v3931 = vsel %vm2853, %v3928, %v3930
      %3933 = vadd.xlane.f32.xlu0 %v3931
      %v3934 = vpop.xlane.xlu0 %3933
      %v3935 = vrot.slane %v3934, 4
      %v3936 = vadd.f32 %v3934, %v3935
      %v3937 = vrot.slane %v3936, 2
      %v3938 = vadd.f32 %v3936, %v3937
      %v3939 = vrot.slane %v3938, 1
      %v3940 = vadd.f32 %v3938, %v3939
      %s3941 = vtos %v3940
      %s3942 = smul.f32 %s3941, 0.001
      %vm3943 = vcmp.eq.s32.totalorder %v3900, 1
      %vm3944 = vmand %vm3913, %vm3943
      %v3945 = vstv %s3942
      %v3946 = vsel %vm3944, %v3945, %v3917
      %3947 = vrot.lane.b32.xlu0 %v3896, 32
      %v3948 = vpop.permute.xlu0 %3947
      %v3950 = vmul.f32 %v3901, %v3948
      %v3951 = vmul.f32 %v3918, %v3948
      %3954 = vrot.lane.b32.xlu0 %v3950, 96
      %v3955 = vpop.permute.xlu0 %3954
      %3956 = vrot.lane.b32.xlu0 %v3951, 96
      %v3957 = vpop.permute.xlu0 %3956
      %v3958 = vsel %vm2914, %v3955, %v3957
      %3960 = vadd.xlane.f32.xlu0 %v3958
      %v3961 = vpop.xlane.xlu0 %3960
      %v3962 = vrot.slane %v3961, 4
      %v3963 = vadd.f32 %v3961, %v3962
      %v3964 = vrot.slane %v3963, 2
      %v3965 = vadd.f32 %v3963, %v3964
      %v3966 = vrot.slane %v3965, 1
      %v3967 = vadd.f32 %v3965, %v3966
      %s3968 = vtos %v3967
      %s3969 = smul.f32 %s3968, 0.001
      %vm3970 = vcmp.eq.s32.totalorder %v3900, 2
      %vm3971 = vmand %vm3913, %vm3970
      %v3972 = vstv %s3969
      %v3973 = vsel %vm3971, %v3972, %v3946
      %3974 = vrot.lane.b32.xlu0 %v3896, 48
      %v3975 = vpop.permute.xlu0 %3974
      %v3977 = vmul.f32 %v3901, %v3975
      %v3978 = vmul.f32 %v3918, %v3975
      %3981 = vrot.lane.b32.xlu0 %v3977, 80
      %v3982 = vpop.permute.xlu0 %3981
      %3983 = vrot.lane.b32.xlu0 %v3978, 80
      %v3984 = vpop.permute.xlu0 %3983
      %v3985 = vsel %vm1223, %v3982, %v3984
      %3987 = vadd.xlane.f32.xlu0 %v3985
      %v3988 = vpop.xlane.xlu0 %3987
      %v3989 = vrot.slane %v3988, 4
      %v3990 = vadd.f32 %v3988, %v3989
      %v3991 = vrot.slane %v3990, 2
      %v3992 = vadd.f32 %v3990, %v3991
      %v3993 = vrot.slane %v3992, 1
      %v3994 = vadd.f32 %v3992, %v3993
      %s3995 = vtos %v3994
      %s3996 = smul.f32 %s3995, 0.001
      %vm3997 = vcmp.eq.s32.totalorder %v3900, 3
      %vm3998 = vmand %vm3913, %vm3997
      %v3999 = vstv %s3996
      %v4000 = vsel %vm3998, %v3999, %v3973
      %4001 = vrot.lane.b32.xlu0 %v3896, 64
      %v4002 = vpop.permute.xlu0 %4001
      %v4004 = vmul.f32 %v3901, %v4002
      %v4005 = vmul.f32 %v3918, %v4002
      %4008 = vrot.lane.b32.xlu0 %v4004, 64
      %v4009 = vpop.permute.xlu0 %4008
      %4010 = vrot.lane.b32.xlu0 %v4005, 64
      %v4011 = vpop.permute.xlu0 %4010
      %v4012 = vsel %vm1248, %v4009, %v4011
      %4014 = vadd.xlane.f32.xlu0 %v4012
      %v4015 = vpop.xlane.xlu0 %4014
      %v4016 = vrot.slane %v4015, 4
      %v4017 = vadd.f32 %v4015, %v4016
      %v4018 = vrot.slane %v4017, 2
      %v4019 = vadd.f32 %v4017, %v4018
      %v4020 = vrot.slane %v4019, 1
      %v4021 = vadd.f32 %v4019, %v4020
      %s4022 = vtos %v4021
      %s4023 = smul.f32 %s4022, 0.001
      %vm4024 = vcmp.eq.s32.totalorder %v3900, 4
      %vm4025 = vmand %vm3913, %vm4024
      %v4026 = vstv %s4023
      %v4027 = vsel %vm4025, %v4026, %v4000
      %v4028 = vld [vmem:[#allocation5] sm:$0xfe]
      %v4029 = vld [vmem:[#allocation5 + $0x10] sm:$0x1]
      %v4030 = vrot.slane %v3896, 7
      %v4032 = vmul.f32 %v4028, %v4030
      %v4033 = vmul.f32 %v4029, %v4030
      %vm4036 = vcmask 1046528
      %v4037 = vrot.slane %v4032, 1
      %v4038 = vrot.slane %v4033, 1
      %v4039 = vsel %vm4036, %v4037, %v4038
      %4041 = vadd.xlane.f32.xlu0 %v4039
      %v4042 = vpop.xlane.xlu0 %4041
      %v4043 = vrot.slane %v4042, 4
      %v4044 = vadd.f32 %v4042, %v4043
      %v4045 = vrot.slane %v4044, 2
      %v4046 = vadd.f32 %v4044, %v4045
      %v4047 = vrot.slane %v4046, 1
      %v4048 = vadd.f32 %v4046, %v4047
      %s4049 = vtos %v4048
      %s4050 = smul.f32 %s4049, 0.001
      %vm4051 = vcmp.eq.s32.totalorder %v3898, 1
      %vm4052 = vmand %vm4051, %vm3914
      %v4053 = vstv %s4050
      %v4054 = vsel %vm4052, %v4053, %v4027
      %v4055 = vld [vmem:[#allocation5 + $0x8] sm:$0xfe]
      %v4056 = vld [vmem:[#allocation5 + $0x18] sm:$0x1]
      %4057 = vrot.lane.b32.xlu0 %v4030, 16
      %v4058 = vpop.permute.xlu0 %4057
      %v4060 = vmul.f32 %v4028, %v4058
      %v4061 = vmul.f32 %v4055, %v4058
      %v4062 = vmul.f32 %v4029, %v4058
      %v4063 = vmul.f32 %v4056, %v4058
      %v4068 = vrot.slane %v4060, 1
      %v4069 = vrot.slane %v4062, 1
      %v4070 = vsel %vm4036, %v4068, %v4069
      %v4071 = vrot.slane %v4061, 1
      %v4072 = vrot.slane %v4063, 1
      %v4073 = vsel %vm4036, %v4071, %v4072
      %4074 = vrot.lane.b32.xlu0 %v4070, 112
      %v4075 = vpop.permute.xlu0 %4074
      %4076 = vrot.lane.b32.xlu0 %v4073, 112
      %v4077 = vpop.permute.xlu0 %4076
      %v4078 = vsel %vm2853, %v4075, %v4077
      %4080 = vadd.xlane.f32.xlu0 %v4078
      %v4081 = vpop.xlane.xlu0 %4080
      %v4082 = vrot.slane %v4081, 4
      %v4083 = vadd.f32 %v4081, %v4082
      %v4084 = vrot.slane %v4083, 2
      %v4085 = vadd.f32 %v4083, %v4084
      %v4086 = vrot.slane %v4085, 1
      %v4087 = vadd.f32 %v4085, %v4086
      %s4088 = vtos %v4087
      %s4089 = smul.f32 %s4088, 0.001
      %vm4090 = vmand %vm4051, %vm3943
      %v4091 = vstv %s4089
      %v4092 = vsel %vm4090, %v4091, %v4054
      %4093 = vrot.lane.b32.xlu0 %v4030, 32
      %v4094 = vpop.permute.xlu0 %4093
      %v4096 = vmul.f32 %v4028, %v4094
      %v4097 = vmul.f32 %v4055, %v4094
      %v4098 = vmul.f32 %v4029, %v4094
      %v4099 = vmul.f32 %v4056, %v4094
      %v4104 = vrot.slane %v4096, 1
      %v4105 = vrot.slane %v4098, 1
      %v4106 = vsel %vm4036, %v4104, %v4105
      %v4107 = vrot.slane %v4097, 1
      %v4108 = vrot.slane %v4099, 1
      %v4109 = vsel %vm4036, %v4107, %v4108
      %4110 = vrot.lane.b32.xlu0 %v4106, 96
      %v4111 = vpop.permute.xlu0 %4110
      %4112 = vrot.lane.b32.xlu0 %v4109, 96
      %v4113 = vpop.permute.xlu0 %4112
      %v4114 = vsel %vm2914, %v4111, %v4113
      %4116 = vadd.xlane.f32.xlu0 %v4114
      %v4117 = vpop.xlane.xlu0 %4116
      %v4118 = vrot.slane %v4117, 4
      %v4119 = vadd.f32 %v4117, %v4118
      %v4120 = vrot.slane %v4119, 2
      %v4121 = vadd.f32 %v4119, %v4120
      %v4122 = vrot.slane %v4121, 1
      %v4123 = vadd.f32 %v4121, %v4122
      %s4124 = vtos %v4123
      %s4125 = smul.f32 %s4124, 0.001
      %vm4126 = vmand %vm4051, %vm3970
      %v4127 = vstv %s4125
      %v4128 = vsel %vm4126, %v4127, %v4092
      %4129 = vrot.lane.b32.xlu0 %v4030, 48
      %v4130 = vpop.permute.xlu0 %4129
      %v4132 = vmul.f32 %v4028, %v4130
      %v4133 = vmul.f32 %v4055, %v4130
      %v4134 = vmul.f32 %v4029, %v4130
      %v4135 = vmul.f32 %v4056, %v4130
      %v4140 = vrot.slane %v4132, 1
      %v4141 = vrot.slane %v4134, 1
      %v4142 = vsel %vm4036, %v4140, %v4141
      %v4143 = vrot.slane %v4133, 1
      %v4144 = vrot.slane %v4135, 1
      %v4145 = vsel %vm4036, %v4143, %v4144
      %4146 = vrot.lane.b32.xlu0 %v4142, 80
      %v4147 = vpop.permute.xlu0 %4146
      %4148 = vrot.lane.b32.xlu0 %v4145, 80
      %v4149 = vpop.permute.xlu0 %4148
      %v4150 = vsel %vm1223, %v4147, %v4149
      %4152 = vadd.xlane.f32.xlu0 %v4150
      %v4153 = vpop.xlane.xlu0 %4152
      %v4154 = vrot.slane %v4153, 4
      %v4155 = vadd.f32 %v4153, %v4154
      %v4156 = vrot.slane %v4155, 2
      %v4157 = vadd.f32 %v4155, %v4156
      %v4158 = vrot.slane %v4157, 1
      %v4159 = vadd.f32 %v4157, %v4158
      %s4160 = vtos %v4159
      %s4161 = smul.f32 %s4160, 0.001
      %vm4162 = vmand %vm4051, %vm3997
      %v4163 = vstv %s4161
      %v4164 = vsel %vm4162, %v4163, %v4128
      %4165 = vrot.lane.b32.xlu0 %v4030, 64
      %v4166 = vpop.permute.xlu0 %4165
      %v4168 = vmul.f32 %v4028, %v4166
      %v4169 = vmul.f32 %v4055, %v4166
      %v4170 = vmul.f32 %v4029, %v4166
      %v4171 = vmul.f32 %v4056, %v4166
      %v4176 = vrot.slane %v4168, 1
      %v4177 = vrot.slane %v4170, 1
      %v4178 = vsel %vm4036, %v4176, %v4177
      %v4179 = vrot.slane %v4169, 1
      %v4180 = vrot.slane %v4171, 1
      %v4181 = vsel %vm4036, %v4179, %v4180
      %4182 = vrot.lane.b32.xlu0 %v4178, 64
      %v4183 = vpop.permute.xlu0 %4182
      %4184 = vrot.lane.b32.xlu0 %v4181, 64
      %v4185 = vpop.permute.xlu0 %4184
      %v4186 = vsel %vm1248, %v4183, %v4185
      %4188 = vadd.xlane.f32.xlu0 %v4186
      %v4189 = vpop.xlane.xlu0 %4188
      %v4190 = vrot.slane %v4189, 4
      %v4191 = vadd.f32 %v4189, %v4190
      %v4192 = vrot.slane %v4191, 2
      %v4193 = vadd.f32 %v4191, %v4192
      %v4194 = vrot.slane %v4193, 1
      %v4195 = vadd.f32 %v4193, %v4194
      %s4196 = vtos %v4195
      %s4197 = smul.f32 %s4196, 0.001
      %vm4198 = vmand %vm4051, %vm4024
      %v4199 = vstv %s4197
      %v4200 = vsel %vm4198, %v4199, %v4164
      %v4201 = vld [vmem:[#allocation5] sm:$0xfc]
      %v4202 = vld [vmem:[#allocation5 + $0x10] sm:$0x3]
      %v4203 = vrot.slane %v3896, 6
      %v4205 = vmul.f32 %v4201, %v4203
      %v4206 = vmul.f32 %v4202, %v4203
      %v4209 = vrot.slane %v4205, 2
      %v4210 = vrot.slane %v4206, 2
      %v4211 = vsel %vm400, %v4209, %v4210
      %4213 = vadd.xlane.f32.xlu0 %v4211
      %v4214 = vpop.xlane.xlu0 %4213
      %v4215 = vrot.slane %v4214, 4
      %v4216 = vadd.f32 %v4214, %v4215
      %v4217 = vrot.slane %v4216, 2
      %v4218 = vadd.f32 %v4216, %v4217
      %v4219 = vrot.slane %v4218, 1
      %v4220 = vadd.f32 %v4218, %v4219
      %s4221 = vtos %v4220
      %s4222 = smul.f32 %s4221, 0.001
      %vm4223 = vcmp.eq.s32.totalorder %v3898, 2
      %vm4224 = vmand %vm4223, %vm3914
      %v4225 = vstv %s4222
      %v4226 = vsel %vm4224, %v4225, %v4200
      %v4227 = vld [vmem:[#allocation5 + $0x8] sm:$0xfc]
      %v4228 = vld [vmem:[#allocation5 + $0x18] sm:$0x3]
      %4229 = vrot.lane.b32.xlu0 %v4203, 16
      %v4230 = vpop.permute.xlu0 %4229
      %v4232 = vmul.f32 %v4201, %v4230
      %v4233 = vmul.f32 %v4227, %v4230
      %v4234 = vmul.f32 %v4202, %v4230
      %v4235 = vmul.f32 %v4228, %v4230
      %v4240 = vrot.slane %v4232, 2
      %v4241 = vrot.slane %v4234, 2
      %v4242 = vsel %vm400, %v4240, %v4241
      %v4243 = vrot.slane %v4233, 2
      %v4244 = vrot.slane %v4235, 2
      %v4245 = vsel %vm400, %v4243, %v4244
      %4246 = vrot.lane.b32.xlu0 %v4242, 112
      %v4247 = vpop.permute.xlu0 %4246
      %4248 = vrot.lane.b32.xlu0 %v4245, 112
      %v4249 = vpop.permute.xlu0 %4248
      %v4250 = vsel %vm2853, %v4247, %v4249
      %4252 = vadd.xlane.f32.xlu0 %v4250
      %v4253 = vpop.xlane.xlu0 %4252
      %v4254 = vrot.slane %v4253, 4
      %v4255 = vadd.f32 %v4253, %v4254
      %v4256 = vrot.slane %v4255, 2
      %v4257 = vadd.f32 %v4255, %v4256
      %v4258 = vrot.slane %v4257, 1
      %v4259 = vadd.f32 %v4257, %v4258
      %s4260 = vtos %v4259
      %s4261 = smul.f32 %s4260, 0.001
      %vm4262 = vmand %vm4223, %vm3943
      %v4263 = vstv %s4261
      %v4264 = vsel %vm4262, %v4263, %v4226
      %4265 = vrot.lane.b32.xlu0 %v4203, 32
      %v4266 = vpop.permute.xlu0 %4265
      %v4268 = vmul.f32 %v4201, %v4266
      %v4269 = vmul.f32 %v4227, %v4266
      %v4270 = vmul.f32 %v4202, %v4266
      %v4271 = vmul.f32 %v4228, %v4266
      %v4276 = vrot.slane %v4268, 2
      %v4277 = vrot.slane %v4270, 2
      %v4278 = vsel %vm400, %v4276, %v4277
      %v4279 = vrot.slane %v4269, 2
      %v4280 = vrot.slane %v4271, 2
      %v4281 = vsel %vm400, %v4279, %v4280
      %4282 = vrot.lane.b32.xlu0 %v4278, 96
      %v4283 = vpop.permute.xlu0 %4282
      %4284 = vrot.lane.b32.xlu0 %v4281, 96
      %v4285 = vpop.permute.xlu0 %4284
      %v4286 = vsel %vm2914, %v4283, %v4285
      %4288 = vadd.xlane.f32.xlu0 %v4286
      %v4289 = vpop.xlane.xlu0 %4288
      %v4290 = vrot.slane %v4289, 4
      %v4291 = vadd.f32 %v4289, %v4290
      %v4292 = vrot.slane %v4291, 2
      %v4293 = vadd.f32 %v4291, %v4292
      %v4294 = vrot.slane %v4293, 1
      %v4295 = vadd.f32 %v4293, %v4294
      %s4296 = vtos %v4295
      %s4297 = smul.f32 %s4296, 0.001
      %vm4298 = vmand %vm4223, %vm3970
      %v4299 = vstv %s4297
      %v4300 = vsel %vm4298, %v4299, %v4264
      %4301 = vrot.lane.b32.xlu0 %v4203, 48
      %v4302 = vpop.permute.xlu0 %4301
      %v4304 = vmul.f32 %v4201, %v4302
      %v4305 = vmul.f32 %v4227, %v4302
      %v4306 = vmul.f32 %v4202, %v4302
      %v4307 = vmul.f32 %v4228, %v4302
      %v4312 = vrot.slane %v4304, 2
      %v4313 = vrot.slane %v4306, 2
      %v4314 = vsel %vm400, %v4312, %v4313
      %v4315 = vrot.slane %v4305, 2
      %v4316 = vrot.slane %v4307, 2
      %v4317 = vsel %vm400, %v4315, %v4316
      %4318 = vrot.lane.b32.xlu0 %v4314, 80
      %v4319 = vpop.permute.xlu0 %4318
      %4320 = vrot.lane.b32.xlu0 %v4317, 80
      %v4321 = vpop.permute.xlu0 %4320
      %v4322 = vsel %vm1223, %v4319, %v4321
      %4324 = vadd.xlane.f32.xlu0 %v4322
      %v4325 = vpop.xlane.xlu0 %4324
      %v4326 = vrot.slane %v4325, 4
      %v4327 = vadd.f32 %v4325, %v4326
      %v4328 = vrot.slane %v4327, 2
      %v4329 = vadd.f32 %v4327, %v4328
      %v4330 = vrot.slane %v4329, 1
      %v4331 = vadd.f32 %v4329, %v4330
      %s4332 = vtos %v4331
      %s4333 = smul.f32 %s4332, 0.001
      %vm4334 = vmand %vm4223, %vm3997
      %v4335 = vstv %s4333
      %v4336 = vsel %vm4334, %v4335, %v4300
      %4337 = vrot.lane.b32.xlu0 %v4203, 64
      %v4338 = vpop.permute.xlu0 %4337
      %v4340 = vmul.f32 %v4201, %v4338
      %v4341 = vmul.f32 %v4227, %v4338
      %v4342 = vmul.f32 %v4202, %v4338
      %v4343 = vmul.f32 %v4228, %v4338
      %v4348 = vrot.slane %v4340, 2
      %v4349 = vrot.slane %v4342, 2
      %v4350 = vsel %vm400, %v4348, %v4349
      %v4351 = vrot.slane %v4341, 2
      %v4352 = vrot.slane %v4343, 2
      %v4353 = vsel %vm400, %v4351, %v4352
      %4354 = vrot.lane.b32.xlu0 %v4350, 64
      %v4355 = vpop.permute.xlu0 %4354
      %4356 = vrot.lane.b32.xlu0 %v4353, 64
      %v4357 = vpop.permute.xlu0 %4356
      %v4358 = vsel %vm1248, %v4355, %v4357
      %4360 = vadd.xlane.f32.xlu0 %v4358
      %v4361 = vpop.xlane.xlu0 %4360
      %v4362 = vrot.slane %v4361, 4
      %v4363 = vadd.f32 %v4361, %v4362
      %v4364 = vrot.slane %v4363, 2
      %v4365 = vadd.f32 %v4363, %v4364
      %v4366 = vrot.slane %v4365, 1
      %v4367 = vadd.f32 %v4365, %v4366
      %s4368 = vtos %v4367
      %s4369 = smul.f32 %s4368, 0.001
      %vm4370 = vmand %vm4223, %vm4024
      %v4371 = vstv %s4369
      %v4372 = vsel %vm4370, %v4371, %v4336
      %v4373 = vld [vmem:[#allocation5] sm:$0xf8]
      %v4374 = vld [vmem:[#allocation5 + $0x10] sm:$0x7]
      %v4375 = vrot.slane %v3896, 5
      %v4377 = vmul.f32 %v4373, %v4375
      %v4378 = vmul.f32 %v4374, %v4375
      %vm4381 = vcmask 1044480
      %v4382 = vrot.slane %v4377, 3
      %v4383 = vrot.slane %v4378, 3
      %v4384 = vsel %vm4381, %v4382, %v4383
      %4386 = vadd.xlane.f32.xlu0 %v4384
      %v4387 = vpop.xlane.xlu0 %4386
      %v4388 = vrot.slane %v4387, 4
      %v4389 = vadd.f32 %v4387, %v4388
      %v4390 = vrot.slane %v4389, 2
      %v4391 = vadd.f32 %v4389, %v4390
      %v4392 = vrot.slane %v4391, 1
      %v4393 = vadd.f32 %v4391, %v4392
      %s4394 = vtos %v4393
      %s4395 = smul.f32 %s4394, 0.001
      %vm4396 = vcmp.eq.s32.totalorder %v3898, 3
      %vm4397 = vmand %vm4396, %vm3914
      %v4398 = vstv %s4395
      %v4399 = vsel %vm4397, %v4398, %v4372
      %v4400 = vld [vmem:[#allocation5 + $0x8] sm:$0xf8]
      %v4401 = vld [vmem:[#allocation5 + $0x18] sm:$0x7]
      %4402 = vrot.lane.b32.xlu0 %v4375, 16
      %v4403 = vpop.permute.xlu0 %4402
      %v4405 = vmul.f32 %v4373, %v4403
      %v4406 = vmul.f32 %v4400, %v4403
      %v4407 = vmul.f32 %v4374, %v4403
      %v4408 = vmul.f32 %v4401, %v4403
      %v4413 = vrot.slane %v4405, 3
      %v4414 = vrot.slane %v4407, 3
      %v4415 = vsel %vm4381, %v4413, %v4414
      %v4416 = vrot.slane %v4406, 3
      %v4417 = vrot.slane %v4408, 3
      %v4418 = vsel %vm4381, %v4416, %v4417
      %4419 = vrot.lane.b32.xlu0 %v4415, 112
      %v4420 = vpop.permute.xlu0 %4419
      %4421 = vrot.lane.b32.xlu0 %v4418, 112
      %v4422 = vpop.permute.xlu0 %4421
      %v4423 = vsel %vm2853, %v4420, %v4422
      %4425 = vadd.xlane.f32.xlu0 %v4423
      %v4426 = vpop.xlane.xlu0 %4425
      %v4427 = vrot.slane %v4426, 4
      %v4428 = vadd.f32 %v4426, %v4427
      %v4429 = vrot.slane %v4428, 2
      %v4430 = vadd.f32 %v4428, %v4429
      %v4431 = vrot.slane %v4430, 1
      %v4432 = vadd.f32 %v4430, %v4431
      %s4433 = vtos %v4432
      %s4434 = smul.f32 %s4433, 0.001
      %vm4435 = vmand %vm4396, %vm3943
      %v4436 = vstv %s4434
      %v4437 = vsel %vm4435, %v4436, %v4399
      %4438 = vrot.lane.b32.xlu0 %v4375, 32
      %v4439 = vpop.permute.xlu0 %4438
      %v4441 = vmul.f32 %v4373, %v4439
      %v4442 = vmul.f32 %v4400, %v4439
      %v4443 = vmul.f32 %v4374, %v4439
      %v4444 = vmul.f32 %v4401, %v4439
      %v4449 = vrot.slane %v4441, 3
      %v4450 = vrot.slane %v4443, 3
      %v4451 = vsel %vm4381, %v4449, %v4450
      %v4452 = vrot.slane %v4442, 3
      %v4453 = vrot.slane %v4444, 3
      %v4454 = vsel %vm4381, %v4452, %v4453
      %4455 = vrot.lane.b32.xlu0 %v4451, 96
      %v4456 = vpop.permute.xlu0 %4455
      %4457 = vrot.lane.b32.xlu0 %v4454, 96
      %v4458 = vpop.permute.xlu0 %4457
      %v4459 = vsel %vm2914, %v4456, %v4458
      %4461 = vadd.xlane.f32.xlu0 %v4459
      %v4462 = vpop.xlane.xlu0 %4461
      %v4463 = vrot.slane %v4462, 4
      %v4464 = vadd.f32 %v4462, %v4463
      %v4465 = vrot.slane %v4464, 2
      %v4466 = vadd.f32 %v4464, %v4465
      %v4467 = vrot.slane %v4466, 1
      %v4468 = vadd.f32 %v4466, %v4467
      %s4469 = vtos %v4468
      %s4470 = smul.f32 %s4469, 0.001
      %vm4471 = vmand %vm4396, %vm3970
      %v4472 = vstv %s4470
      %v4473 = vsel %vm4471, %v4472, %v4437
      %4474 = vrot.lane.b32.xlu0 %v4375, 48
      %v4475 = vpop.permute.xlu0 %4474
      %v4477 = vmul.f32 %v4373, %v4475
      %v4478 = vmul.f32 %v4400, %v4475
      %v4479 = vmul.f32 %v4374, %v4475
      %v4480 = vmul.f32 %v4401, %v4475
      %v4485 = vrot.slane %v4477, 3
      %v4486 = vrot.slane %v4479, 3
      %v4487 = vsel %vm4381, %v4485, %v4486
      %v4488 = vrot.slane %v4478, 3
      %v4489 = vrot.slane %v4480, 3
      %v4490 = vsel %vm4381, %v4488, %v4489
      %4491 = vrot.lane.b32.xlu0 %v4487, 80
      %v4492 = vpop.permute.xlu0 %4491
      %4493 = vrot.lane.b32.xlu0 %v4490, 80
      %v4494 = vpop.permute.xlu0 %4493
      %v4495 = vsel %vm1223, %v4492, %v4494
      %4497 = vadd.xlane.f32.xlu0 %v4495
      %v4498 = vpop.xlane.xlu0 %4497
      %v4499 = vrot.slane %v4498, 4
      %v4500 = vadd.f32 %v4498, %v4499
      %v4501 = vrot.slane %v4500, 2
      %v4502 = vadd.f32 %v4500, %v4501
      %v4503 = vrot.slane %v4502, 1
      %v4504 = vadd.f32 %v4502, %v4503
      %s4505 = vtos %v4504
      %s4506 = smul.f32 %s4505, 0.001
      %vm4507 = vmand %vm4396, %vm3997
      %v4508 = vstv %s4506
      %v4509 = vsel %vm4507, %v4508, %v4473
      %4510 = vrot.lane.b32.xlu0 %v4375, 64
      %v4511 = vpop.permute.xlu0 %4510
      %v4513 = vmul.f32 %v4373, %v4511
      %v4514 = vmul.f32 %v4400, %v4511
      %v4515 = vmul.f32 %v4374, %v4511
      %v4516 = vmul.f32 %v4401, %v4511
      %v4521 = vrot.slane %v4513, 3
      %v4522 = vrot.slane %v4515, 3
      %v4523 = vsel %vm4381, %v4521, %v4522
      %v4524 = vrot.slane %v4514, 3
      %v4525 = vrot.slane %v4516, 3
      %v4526 = vsel %vm4381, %v4524, %v4525
      %4527 = vrot.lane.b32.xlu0 %v4523, 64
      %v4528 = vpop.permute.xlu0 %4527
      %4529 = vrot.lane.b32.xlu0 %v4526, 64
      %v4530 = vpop.permute.xlu0 %4529
      %v4531 = vsel %vm1248, %v4528, %v4530
      %4533 = vadd.xlane.f32.xlu0 %v4531
      %v4534 = vpop.xlane.xlu0 %4533
      %v4535 = vrot.slane %v4534, 4
      %v4536 = vadd.f32 %v4534, %v4535
      %v4537 = vrot.slane %v4536, 2
      %v4538 = vadd.f32 %v4536, %v4537
      %v4539 = vrot.slane %v4538, 1
      %v4540 = vadd.f32 %v4538, %v4539
      %s4541 = vtos %v4540
      %s4542 = smul.f32 %s4541, 0.001
      %vm4543 = vmand %vm4396, %vm4024
      %v4544 = vstv %s4542
      %v4545 = vsel %vm4543, %v4544, %v4509
      %v4546 = vld [vmem:[#allocation5] sm:$0xf0]
      %v4547 = vld [vmem:[#allocation5 + $0x10] sm:$0xf]
      %v4548 = vrot.slane %v3896, 4
      %v4550 = vmul.f32 %v4546, %v4548
      %v4551 = vmul.f32 %v4547, %v4548
      %vm4554 = vcmask 1043456
      %v4555 = vrot.slane %v4550, 4
      %v4556 = vrot.slane %v4551, 4
      %v4557 = vsel %vm4554, %v4555, %v4556
      %4559 = vadd.xlane.f32.xlu0 %v4557
      %v4560 = vpop.xlane.xlu0 %4559
      %v4561 = vrot.slane %v4560, 4
      %v4562 = vadd.f32 %v4560, %v4561
      %v4563 = vrot.slane %v4562, 2
      %v4564 = vadd.f32 %v4562, %v4563
      %v4565 = vrot.slane %v4564, 1
      %v4566 = vadd.f32 %v4564, %v4565
      %s4567 = vtos %v4566
      %s4568 = smul.f32 %s4567, 0.001
      %vm4569 = vcmp.eq.s32.totalorder %v3898, 4
      %vm4570 = vmand %vm4569, %vm3914
      %v4571 = vstv %s4568
      %v4572 = vsel %vm4570, %v4571, %v4545
      %v4573 = vld [vmem:[#allocation5 + $0x8] sm:$0xf0]
      %v4574 = vld [vmem:[#allocation5 + $0x18] sm:$0xf]
      %4575 = vrot.lane.b32.xlu0 %v4548, 16
      %v4576 = vpop.permute.xlu0 %4575
      %v4578 = vmul.f32 %v4546, %v4576
      %v4579 = vmul.f32 %v4573, %v4576
      %v4580 = vmul.f32 %v4547, %v4576
      %v4581 = vmul.f32 %v4574, %v4576
      %v4586 = vrot.slane %v4578, 4
      %v4587 = vrot.slane %v4580, 4
      %v4588 = vsel %vm4554, %v4586, %v4587
      %v4589 = vrot.slane %v4579, 4
      %v4590 = vrot.slane %v4581, 4
      %v4591 = vsel %vm4554, %v4589, %v4590
      %4592 = vrot.lane.b32.xlu0 %v4588, 112
      %v4593 = vpop.permute.xlu0 %4592
      %4594 = vrot.lane.b32.xlu0 %v4591, 112
      %v4595 = vpop.permute.xlu0 %4594
      %v4596 = vsel %vm2853, %v4593, %v4595
      %4598 = vadd.xlane.f32.xlu0 %v4596
      %v4599 = vpop.xlane.xlu0 %4598
      %v4600 = vrot.slane %v4599, 4
      %v4601 = vadd.f32 %v4599, %v4600
      %v4602 = vrot.slane %v4601, 2
      %v4603 = vadd.f32 %v4601, %v4602
      %v4604 = vrot.slane %v4603, 1
      %v4605 = vadd.f32 %v4603, %v4604
      %s4606 = vtos %v4605
      %s4607 = smul.f32 %s4606, 0.001
      %vm4608 = vmand %vm4569, %vm3943
      %v4609 = vstv %s4607
      %v4610 = vsel %vm4608, %v4609, %v4572
      %4611 = vrot.lane.b32.xlu0 %v4548, 32
      %v4612 = vpop.permute.xlu0 %4611
      %v4614 = vmul.f32 %v4546, %v4612
      %v4615 = vmul.f32 %v4573, %v4612
      %v4616 = vmul.f32 %v4547, %v4612
      %v4617 = vmul.f32 %v4574, %v4612
      %v4622 = vrot.slane %v4614, 4
      %v4623 = vrot.slane %v4616, 4
      %v4624 = vsel %vm4554, %v4622, %v4623
      %v4625 = vrot.slane %v4615, 4
      %v4626 = vrot.slane %v4617, 4
      %v4627 = vsel %vm4554, %v4625, %v4626
      %4628 = vrot.lane.b32.xlu0 %v4624, 96
      %v4629 = vpop.permute.xlu0 %4628
      %4630 = vrot.lane.b32.xlu0 %v4627, 96
      %v4631 = vpop.permute.xlu0 %4630
      %v4632 = vsel %vm2914, %v4629, %v4631
      %4634 = vadd.xlane.f32.xlu0 %v4632
      %v4635 = vpop.xlane.xlu0 %4634
      %v4636 = vrot.slane %v4635, 4
      %v4637 = vadd.f32 %v4635, %v4636
      %v4638 = vrot.slane %v4637, 2
      %v4639 = vadd.f32 %v4637, %v4638
      %v4640 = vrot.slane %v4639, 1
      %v4641 = vadd.f32 %v4639, %v4640
      %s4642 = vtos %v4641
      %s4643 = smul.f32 %s4642, 0.001
      %vm4644 = vmand %vm4569, %vm3970
      %v4645 = vstv %s4643
      %v4646 = vsel %vm4644, %v4645, %v4610
      %4647 = vrot.lane.b32.xlu0 %v4548, 48
      %v4648 = vpop.permute.xlu0 %4647
      %v4650 = vmul.f32 %v4546, %v4648
      %v4651 = vmul.f32 %v4573, %v4648
      %v4652 = vmul.f32 %v4547, %v4648
      %v4653 = vmul.f32 %v4574, %v4648
      %v4658 = vrot.slane %v4650, 4
      %v4659 = vrot.slane %v4652, 4
      %v4660 = vsel %vm4554, %v4658, %v4659
      %v4661 = vrot.slane %v4651, 4
      %v4662 = vrot.slane %v4653, 4
      %v4663 = vsel %vm4554, %v4661, %v4662
      %4664 = vrot.lane.b32.xlu0 %v4660, 80
      %v4665 = vpop.permute.xlu0 %4664
      %4666 = vrot.lane.b32.xlu0 %v4663, 80
      %v4667 = vpop.permute.xlu0 %4666
      %v4668 = vsel %vm1223, %v4665, %v4667
      %4670 = vadd.xlane.f32.xlu0 %v4668
      %v4671 = vpop.xlane.xlu0 %4670
      %v4672 = vrot.slane %v4671, 4
      %v4673 = vadd.f32 %v4671, %v4672
      %v4674 = vrot.slane %v4673, 2
      %v4675 = vadd.f32 %v4673, %v4674
      %v4676 = vrot.slane %v4675, 1
      %v4677 = vadd.f32 %v4675, %v4676
      %s4678 = vtos %v4677
      %s4679 = smul.f32 %s4678, 0.001
      %vm4680 = vmand %vm4569, %vm3997
      %v4681 = vstv %s4679
      %v4682 = vsel %vm4680, %v4681, %v4646
      %4683 = vrot.lane.b32.xlu0 %v4548, 64
      %v4684 = vpop.permute.xlu0 %4683
      %v4686 = vmul.f32 %v4546, %v4684
      %v4687 = vmul.f32 %v4573, %v4684
      %v4688 = vmul.f32 %v4547, %v4684
      %v4689 = vmul.f32 %v4574, %v4684
      %v4694 = vrot.slane %v4686, 4
      %v4695 = vrot.slane %v4688, 4
      %v4696 = vsel %vm4554, %v4694, %v4695
      %v4697 = vrot.slane %v4687, 4
      %v4698 = vrot.slane %v4689, 4
      %v4699 = vsel %vm4554, %v4697, %v4698
      %4700 = vrot.lane.b32.xlu0 %v4696, 64
      %v4701 = vpop.permute.xlu0 %4700
      %4702 = vrot.lane.b32.xlu0 %v4699, 64
      %v4703 = vpop.permute.xlu0 %4702
      %v4704 = vsel %vm1248, %v4701, %v4703
      %4706 = vadd.xlane.f32.xlu0 %v4704
      %v4707 = vpop.xlane.xlu0 %4706
      %v4708 = vrot.slane %v4707, 4
      %v4709 = vadd.f32 %v4707, %v4708
      %v4710 = vrot.slane %v4709, 2
      %v4711 = vadd.f32 %v4709, %v4710
      %v4712 = vrot.slane %v4711, 1
      %v4713 = vadd.f32 %v4711, %v4712
      %s4714 = vtos %v4713
      %s4715 = smul.f32 %s4714, 0.001
      %vm4716 = vmand %vm4569, %vm4024
      %v4717 = vstv %s4715
      %v4718 = vsel %vm4716, %v4717, %v4682
      %4719 = vst [vmem:[%s377] sm:$0xff] %v4718
      %p4720 = scmp.lt.s32.totalorder %s21, 1
      %s4721 = scalar_select %p4720, %s21, 1
      %s4722 = smul.addr %s4721, 8
      %s4723 = scalar_lea.vmem %s10, %s4722
      // Predicated region
      $region61: #{net_forward.1} parent=59 // pred_check
        %p4724 = pneg %p259
      $region62: #{net_forward.1} parent=59 // pred_check_branch
        %4726 = sbr.rel (%p4724) target = $region64
      $region63: #{net_forward.1} parent=59 // pred_region
        _
      $region64: #{net_forward.1} parent=59 // pred_fallthru
        _
    $region60: #{net_forward.1} parent=5 // pred_fallthru
      _
    %p4727 = scmp.le.s32.totalorder 2, %s16
    // Predicated region
    $region65: #{net_forward.1} parent=5 // pred_check
      %p4728 = pneg %p4727
    $region66: #{net_forward.1} parent=5 // pred_check_branch
      %4730 = sbr.rel (%p4728) target = $region68
    $region67: #{net_forward.1} parent=5 // pred_region
      %s4731 = ssub.s32 %s16, 2
      // Predicated region
      $region69: #{net_forward.1} parent=67 // pred_check
        %p4732 = pneg %p265
      $region70: #{net_forward.1} parent=67 // pred_check_branch
        %4734 = sbr.rel (%p4732) target = $region72
      $region71: #{net_forward.1} parent=67 // pred_region
        %p4735 = scmp.lt.s32.totalorder %s22, 1
        %s4736 = scalar_select %p4735, %s22, 1
        %s4737 = smul.addr %s4736, 8
        %s4738 = scalar_lea.vmem %s10, %s4737
      $region72: #{net_forward.1} parent=67 // pred_fallthru
        _
    $region68: #{net_forward.1} parent=5 // pred_fallthru
      _
  $region6: #{net_forward.1} parent=0 // loop_footer
    %s20 = sadd.s32 1, %s16
  $region7: #{net_forward.1} parent=0 // loop_footer_branch
    %15 = sbr.rel target = $region3
  $region8: #{net_forward.1} parent=0 // loop_exit
    _

</llo_original>
